<compile_context>
chip_gen: v5e
topology: v5e:2x2
jax: 0.10.0
libtpu: 0.0.40
codegen_flags: <defaults>
</compile_context>

<pallas_src>
import functools

import jax
import jax.numpy as jnp
from jax import lax
from jax.experimental import pallas as pl
from jax.experimental.pallas import tpu as pltpu

FEATURE_DIM = 1920
EPS = 1e-6


def _gem_linear_kernel(s_ref, x_ref, w_ref, b_ref, o_ref, *, inv_hw):
    """Fused GeM pooling + linear classifier for a block of Bt batch elements.

    s_ref : SMEM (2,)  f32        [p, 1/p]  (learnable GeM exponent, hoisted inverse)
    x_ref : VMEM (Bt, C, HW)      native channel-major feature-map block
    w_ref : VMEM (NCP, C)         classifier weight, native layout, zero-padded to NCP
    b_ref : VMEM (1, NCP)         classifier bias, zero-padded to NCP
    o_ref : VMEM (Bt, NCP)        padded logits for this batch block
    """
    p = s_ref[0]
    inv_p = s_ref[1]

    # Elementwise clamp + pow in the native layout (no transpose needed).
    x = x_ref[...].astype(jnp.float32)             # (Bt, C, HW)
    x = jnp.maximum(x, EPS)                        # clamp(min=eps)
    xp = jnp.power(x, p)                           # x^p (x > 0, safe)

    # Spatial mean folded into the ^(1/p) step: (sum * 1/HW)^(1/p).
    pooled = jnp.sum(xp, axis=-1) * inv_hw         # (Bt, C)
    feat = jnp.power(pooled, inv_p)                # (Bt, C)  GeM feature
    # dropout = identity (inference)

    # trans_b contraction on C: (Bt, C) x (NCP, C) -> (Bt, NCP) on the MXU.
    logits = lax.dot_general(
        feat, w_ref[...],
        dimension_numbers=(((1,), (1,)), ((), ())),
        preferred_element_type=jnp.float32)
    o_ref[...] = (logits + b_ref[...]).astype(o_ref.dtype)


def baseline_single_gem_head(x_nchw, p, weight, bias, *, bt=None):
    """x_nchw: (B, C, H, W) backbone features.  Returns logits (B, num_classes)."""
    B, C, H, W = x_nchw.shape
    num_classes = weight.shape[0]
    assert C == FEATURE_DIM

    HW = H * W
    ncp = max(128, ((num_classes + 127) // 128) * 128)   # lane-dense padded N

    # Batch tile: keep one feature block <= ~8 MiB so 2x-buffered inputs plus
    # the resident weight stay well under v7x's 64 MiB VMEM (and v5e/v6e's 128).
    if bt is None:
        x_block_bytes = C * HW * 4
        bt = max(1, min(8, (8 * 1024 * 1024) // max(1, x_block_bytes)))
    bt = max(1, min(bt, B))
    n_blocks = -(-B // bt)
    b_pad_total = n_blocks * bt

    # Native layout view: free, contiguous reshape only (no HBM transpose).
    # TODO(synk): if production HW is not a multiple of 128 (e.g. 7x7), prefer
    # a channels-last (B, HW, C) backbone epilogue so C=1920 is the lane axis.
    x = x_nchw.reshape(B, C, HW)
    if b_pad_total != B:
        x = jnp.pad(x, ((0, b_pad_total - B), (0, 0), (0, 0)))

    # Pad classifier to a full 128-wide MXU tile in its NATIVE (ncp, C) layout;
    # zero rows contribute exactly-zero padded logits that are sliced off.
    w_pad = jnp.pad(weight.astype(jnp.float32),
                    ((0, ncp - num_classes), (0, 0)))           # (ncp, C)
    b_pad = jnp.pad(bias.astype(jnp.float32),
                    (0, ncp - num_classes)).reshape(1, ncp)      # (1, ncp)

    pv = p.reshape(()).astype(jnp.float32)
    scalars = jnp.stack([pv, 1.0 / pv])                          # [p, 1/p] -> SMEM

    out = pl.pallas_call(
        functools.partial(_gem_linear_kernel, inv_hw=float(1.0 / HW)),
        out_shape=jax.ShapeDtypeStruct((b_pad_total, ncp), jnp.float32),
        grid=(n_blocks,),
        in_specs=[
            pl.BlockSpec(memory_space=pltpu.MemorySpace.SMEM),         # [p, 1/p]
            pl.BlockSpec((bt, C, HW), lambda b: (b, 0, 0)),            # feature block
            pl.BlockSpec((ncp, C), lambda b: (0, 0)),                  # W (resident)
            pl.BlockSpec((1, ncp), lambda b: (0, 0)),                  # bias (resident)
        ],
        out_specs=pl.BlockSpec((bt, ncp), lambda b: (b, 0)),
        compiler_params=pltpu.CompilerParams(
            dimension_semantics=("parallel",),        # shards batch blocks over v7x's 2 TCs
            vmem_limit_bytes=48 * 1024 * 1024,        # fits v5e/v6e and v7x's 64 MiB
        ),
    )(scalars, x, w_pad, b_pad)

    return out[:B, :num_classes]


def _reference(x_nchw, p, weight, bias):
    """Pure-JAX reference mirroring the PyTorch GeM + Linear semantics."""
    pv = p.reshape(()).astype(jnp.float32)
    xc = jnp.clip(x_nchw.astype(jnp.float32), EPS, None) ** pv
    pooled = jnp.mean(xc, axis=(2, 3)) ** (1.0 / pv)             # (B, C)
    return pooled @ weight.T + bias


if __name__ == "__main__":
    key = jax.random.PRNGKey(0)
    k_x, k_w, k_b = jax.random.split(key, 3)

    # densenet201 feature map for e.g. a 512x256 re-ID crop -> (B, 1920, 16, 8).
    B, C, H, W = 2, FEATURE_DIM, 16, 8
    num_classes = 16

    # deterministic "parameters" (synthetic init, not a checkpoint)
    x = jax.random.uniform(k_x, (B, C, H, W), jnp.float32)       # post-backbone features
    p = jnp.array([3.0], jnp.float32)                            # GeM exponent init (p=3)
    weight = jax.random.normal(k_w, (num_classes, C), jnp.float32) * 0.02
    bias = jax.random.normal(k_b, (num_classes,), jnp.float32) * 0.01

    out = baseline_single_gem_head(x, p, weight, bias)
    out = jax.block_until_ready(out)

    ref = _reference(x, p, weight, bias)
    assert out.shape == (B, num_classes)
    err = float(jnp.max(jnp.abs(out - ref)))
    assert jnp.allclose(out, ref, atol=2e-3, rtol=2e-3), err

    print("KERNEL_OK")
</pallas_src>

<mosaic_0001>
module attributes {stable_mosaic.version = 11 : i64} {
  func.func @_gem_linear_kernel(%arg0: i32, %arg1: memref<2xf32, #tpu.memory_space<smem>>, %arg2: memref<2x1920x128xf32, #tpu.memory_space<vmem>>, %arg3: memref<128x1920xf32, #tpu.memory_space<vmem>>, %arg4: memref<1x128xf32, #tpu.memory_space<vmem>>, %arg5: memref<2x128xf32, #tpu.memory_space<vmem>>) attributes {dimension_semantics = [#tpu.dimension_semantics<parallel>], iteration_bounds = array<i64: 1>, scalar_prefetch = 0 : i64, scratch_operands = 0 : i64, tpu.core_type = #tpu.core_type<tc>, window_params = [{transform_indices = @transform_0, window_bounds = array<i64: 2>}, {transform_indices = @transform_1, window_bounds = array<i64: 2, 1920, 128>}, {pipeline_mode = #tpu.pipeline_mode<synchronous>, transform_indices = @transform_2, window_bounds = array<i64: 128, 1920>}, {pipeline_mode = #tpu.pipeline_mode<synchronous>, transform_indices = @transform_3, window_bounds = array<i64: 1, 128>}, {transform_indices = @transform_4, window_bounds = array<i64: 2, 128>}]} {
    %c0 = arith.constant 0 : index
    %0 = memref.load %arg1[%c0] : memref<2xf32, #tpu.memory_space<smem>>
    %c1 = arith.constant 1 : index
    %1 = memref.load %arg1[%c1] : memref<2xf32, #tpu.memory_space<smem>>
    %c0_0 = arith.constant 0 : index
    %c0_1 = arith.constant 0 : index
    %c0_2 = arith.constant 0 : index
    %2 = vector.load %arg2[%c0_0, %c0_1, %c0_2] : memref<2x1920x128xf32, #tpu.memory_space<vmem>>, vector<2x1920x128xf32>
    %cst = arith.constant 9.99999997E-7 : f32
    %3 = vector.broadcast %cst : f32 to vector<2x1920x128xf32>
    %4 = arith.maximumf %2, %3 : vector<2x1920x128xf32>
    %5 = vector.broadcast %0 : f32 to vector<2x1920x128xf32>
    %6 = math.powf %4, %5 : vector<2x1920x128xf32>
    %cst_3 = arith.constant dense<0.000000e+00> : vector<2x1920xf32>
    %7 = vector.multi_reduction <add>, %6, %cst_3 [2] : vector<2x1920x128xf32> to vector<2x1920xf32>
    %cst_4 = arith.constant 7.812500e-03 : f32
    %8 = vector.broadcast %cst_4 : f32 to vector<2x1920xf32>
    %9 = arith.mulf %7, %8 : vector<2x1920xf32>
    %10 = vector.broadcast %1 : f32 to vector<2x1920xf32>
    %11 = math.powf %9, %10 : vector<2x1920xf32>
    %c0_5 = arith.constant 0 : index
    %c0_6 = arith.constant 0 : index
    %12 = vector.load %arg3[%c0_5, %c0_6] : memref<128x1920xf32, #tpu.memory_space<vmem>>, vector<128x1920xf32>
    %cst_7 = arith.constant dense<0.000000e+00> : vector<2x128xf32>
    %13 = tpu.matmul %11, %12, %cst_7 {dimension_numbers = #tpu.dot_dimension_numbers<[1], [1], [0], [0], [0, 0, 1, 0], [], []>} : vector<2x1920xf32>, vector<128x1920xf32>, vector<2x128xf32> -> vector<2x128xf32>
    %c0_8 = arith.constant 0 : index
    %c0_9 = arith.constant 0 : index
    %14 = vector.load %arg4[%c0_8, %c0_9] : memref<1x128xf32, #tpu.memory_space<vmem>>, vector<1x128xf32>
    %15 = vector.broadcast %14 : vector<1x128xf32> to vector<2x128xf32>
    %16 = arith.addf %13, %15 : vector<2x128xf32>
    %c0_10 = arith.constant 0 : index
    %c0_11 = arith.constant 0 : index
    %17 = vector.load %arg5[%c0_10, %c0_11] : memref<2x128xf32, #tpu.memory_space<vmem>>, vector<2x128xf32>
    tpu.vector_store %arg5[%c0_10, %c0_11], %16 {strides = array<i32>} : memref<2x128xf32, #tpu.memory_space<vmem>>, vector<2x128xf32>,
    return
  }
  func.func @transform_0(%arg0: i32) -> i32 {
    %c0_i32 = arith.constant 0 : i32
    %c0_i32_0 = arith.constant 0 : i32
    return %c0_i32 : i32
  }
  func.func @transform_1(%arg0: i32) -> (i32, i32, i32) {
    %c0_i32 = arith.constant 0 : i32
    %c0_i32_0 = arith.constant 0 : i32
    %c0_i32_1 = arith.constant 0 : i32
    return %arg0, %c0_i32, %c0_i32_0 : i32, i32, i32
  }
  func.func @transform_2(%arg0: i32) -> (i32, i32) {
    %c0_i32 = arith.constant 0 : i32
    %c0_i32_0 = arith.constant 0 : i32
    %c0_i32_1 = arith.constant 0 : i32
    return %c0_i32, %c0_i32_0 : i32, i32
  }
  func.func @transform_3(%arg0: i32) -> (i32, i32) {
    %c0_i32 = arith.constant 0 : i32
    %c0_i32_0 = arith.constant 0 : i32
    %c0_i32_1 = arith.constant 0 : i32
    return %c0_i32, %c0_i32_0 : i32, i32
  }
  func.func @transform_4(%arg0: i32) -> (i32, i32) {
    %c0_i32 = arith.constant 0 : i32
    %c0_i32_0 = arith.constant 0 : i32
    return %arg0, %c0_i32 : i32, i32
  }
}

</mosaic_0001>

<llo_original>
// kernel: tpu_custom_call.1
$region0: #{tpu_custom_call.1}
  #allocation0 [shape = 'u32[]', space=smem, size = 0x4, offset = 0x4, fixed_abs, tag = 'smem constant byte address 0x4 - core index']
  #allocation1 [shape = 'u32[72,128]{1,0:T(1,128)}', space=vmem, size = 0x9000, scoped, tag = 'internal scratch']
  %s0 = inlined_call_operand.hbm [shape: f32[2], index: 0, kind: input, shape index: {}]
  %s1 = inlined_call_operand.hbm [shape: f32[2,1920,128], index: 1, kind: input, shape index: {}]
  %s2 = inlined_call_operand.hbm [shape: f32[128,1920], index: 2, kind: input, shape index: {}]
  %s3 = inlined_call_operand.hbm [shape: f32[1,128], index: 3, kind: input, shape index: {}]
  %s4 = inlined_call_operand.hbm [shape: f32[2,128], index: 4, kind: output, shape index: {}]
  %s5 = sld [smem:[#allocation0]]
  $region42: #{tpu_custom_call.1} parent=0
    _
  %s7 = ssub.s32 1, %s5
  %s8 = scalar_select 0, %s7, %s5
  $region1: #{tpu_custom_call.1} parent=0
    #allocation2 [shape = 'u8[512]{0}', space=smem, size = 0x200, scoped, tag = 'input window, operand 0, single buffered']
    #allocation3 [shape = 's32[1]{0}', space=sflag, size = 0x4, scoped, tag = 'scoped memory for tpu_custom_call.1']
    #allocation4 [shape = 's32[1]{0}', space=sflag, size = 0x4, scoped, tag = 'scoped memory for tpu_custom_call.1']
    #allocation5 [shape = 's32[1]{0}', space=sflag, size = 0x4, scoped, tag = 'scoped memory for tpu_custom_call.1']
    #allocation6 [shape = 'u8[1966080]{0}', space=vmem, size = 0x1e0000, scoped, tag = 'input window, operand 1, single buffered']
    #allocation7 [shape = 'u8[983040]{0}', space=vmem, size = 0xf0000, scoped, tag = 'input window, operand 2, single buffered']
    #allocation8 [shape = 's32[1]{0}', space=sflag, size = 0x4, scoped, tag = 'scoped memory for tpu_custom_call.1']
    #allocation9 [shape = 'u8[512]{0}', space=vmem, size = 0x400, scoped, tag = 'input window, operand 3, single buffered']
    #allocation10 [shape = 'u8[1024]{0}', space=vmem, size = 0x400, scoped, tag = 'output window, operand 0, single buffered']
    %9 = vsyncpa [#allocation5], 0
    %10 = vsyncpa [#allocation3], 0
    %11 = vsyncpa [#allocation8], 0
    %12 = vsyncpa [#allocation4], 0
    // Predicated region
    $region2: #{tpu_custom_call.1} parent=1 // pred_check
      _
    $region3: #{tpu_custom_call.1} parent=1 // pred_check_branch
      %14 = sbr.rel (0) target = $region5
    $region4: #{tpu_custom_call.1} parent=1 // pred_region
      %16 = vsyncadd [#allocation5], 0
      %s18 = sshll.u32 %s0, 4
      %s19 = int_to_ptr.hbm [resolvable:$true] %s18
      %21 = dma.hbm_to_smem %s19, 16, [#allocation2], [#allocation5]
    $region5: #{tpu_custom_call.1} parent=1 // pred_fallthru
      _
    // Predicated region
    $region6: #{tpu_custom_call.1} parent=1 // pred_check
      _
    $region7: #{tpu_custom_call.1} parent=1 // pred_check_branch
      %23 = sbr.rel (0) target = $region9
    $region8: #{tpu_custom_call.1} parent=1 // pred_region
      %25 = vsyncadd [#allocation3], 0
      %s26 = sshll.u32 %s1, 4
      %s27 = int_to_ptr.hbm [resolvable:$true] %s26
      %s28 = sshll.u32 [#allocation6], 4
      %s29 = int_to_ptr.vmem [resolvable:$true] %s28
      %34 = dma.hbm_to_vmem [thread:$0]  %s27, 61440, %s29, [#allocation3], 128, 128, 8
    $region9: #{tpu_custom_call.1} parent=1 // pred_fallthru
      _
    // Predicated region
    $region10: #{tpu_custom_call.1} parent=1 // pred_check
      _
    $region11: #{tpu_custom_call.1} parent=1 // pred_check_branch
      %36 = sbr.rel (0) target = $region13
    $region12: #{tpu_custom_call.1} parent=1 // pred_region
      %38 = vsyncadd [#allocation8], 0
      %s39 = sshll.u32 %s2, 4
      %s40 = int_to_ptr.hbm [resolvable:$true] %s39
      %s41 = sshll.u32 [#allocation7], 4
      %s42 = int_to_ptr.vmem [resolvable:$true] %s41
      %47 = dma.hbm_to_vmem [thread:$0]  %s40, 30720, %s42, [#allocation8], 1920, 1920, 120
    $region13: #{tpu_custom_call.1} parent=1 // pred_fallthru
      _
    // Predicated region
    $region14: #{tpu_custom_call.1} parent=1 // pred_check
      _
    $region15: #{tpu_custom_call.1} parent=1 // pred_check_branch
      %49 = sbr.rel (0) target = $region17
    $region16: #{tpu_custom_call.1} parent=1 // pred_region
      %51 = vsyncadd [#allocation8], 0
      %s53 = sshll.u32 %s3, 4
      %s54 = int_to_ptr.hbm [resolvable:$true] %s53
      %s55 = sshll.u32 [#allocation9], 4
      %s56 = int_to_ptr.vmem [resolvable:$true] %s55
      %58 = dma.hbm_to_vmem [thread:$0]  %s54, 16, %s56, [#allocation8]
    $region17: #{tpu_custom_call.1} parent=1 // pred_fallthru
      _
    // Predicated region
    $region18: #{tpu_custom_call.1} parent=1 // pred_check
      _
    $region19: #{tpu_custom_call.1} parent=1 // pred_check_branch
      %60 = sbr.rel (0) target = $region21
    $region20: #{tpu_custom_call.1} parent=1 // pred_region
      %62 = dma.done [#allocation5], 16
    $region21: #{tpu_custom_call.1} parent=1 // pred_fallthru
      _
    // Predicated region
    $region22: #{tpu_custom_call.1} parent=1 // pred_check
      _
    $region23: #{tpu_custom_call.1} parent=1 // pred_check_branch
      %64 = sbr.rel (0) target = $region25
    $region24: #{tpu_custom_call.1} parent=1 // pred_region
      %66 = dma.done [#allocation3], 61440
    $region25: #{tpu_custom_call.1} parent=1 // pred_fallthru
      _
    // Predicated region
    $region26: #{tpu_custom_call.1} parent=1 // pred_check
      _
    $region27: #{tpu_custom_call.1} parent=1 // pred_check_branch
      %68 = sbr.rel (0) target = $region29
    $region28: #{tpu_custom_call.1} parent=1 // pred_region
      %70 = dma.done [#allocation8], 30720
    $region29: #{tpu_custom_call.1} parent=1 // pred_fallthru
      _
    // Predicated region
    $region30: #{tpu_custom_call.1} parent=1 // pred_check
      _
    $region31: #{tpu_custom_call.1} parent=1 // pred_check_branch
      %72 = sbr.rel (0) target = $region33
    $region32: #{tpu_custom_call.1} parent=1 // pred_region
      %74 = dma.done [#allocation8], 16
    $region33: #{tpu_custom_call.1} parent=1 // pred_fallthru
      _
    %75 = sfence
    %s76 = sld [smem:[#allocation2]]
    %s77 = sld [smem:[#allocation2 + $0x1]]
    %v78 = vld [vmem:[#allocation6] sm:$0xff]
    %v79 = vld [vmem:[#allocation6 + $0x8] sm:$0xff]
    %v80 = vld [vmem:[#allocation6 + $0x10] sm:$0xff]
    %v81 = vld [vmem:[#allocation6 + $0x18] sm:$0xff]
    %v82 = vld [vmem:[#allocation6 + $0x20] sm:$0xff]
    %v83 = vld [vmem:[#allocation6 + $0x28] sm:$0xff]
    %v84 = vld [vmem:[#allocation6 + $0x30] sm:$0xff]
    %v85 = vld [vmem:[#allocation6 + $0x38] sm:$0xff]
    %v86 = vld [vmem:[#allocation6 + $0x40] sm:$0xff]
    %v87 = vld [vmem:[#allocation6 + $0x48] sm:$0xff]
    %v88 = vld [vmem:[#allocation6 + $0x50] sm:$0xff]
    %v89 = vld [vmem:[#allocation6 + $0x58] sm:$0xff]
    %v90 = vld [vmem:[#allocation6 + $0x60] sm:$0xff]
    %v91 = vld [vmem:[#allocation6 + $0x68] sm:$0xff]
    %v92 = vld [vmem:[#allocation6 + $0x70] sm:$0xff]
    %v93 = vld [vmem:[#allocation6 + $0x78] sm:$0xff]
    %v94 = vld [vmem:[#allocation6 + $0x80] sm:$0xff]
    %v95 = vld [vmem:[#allocation6 + $0x88] sm:$0xff]
    %v96 = vld [vmem:[#allocation6 + $0x90] sm:$0xff]
    %v97 = vld [vmem:[#allocation6 + $0x98] sm:$0xff]
    %v98 = vld [vmem:[#allocation6 + $0xa0] sm:$0xff]
    %v99 = vld [vmem:[#allocation6 + $0xa8] sm:$0xff]
    %v100 = vld [vmem:[#allocation6 + $0xb0] sm:$0xff]
    %v101 = vld [vmem:[#allocation6 + $0xb8] sm:$0xff]
    %v102 = vld [vmem:[#allocation6 + $0xc0] sm:$0xff]
    %v103 = vld [vmem:[#allocation6 + $0xc8] sm:$0xff]
    %v104 = vld [vmem:[#allocation6 + $0xd0] sm:$0xff]
    %v105 = vld [vmem:[#allocation6 + $0xd8] sm:$0xff]
    %v106 = vld [vmem:[#allocation6 + $0xe0] sm:$0xff]
    %v107 = vld [vmem:[#allocation6 + $0xe8] sm:$0xff]
    %v108 = vld [vmem:[#allocation6 + $0xf0] sm:$0xff]
    %v109 = vld [vmem:[#allocation6 + $0xf8] sm:$0xff]
    %v110 = vld [vmem:[#allocation6 + $0x100] sm:$0xff]
    %v111 = vld [vmem:[#allocation6 + $0x108] sm:$0xff]
    %v112 = vld [vmem:[#allocation6 + $0x110] sm:$0xff]
    %v113 = vld [vmem:[#allocation6 + $0x118] sm:$0xff]
    %v114 = vld [vmem:[#allocation6 + $0x120] sm:$0xff]
    %v115 = vld [vmem:[#allocation6 + $0x128] sm:$0xff]
    %v116 = vld [vmem:[#allocation6 + $0x130] sm:$0xff]
    %v117 = vld [vmem:[#allocation6 + $0x138] sm:$0xff]
    %v118 = vld [vmem:[#allocation6 + $0x140] sm:$0xff]
    %v119 = vld [vmem:[#allocation6 + $0x148] sm:$0xff]
    %v120 = vld [vmem:[#allocation6 + $0x150] sm:$0xff]
    %v121 = vld [vmem:[#allocation6 + $0x158] sm:$0xff]
    %v122 = vld [vmem:[#allocation6 + $0x160] sm:$0xff]
    %v123 = vld [vmem:[#allocation6 + $0x168] sm:$0xff]
    %v124 = vld [vmem:[#allocation6 + $0x170] sm:$0xff]
    %v125 = vld [vmem:[#allocation6 + $0x178] sm:$0xff]
    %v126 = vld [vmem:[#allocation6 + $0x180] sm:$0xff]
    %v127 = vld [vmem:[#allocation6 + $0x188] sm:$0xff]
    %v128 = vld [vmem:[#allocation6 + $0x190] sm:$0xff]
    %v129 = vld [vmem:[#allocation6 + $0x198] sm:$0xff]
    %v130 = vld [vmem:[#allocation6 + $0x1a0] sm:$0xff]
    %v131 = vld [vmem:[#allocation6 + $0x1a8] sm:$0xff]
    %v132 = vld [vmem:[#allocation6 + $0x1b0] sm:$0xff]
    %v133 = vld [vmem:[#allocation6 + $0x1b8] sm:$0xff]
    %v134 = vld [vmem:[#allocation6 + $0x1c0] sm:$0xff]
    %v135 = vld [vmem:[#allocation6 + $0x1c8] sm:$0xff]
    %v136 = vld [vmem:[#allocation6 + $0x1d0] sm:$0xff]
    %v137 = vld [vmem:[#allocation6 + $0x1d8] sm:$0xff]
    %v138 = vld [vmem:[#allocation6 + $0x1e0] sm:$0xff]
    %v139 = vld [vmem:[#allocation6 + $0x1e8] sm:$0xff]
    %v140 = vld [vmem:[#allocation6 + $0x1f0] sm:$0xff]
    %v141 = vld [vmem:[#allocation6 + $0x1f8] sm:$0xff]
    %v142 = vld [vmem:[#allocation6 + $0x200] sm:$0xff]
    %v143 = vld [vmem:[#allocation6 + $0x208] sm:$0xff]
    %v144 = vld [vmem:[#allocation6 + $0x210] sm:$0xff]
    %v145 = vld [vmem:[#allocation6 + $0x218] sm:$0xff]
    %v146 = vld [vmem:[#allocation6 + $0x220] sm:$0xff]
    %v147 = vld [vmem:[#allocation6 + $0x228] sm:$0xff]
    %v148 = vld [vmem:[#allocation6 + $0x230] sm:$0xff]
    %v149 = vld [vmem:[#allocation6 + $0x238] sm:$0xff]
    %v150 = vld [vmem:[#allocation6 + $0x240] sm:$0xff]
    %v151 = vld [vmem:[#allocation6 + $0x248] sm:$0xff]
    %v152 = vld [vmem:[#allocation6 + $0x250] sm:$0xff]
    %v153 = vld [vmem:[#allocation6 + $0x258] sm:$0xff]
    %v154 = vld [vmem:[#allocation6 + $0x260] sm:$0xff]
    %v155 = vld [vmem:[#allocation6 + $0x268] sm:$0xff]
    %v156 = vld [vmem:[#allocation6 + $0x270] sm:$0xff]
    %v157 = vld [vmem:[#allocation6 + $0x278] sm:$0xff]
    %v158 = vld [vmem:[#allocation6 + $0x280] sm:$0xff]
    %v159 = vld [vmem:[#allocation6 + $0x288] sm:$0xff]
    %v160 = vld [vmem:[#allocation6 + $0x290] sm:$0xff]
    %v161 = vld [vmem:[#allocation6 + $0x298] sm:$0xff]
    %v162 = vld [vmem:[#allocation6 + $0x2a0] sm:$0xff]
    %v163 = vld [vmem:[#allocation6 + $0x2a8] sm:$0xff]
    %v164 = vld [vmem:[#allocation6 + $0x2b0] sm:$0xff]
    %v165 = vld [vmem:[#allocation6 + $0x2b8] sm:$0xff]
    %v166 = vld [vmem:[#allocation6 + $0x2c0] sm:$0xff]
    %v167 = vld [vmem:[#allocation6 + $0x2c8] sm:$0xff]
    %v168 = vld [vmem:[#allocation6 + $0x2d0] sm:$0xff]
    %v169 = vld [vmem:[#allocation6 + $0x2d8] sm:$0xff]
    %v170 = vld [vmem:[#allocation6 + $0x2e0] sm:$0xff]
    %v171 = vld [vmem:[#allocation6 + $0x2e8] sm:$0xff]
    %v172 = vld [vmem:[#allocation6 + $0x2f0] sm:$0xff]
    %v173 = vld [vmem:[#allocation6 + $0x2f8] sm:$0xff]
    %v174 = vld [vmem:[#allocation6 + $0x300] sm:$0xff]
    %v175 = vld [vmem:[#allocation6 + $0x308] sm:$0xff]
    %v176 = vld [vmem:[#allocation6 + $0x310] sm:$0xff]
    %v177 = vld [vmem:[#allocation6 + $0x318] sm:$0xff]
    %v178 = vld [vmem:[#allocation6 + $0x320] sm:$0xff]
    %v179 = vld [vmem:[#allocation6 + $0x328] sm:$0xff]
    %v180 = vld [vmem:[#allocation6 + $0x330] sm:$0xff]
    %v181 = vld [vmem:[#allocation6 + $0x338] sm:$0xff]
    %v182 = vld [vmem:[#allocation6 + $0x340] sm:$0xff]
    %v183 = vld [vmem:[#allocation6 + $0x348] sm:$0xff]
    %v184 = vld [vmem:[#allocation6 + $0x350] sm:$0xff]
    %v185 = vld [vmem:[#allocation6 + $0x358] sm:$0xff]
    %v186 = vld [vmem:[#allocation6 + $0x360] sm:$0xff]
    %v187 = vld [vmem:[#allocation6 + $0x368] sm:$0xff]
    %v188 = vld [vmem:[#allocation6 + $0x370] sm:$0xff]
    %v189 = vld [vmem:[#allocation6 + $0x378] sm:$0xff]
    %v190 = vld [vmem:[#allocation6 + $0x380] sm:$0xff]
    %v191 = vld [vmem:[#allocation6 + $0x388] sm:$0xff]
    %v192 = vld [vmem:[#allocation6 + $0x390] sm:$0xff]
    %v193 = vld [vmem:[#allocation6 + $0x398] sm:$0xff]
    %v194 = vld [vmem:[#allocation6 + $0x3a0] sm:$0xff]
    %v195 = vld [vmem:[#allocation6 + $0x3a8] sm:$0xff]
    %v196 = vld [vmem:[#allocation6 + $0x3b0] sm:$0xff]
    %v197 = vld [vmem:[#allocation6 + $0x3b8] sm:$0xff]
    %v198 = vld [vmem:[#allocation6 + $0x3c0] sm:$0xff]
    %v199 = vld [vmem:[#allocation6 + $0x3c8] sm:$0xff]
    %v200 = vld [vmem:[#allocation6 + $0x3d0] sm:$0xff]
    %v201 = vld [vmem:[#allocation6 + $0x3d8] sm:$0xff]
    %v202 = vld [vmem:[#allocation6 + $0x3e0] sm:$0xff]
    %v203 = vld [vmem:[#allocation6 + $0x3e8] sm:$0xff]
    %v204 = vld [vmem:[#allocation6 + $0x3f0] sm:$0xff]
    %v205 = vld [vmem:[#allocation6 + $0x3f8] sm:$0xff]
    %v206 = vld [vmem:[#allocation6 + $0x400] sm:$0xff]
    %v207 = vld [vmem:[#allocation6 + $0x408] sm:$0xff]
    %v208 = vld [vmem:[#allocation6 + $0x410] sm:$0xff]
    %v209 = vld [vmem:[#allocation6 + $0x418] sm:$0xff]
    %v210 = vld [vmem:[#allocation6 + $0x420] sm:$0xff]
    %v211 = vld [vmem:[#allocation6 + $0x428] sm:$0xff]
    %v212 = vld [vmem:[#allocation6 + $0x430] sm:$0xff]
    %v213 = vld [vmem:[#allocation6 + $0x438] sm:$0xff]
    %v214 = vld [vmem:[#allocation6 + $0x440] sm:$0xff]
    %v215 = vld [vmem:[#allocation6 + $0x448] sm:$0xff]
    %v216 = vld [vmem:[#allocation6 + $0x450] sm:$0xff]
    %v217 = vld [vmem:[#allocation6 + $0x458] sm:$0xff]
    %v218 = vld [vmem:[#allocation6 + $0x460] sm:$0xff]
    %v219 = vld [vmem:[#allocation6 + $0x468] sm:$0xff]
    %v220 = vld [vmem:[#allocation6 + $0x470] sm:$0xff]
    %v221 = vld [vmem:[#allocation6 + $0x478] sm:$0xff]
    %v222 = vld [vmem:[#allocation6 + $0x480] sm:$0xff]
    %v223 = vld [vmem:[#allocation6 + $0x488] sm:$0xff]
    %v224 = vld [vmem:[#allocation6 + $0x490] sm:$0xff]
    %v225 = vld [vmem:[#allocation6 + $0x498] sm:$0xff]
    %v226 = vld [vmem:[#allocation6 + $0x4a0] sm:$0xff]
    %v227 = vld [vmem:[#allocation6 + $0x4a8] sm:$0xff]
    %v228 = vld [vmem:[#allocation6 + $0x4b0] sm:$0xff]
    %v229 = vld [vmem:[#allocation6 + $0x4b8] sm:$0xff]
    %v230 = vld [vmem:[#allocation6 + $0x4c0] sm:$0xff]
    %v231 = vld [vmem:[#allocation6 + $0x4c8] sm:$0xff]
    %v232 = vld [vmem:[#allocation6 + $0x4d0] sm:$0xff]
    %v233 = vld [vmem:[#allocation6 + $0x4d8] sm:$0xff]
    %v234 = vld [vmem:[#allocation6 + $0x4e0] sm:$0xff]
    %v235 = vld [vmem:[#allocation6 + $0x4e8] sm:$0xff]
    %v236 = vld [vmem:[#allocation6 + $0x4f0] sm:$0xff]
    %v237 = vld [vmem:[#allocation6 + $0x4f8] sm:$0xff]
    %v238 = vld [vmem:[#allocation6 + $0x500] sm:$0xff]
    %v239 = vld [vmem:[#allocation6 + $0x508] sm:$0xff]
    %v240 = vld [vmem:[#allocation6 + $0x510] sm:$0xff]
    %v241 = vld [vmem:[#allocation6 + $0x518] sm:$0xff]
    %v242 = vld [vmem:[#allocation6 + $0x520] sm:$0xff]
    %v243 = vld [vmem:[#allocation6 + $0x528] sm:$0xff]
    %v244 = vld [vmem:[#allocation6 + $0x530] sm:$0xff]
    %v245 = vld [vmem:[#allocation6 + $0x538] sm:$0xff]
    %v246 = vld [vmem:[#allocation6 + $0x540] sm:$0xff]
    %v247 = vld [vmem:[#allocation6 + $0x548] sm:$0xff]
    %v248 = vld [vmem:[#allocation6 + $0x550] sm:$0xff]
    %v249 = vld [vmem:[#allocation6 + $0x558] sm:$0xff]
    %v250 = vld [vmem:[#allocation6 + $0x560] sm:$0xff]
    %v251 = vld [vmem:[#allocation6 + $0x568] sm:$0xff]
    %v252 = vld [vmem:[#allocation6 + $0x570] sm:$0xff]
    %v253 = vld [vmem:[#allocation6 + $0x578] sm:$0xff]
    %v254 = vld [vmem:[#allocation6 + $0x580] sm:$0xff]
    %v255 = vld [vmem:[#allocation6 + $0x588] sm:$0xff]
    %v256 = vld [vmem:[#allocation6 + $0x590] sm:$0xff]
    %v257 = vld [vmem:[#allocation6 + $0x598] sm:$0xff]
    %v258 = vld [vmem:[#allocation6 + $0x5a0] sm:$0xff]
    %v259 = vld [vmem:[#allocation6 + $0x5a8] sm:$0xff]
    %v260 = vld [vmem:[#allocation6 + $0x5b0] sm:$0xff]
    %v261 = vld [vmem:[#allocation6 + $0x5b8] sm:$0xff]
    %v262 = vld [vmem:[#allocation6 + $0x5c0] sm:$0xff]
    %v263 = vld [vmem:[#allocation6 + $0x5c8] sm:$0xff]
    %v264 = vld [vmem:[#allocation6 + $0x5d0] sm:$0xff]
    %v265 = vld [vmem:[#allocation6 + $0x5d8] sm:$0xff]
    %v266 = vld [vmem:[#allocation6 + $0x5e0] sm:$0xff]
    %v267 = vld [vmem:[#allocation6 + $0x5e8] sm:$0xff]
    %v268 = vld [vmem:[#allocation6 + $0x5f0] sm:$0xff]
    %v269 = vld [vmem:[#allocation6 + $0x5f8] sm:$0xff]
    %v270 = vld [vmem:[#allocation6 + $0x600] sm:$0xff]
    %v271 = vld [vmem:[#allocation6 + $0x608] sm:$0xff]
    %v272 = vld [vmem:[#allocation6 + $0x610] sm:$0xff]
    %v273 = vld [vmem:[#allocation6 + $0x618] sm:$0xff]
    %v274 = vld [vmem:[#allocation6 + $0x620] sm:$0xff]
    %v275 = vld [vmem:[#allocation6 + $0x628] sm:$0xff]
    %v276 = vld [vmem:[#allocation6 + $0x630] sm:$0xff]
    %v277 = vld [vmem:[#allocation6 + $0x638] sm:$0xff]
    %v278 = vld [vmem:[#allocation6 + $0x640] sm:$0xff]
    %v279 = vld [vmem:[#allocation6 + $0x648] sm:$0xff]
    %v280 = vld [vmem:[#allocation6 + $0x650] sm:$0xff]
    %v281 = vld [vmem:[#allocation6 + $0x658] sm:$0xff]
    %v282 = vld [vmem:[#allocation6 + $0x660] sm:$0xff]
    %v283 = vld [vmem:[#allocation6 + $0x668] sm:$0xff]
    %v284 = vld [vmem:[#allocation6 + $0x670] sm:$0xff]
    %v285 = vld [vmem:[#allocation6 + $0x678] sm:$0xff]
    %v286 = vld [vmem:[#allocation6 + $0x680] sm:$0xff]
    %v287 = vld [vmem:[#allocation6 + $0x688] sm:$0xff]
    %v288 = vld [vmem:[#allocation6 + $0x690] sm:$0xff]
    %v289 = vld [vmem:[#allocation6 + $0x698] sm:$0xff]
    %v290 = vld [vmem:[#allocation6 + $0x6a0] sm:$0xff]
    %v291 = vld [vmem:[#allocation6 + $0x6a8] sm:$0xff]
    %v292 = vld [vmem:[#allocation6 + $0x6b0] sm:$0xff]
    %v293 = vld [vmem:[#allocation6 + $0x6b8] sm:$0xff]
    %v294 = vld [vmem:[#allocation6 + $0x6c0] sm:$0xff]
    %v295 = vld [vmem:[#allocation6 + $0x6c8] sm:$0xff]
    %v296 = vld [vmem:[#allocation6 + $0x6d0] sm:$0xff]
    %v297 = vld [vmem:[#allocation6 + $0x6d8] sm:$0xff]
    %v298 = vld [vmem:[#allocation6 + $0x6e0] sm:$0xff]
    %v299 = vld [vmem:[#allocation6 + $0x6e8] sm:$0xff]
    %v300 = vld [vmem:[#allocation6 + $0x6f0] sm:$0xff]
    %v301 = vld [vmem:[#allocation6 + $0x6f8] sm:$0xff]
    %v302 = vld [vmem:[#allocation6 + $0x700] sm:$0xff]
    %v303 = vld [vmem:[#allocation6 + $0x708] sm:$0xff]
    %v304 = vld [vmem:[#allocation6 + $0x710] sm:$0xff]
    %v305 = vld [vmem:[#allocation6 + $0x718] sm:$0xff]
    %v306 = vld [vmem:[#allocation6 + $0x720] sm:$0xff]
    %v307 = vld [vmem:[#allocation6 + $0x728] sm:$0xff]
    %v308 = vld [vmem:[#allocation6 + $0x730] sm:$0xff]
    %v309 = vld [vmem:[#allocation6 + $0x738] sm:$0xff]
    %v310 = vld [vmem:[#allocation6 + $0x740] sm:$0xff]
    %v311 = vld [vmem:[#allocation6 + $0x748] sm:$0xff]
    %v312 = vld [vmem:[#allocation6 + $0x750] sm:$0xff]
    %v313 = vld [vmem:[#allocation6 + $0x758] sm:$0xff]
    %v314 = vld [vmem:[#allocation6 + $0x760] sm:$0xff]
    %v315 = vld [vmem:[#allocation6 + $0x768] sm:$0xff]
    %v316 = vld [vmem:[#allocation6 + $0x770] sm:$0xff]
    %v317 = vld [vmem:[#allocation6 + $0x778] sm:$0xff]
    %v318 = vld [vmem:[#allocation6 + $0x780] sm:$0xff]
    %v319 = vld [vmem:[#allocation6 + $0x788] sm:$0xff]
    %v320 = vld [vmem:[#allocation6 + $0x790] sm:$0xff]
    %v321 = vld [vmem:[#allocation6 + $0x798] sm:$0xff]
    %v322 = vld [vmem:[#allocation6 + $0x7a0] sm:$0xff]
    %v323 = vld [vmem:[#allocation6 + $0x7a8] sm:$0xff]
    %v324 = vld [vmem:[#allocation6 + $0x7b0] sm:$0xff]
    %v325 = vld [vmem:[#allocation6 + $0x7b8] sm:$0xff]
    %v326 = vld [vmem:[#allocation6 + $0x7c0] sm:$0xff]
    %v327 = vld [vmem:[#allocation6 + $0x7c8] sm:$0xff]
    %v328 = vld [vmem:[#allocation6 + $0x7d0] sm:$0xff]
    %v329 = vld [vmem:[#allocation6 + $0x7d8] sm:$0xff]
    %v330 = vld [vmem:[#allocation6 + $0x7e0] sm:$0xff]
    %v331 = vld [vmem:[#allocation6 + $0x7e8] sm:$0xff]
    %v332 = vld [vmem:[#allocation6 + $0x7f0] sm:$0xff]
    %v333 = vld [vmem:[#allocation6 + $0x7f8] sm:$0xff]
    %v334 = vld [vmem:[#allocation6 + $0x800] sm:$0xff]
    %v335 = vld [vmem:[#allocation6 + $0x808] sm:$0xff]
    %v336 = vld [vmem:[#allocation6 + $0x810] sm:$0xff]
    %v337 = vld [vmem:[#allocation6 + $0x818] sm:$0xff]
    %v338 = vld [vmem:[#allocation6 + $0x820] sm:$0xff]
    %v339 = vld [vmem:[#allocation6 + $0x828] sm:$0xff]
    %v340 = vld [vmem:[#allocation6 + $0x830] sm:$0xff]
    %v341 = vld [vmem:[#allocation6 + $0x838] sm:$0xff]
    %v342 = vld [vmem:[#allocation6 + $0x840] sm:$0xff]
    %v343 = vld [vmem:[#allocation6 + $0x848] sm:$0xff]
    %v344 = vld [vmem:[#allocation6 + $0x850] sm:$0xff]
    %v345 = vld [vmem:[#allocation6 + $0x858] sm:$0xff]
    %v346 = vld [vmem:[#allocation6 + $0x860] sm:$0xff]
    %v347 = vld [vmem:[#allocation6 + $0x868] sm:$0xff]
    %v348 = vld [vmem:[#allocation6 + $0x870] sm:$0xff]
    %v349 = vld [vmem:[#allocation6 + $0x878] sm:$0xff]
    %v350 = vld [vmem:[#allocation6 + $0x880] sm:$0xff]
    %v351 = vld [vmem:[#allocation6 + $0x888] sm:$0xff]
    %v352 = vld [vmem:[#allocation6 + $0x890] sm:$0xff]
    %v353 = vld [vmem:[#allocation6 + $0x898] sm:$0xff]
    %v354 = vld [vmem:[#allocation6 + $0x8a0] sm:$0xff]
    %v355 = vld [vmem:[#allocation6 + $0x8a8] sm:$0xff]
    %v356 = vld [vmem:[#allocation6 + $0x8b0] sm:$0xff]
    %v357 = vld [vmem:[#allocation6 + $0x8b8] sm:$0xff]
    %v358 = vld [vmem:[#allocation6 + $0x8c0] sm:$0xff]
    %v359 = vld [vmem:[#allocation6 + $0x8c8] sm:$0xff]
    %v360 = vld [vmem:[#allocation6 + $0x8d0] sm:$0xff]
    %v361 = vld [vmem:[#allocation6 + $0x8d8] sm:$0xff]
    %v362 = vld [vmem:[#allocation6 + $0x8e0] sm:$0xff]
    %v363 = vld [vmem:[#allocation6 + $0x8e8] sm:$0xff]
    %v364 = vld [vmem:[#allocation6 + $0x8f0] sm:$0xff]
    %v365 = vld [vmem:[#allocation6 + $0x8f8] sm:$0xff]
    %v366 = vld [vmem:[#allocation6 + $0x900] sm:$0xff]
    %v367 = vld [vmem:[#allocation6 + $0x908] sm:$0xff]
    %v368 = vld [vmem:[#allocation6 + $0x910] sm:$0xff]
    %v369 = vld [vmem:[#allocation6 + $0x918] sm:$0xff]
    %v370 = vld [vmem:[#allocation6 + $0x920] sm:$0xff]
    %v371 = vld [vmem:[#allocation6 + $0x928] sm:$0xff]
    %v372 = vld [vmem:[#allocation6 + $0x930] sm:$0xff]
    %v373 = vld [vmem:[#allocation6 + $0x938] sm:$0xff]
    %v374 = vld [vmem:[#allocation6 + $0x940] sm:$0xff]
    %v375 = vld [vmem:[#allocation6 + $0x948] sm:$0xff]
    %v376 = vld [vmem:[#allocation6 + $0x950] sm:$0xff]
    %v377 = vld [vmem:[#allocation6 + $0x958] sm:$0xff]
    %v378 = vld [vmem:[#allocation6 + $0x960] sm:$0xff]
    %v379 = vld [vmem:[#allocation6 + $0x968] sm:$0xff]
    %v380 = vld [vmem:[#allocation6 + $0x970] sm:$0xff]
    %v381 = vld [vmem:[#allocation6 + $0x978] sm:$0xff]
    %v382 = vld [vmem:[#allocation6 + $0x980] sm:$0xff]
    %v383 = vld [vmem:[#allocation6 + $0x988] sm:$0xff]
    %v384 = vld [vmem:[#allocation6 + $0x990] sm:$0xff]
    %v385 = vld [vmem:[#allocation6 + $0x998] sm:$0xff]
    %v386 = vld [vmem:[#allocation6 + $0x9a0] sm:$0xff]
    %v387 = vld [vmem:[#allocation6 + $0x9a8] sm:$0xff]
    %v388 = vld [vmem:[#allocation6 + $0x9b0] sm:$0xff]
    %v389 = vld [vmem:[#allocation6 + $0x9b8] sm:$0xff]
    %v390 = vld [vmem:[#allocation6 + $0x9c0] sm:$0xff]
    %v391 = vld [vmem:[#allocation6 + $0x9c8] sm:$0xff]
    %v392 = vld [vmem:[#allocation6 + $0x9d0] sm:$0xff]
    %v393 = vld [vmem:[#allocation6 + $0x9d8] sm:$0xff]
    %v394 = vld [vmem:[#allocation6 + $0x9e0] sm:$0xff]
    %v395 = vld [vmem:[#allocation6 + $0x9e8] sm:$0xff]
    %v396 = vld [vmem:[#allocation6 + $0x9f0] sm:$0xff]
    %v397 = vld [vmem:[#allocation6 + $0x9f8] sm:$0xff]
    %v398 = vld [vmem:[#allocation6 + $0xa00] sm:$0xff]
    %v399 = vld [vmem:[#allocation6 + $0xa08] sm:$0xff]
    %v400 = vld [vmem:[#allocation6 + $0xa10] sm:$0xff]
    %v401 = vld [vmem:[#allocation6 + $0xa18] sm:$0xff]
    %v402 = vld [vmem:[#allocation6 + $0xa20] sm:$0xff]
    %v403 = vld [vmem:[#allocation6 + $0xa28] sm:$0xff]
    %v404 = vld [vmem:[#allocation6 + $0xa30] sm:$0xff]
    %v405 = vld [vmem:[#allocation6 + $0xa38] sm:$0xff]
    %v406 = vld [vmem:[#allocation6 + $0xa40] sm:$0xff]
    %v407 = vld [vmem:[#allocation6 + $0xa48] sm:$0xff]
    %v408 = vld [vmem:[#allocation6 + $0xa50] sm:$0xff]
    %v409 = vld [vmem:[#allocation6 + $0xa58] sm:$0xff]
    %v410 = vld [vmem:[#allocation6 + $0xa60] sm:$0xff]
    %v411 = vld [vmem:[#allocation6 + $0xa68] sm:$0xff]
    %v412 = vld [vmem:[#allocation6 + $0xa70] sm:$0xff]
    %v413 = vld [vmem:[#allocation6 + $0xa78] sm:$0xff]
    %v414 = vld [vmem:[#allocation6 + $0xa80] sm:$0xff]
    %v415 = vld [vmem:[#allocation6 + $0xa88] sm:$0xff]
    %v416 = vld [vmem:[#allocation6 + $0xa90] sm:$0xff]
    %v417 = vld [vmem:[#allocation6 + $0xa98] sm:$0xff]
    %v418 = vld [vmem:[#allocation6 + $0xaa0] sm:$0xff]
    %v419 = vld [vmem:[#allocation6 + $0xaa8] sm:$0xff]
    %v420 = vld [vmem:[#allocation6 + $0xab0] sm:$0xff]
    %v421 = vld [vmem:[#allocation6 + $0xab8] sm:$0xff]
    %v422 = vld [vmem:[#allocation6 + $0xac0] sm:$0xff]
    %v423 = vld [vmem:[#allocation6 + $0xac8] sm:$0xff]
    %v424 = vld [vmem:[#allocation6 + $0xad0] sm:$0xff]
    %v425 = vld [vmem:[#allocation6 + $0xad8] sm:$0xff]
    %v426 = vld [vmem:[#allocation6 + $0xae0] sm:$0xff]
    %v427 = vld [vmem:[#allocation6 + $0xae8] sm:$0xff]
    %v428 = vld [vmem:[#allocation6 + $0xaf0] sm:$0xff]
    %v429 = vld [vmem:[#allocation6 + $0xaf8] sm:$0xff]
    %v430 = vld [vmem:[#allocation6 + $0xb00] sm:$0xff]
    %v431 = vld [vmem:[#allocation6 + $0xb08] sm:$0xff]
    %v432 = vld [vmem:[#allocation6 + $0xb10] sm:$0xff]
    %v433 = vld [vmem:[#allocation6 + $0xb18] sm:$0xff]
    %v434 = vld [vmem:[#allocation6 + $0xb20] sm:$0xff]
    %v435 = vld [vmem:[#allocation6 + $0xb28] sm:$0xff]
    %v436 = vld [vmem:[#allocation6 + $0xb30] sm:$0xff]
    %v437 = vld [vmem:[#allocation6 + $0xb38] sm:$0xff]
    %v438 = vld [vmem:[#allocation6 + $0xb40] sm:$0xff]
    %v439 = vld [vmem:[#allocation6 + $0xb48] sm:$0xff]
    %v440 = vld [vmem:[#allocation6 + $0xb50] sm:$0xff]
    %v441 = vld [vmem:[#allocation6 + $0xb58] sm:$0xff]
    %v442 = vld [vmem:[#allocation6 + $0xb60] sm:$0xff]
    %v443 = vld [vmem:[#allocation6 + $0xb68] sm:$0xff]
    %v444 = vld [vmem:[#allocation6 + $0xb70] sm:$0xff]
    %v445 = vld [vmem:[#allocation6 + $0xb78] sm:$0xff]
    %v446 = vld [vmem:[#allocation6 + $0xb80] sm:$0xff]
    %v447 = vld [vmem:[#allocation6 + $0xb88] sm:$0xff]
    %v448 = vld [vmem:[#allocation6 + $0xb90] sm:$0xff]
    %v449 = vld [vmem:[#allocation6 + $0xb98] sm:$0xff]
    %v450 = vld [vmem:[#allocation6 + $0xba0] sm:$0xff]
    %v451 = vld [vmem:[#allocation6 + $0xba8] sm:$0xff]
    %v452 = vld [vmem:[#allocation6 + $0xbb0] sm:$0xff]
    %v453 = vld [vmem:[#allocation6 + $0xbb8] sm:$0xff]
    %v454 = vld [vmem:[#allocation6 + $0xbc0] sm:$0xff]
    %v455 = vld [vmem:[#allocation6 + $0xbc8] sm:$0xff]
    %v456 = vld [vmem:[#allocation6 + $0xbd0] sm:$0xff]
    %v457 = vld [vmem:[#allocation6 + $0xbd8] sm:$0xff]
    %v458 = vld [vmem:[#allocation6 + $0xbe0] sm:$0xff]
    %v459 = vld [vmem:[#allocation6 + $0xbe8] sm:$0xff]
    %v460 = vld [vmem:[#allocation6 + $0xbf0] sm:$0xff]
    %v461 = vld [vmem:[#allocation6 + $0xbf8] sm:$0xff]
    %v462 = vld [vmem:[#allocation6 + $0xc00] sm:$0xff]
    %v463 = vld [vmem:[#allocation6 + $0xc08] sm:$0xff]
    %v464 = vld [vmem:[#allocation6 + $0xc10] sm:$0xff]
    %v465 = vld [vmem:[#allocation6 + $0xc18] sm:$0xff]
    %v466 = vld [vmem:[#allocation6 + $0xc20] sm:$0xff]
    %v467 = vld [vmem:[#allocation6 + $0xc28] sm:$0xff]
    %v468 = vld [vmem:[#allocation6 + $0xc30] sm:$0xff]
    %v469 = vld [vmem:[#allocation6 + $0xc38] sm:$0xff]
    %v470 = vld [vmem:[#allocation6 + $0xc40] sm:$0xff]
    %v471 = vld [vmem:[#allocation6 + $0xc48] sm:$0xff]
    %v472 = vld [vmem:[#allocation6 + $0xc50] sm:$0xff]
    %v473 = vld [vmem:[#allocation6 + $0xc58] sm:$0xff]
    %v474 = vld [vmem:[#allocation6 + $0xc60] sm:$0xff]
    %v475 = vld [vmem:[#allocation6 + $0xc68] sm:$0xff]
    %v476 = vld [vmem:[#allocation6 + $0xc70] sm:$0xff]
    %v477 = vld [vmem:[#allocation6 + $0xc78] sm:$0xff]
    %v478 = vld [vmem:[#allocation6 + $0xc80] sm:$0xff]
    %v479 = vld [vmem:[#allocation6 + $0xc88] sm:$0xff]
    %v480 = vld [vmem:[#allocation6 + $0xc90] sm:$0xff]
    %v481 = vld [vmem:[#allocation6 + $0xc98] sm:$0xff]
    %v482 = vld [vmem:[#allocation6 + $0xca0] sm:$0xff]
    %v483 = vld [vmem:[#allocation6 + $0xca8] sm:$0xff]
    %v484 = vld [vmem:[#allocation6 + $0xcb0] sm:$0xff]
    %v485 = vld [vmem:[#allocation6 + $0xcb8] sm:$0xff]
    %v486 = vld [vmem:[#allocation6 + $0xcc0] sm:$0xff]
    %v487 = vld [vmem:[#allocation6 + $0xcc8] sm:$0xff]
    %v488 = vld [vmem:[#allocation6 + $0xcd0] sm:$0xff]
    %v489 = vld [vmem:[#allocation6 + $0xcd8] sm:$0xff]
    %v490 = vld [vmem:[#allocation6 + $0xce0] sm:$0xff]
    %v491 = vld [vmem:[#allocation6 + $0xce8] sm:$0xff]
    %v492 = vld [vmem:[#allocation6 + $0xcf0] sm:$0xff]
    %v493 = vld [vmem:[#allocation6 + $0xcf8] sm:$0xff]
    %v494 = vld [vmem:[#allocation6 + $0xd00] sm:$0xff]
    %v495 = vld [vmem:[#allocation6 + $0xd08] sm:$0xff]
    %v496 = vld [vmem:[#allocation6 + $0xd10] sm:$0xff]
    %v497 = vld [vmem:[#allocation6 + $0xd18] sm:$0xff]
    %v498 = vld [vmem:[#allocation6 + $0xd20] sm:$0xff]
    %v499 = vld [vmem:[#allocation6 + $0xd28] sm:$0xff]
    %v500 = vld [vmem:[#allocation6 + $0xd30] sm:$0xff]
    %v501 = vld [vmem:[#allocation6 + $0xd38] sm:$0xff]
    %v502 = vld [vmem:[#allocation6 + $0xd40] sm:$0xff]
    %v503 = vld [vmem:[#allocation6 + $0xd48] sm:$0xff]
    %v504 = vld [vmem:[#allocation6 + $0xd50] sm:$0xff]
    %v505 = vld [vmem:[#allocation6 + $0xd58] sm:$0xff]
    %v506 = vld [vmem:[#allocation6 + $0xd60] sm:$0xff]
    %v507 = vld [vmem:[#allocation6 + $0xd68] sm:$0xff]
    %v508 = vld [vmem:[#allocation6 + $0xd70] sm:$0xff]
    %v509 = vld [vmem:[#allocation6 + $0xd78] sm:$0xff]
    %v510 = vld [vmem:[#allocation6 + $0xd80] sm:$0xff]
    %v511 = vld [vmem:[#allocation6 + $0xd88] sm:$0xff]
    %v512 = vld [vmem:[#allocation6 + $0xd90] sm:$0xff]
    %v513 = vld [vmem:[#allocation6 + $0xd98] sm:$0xff]
    %v514 = vld [vmem:[#allocation6 + $0xda0] sm:$0xff]
    %v515 = vld [vmem:[#allocation6 + $0xda8] sm:$0xff]
    %v516 = vld [vmem:[#allocation6 + $0xdb0] sm:$0xff]
    %v517 = vld [vmem:[#allocation6 + $0xdb8] sm:$0xff]
    %v518 = vld [vmem:[#allocation6 + $0xdc0] sm:$0xff]
    %v519 = vld [vmem:[#allocation6 + $0xdc8] sm:$0xff]
    %v520 = vld [vmem:[#allocation6 + $0xdd0] sm:$0xff]
    %v521 = vld [vmem:[#allocation6 + $0xdd8] sm:$0xff]
    %v522 = vld [vmem:[#allocation6 + $0xde0] sm:$0xff]
    %v523 = vld [vmem:[#allocation6 + $0xde8] sm:$0xff]
    %v524 = vld [vmem:[#allocation6 + $0xdf0] sm:$0xff]
    %v525 = vld [vmem:[#allocation6 + $0xdf8] sm:$0xff]
    %v526 = vld [vmem:[#allocation6 + $0xe00] sm:$0xff]
    %v527 = vld [vmem:[#allocation6 + $0xe08] sm:$0xff]
    %v528 = vld [vmem:[#allocation6 + $0xe10] sm:$0xff]
    %v529 = vld [vmem:[#allocation6 + $0xe18] sm:$0xff]
    %v530 = vld [vmem:[#allocation6 + $0xe20] sm:$0xff]
    %v531 = vld [vmem:[#allocation6 + $0xe28] sm:$0xff]
    %v532 = vld [vmem:[#allocation6 + $0xe30] sm:$0xff]
    %v533 = vld [vmem:[#allocation6 + $0xe38] sm:$0xff]
    %v534 = vld [vmem:[#allocation6 + $0xe40] sm:$0xff]
    %v535 = vld [vmem:[#allocation6 + $0xe48] sm:$0xff]
    %v536 = vld [vmem:[#allocation6 + $0xe50] sm:$0xff]
    %v537 = vld [vmem:[#allocation6 + $0xe58] sm:$0xff]
    %v538 = vld [vmem:[#allocation6 + $0xe60] sm:$0xff]
    %v539 = vld [vmem:[#allocation6 + $0xe68] sm:$0xff]
    %v540 = vld [vmem:[#allocation6 + $0xe70] sm:$0xff]
    %v541 = vld [vmem:[#allocation6 + $0xe78] sm:$0xff]
    %v542 = vld [vmem:[#allocation6 + $0xe80] sm:$0xff]
    %v543 = vld [vmem:[#allocation6 + $0xe88] sm:$0xff]
    %v544 = vld [vmem:[#allocation6 + $0xe90] sm:$0xff]
    %v545 = vld [vmem:[#allocation6 + $0xe98] sm:$0xff]
    %v546 = vld [vmem:[#allocation6 + $0xea0] sm:$0xff]
    %v547 = vld [vmem:[#allocation6 + $0xea8] sm:$0xff]
    %v548 = vld [vmem:[#allocation6 + $0xeb0] sm:$0xff]
    %v549 = vld [vmem:[#allocation6 + $0xeb8] sm:$0xff]
    %v550 = vld [vmem:[#allocation6 + $0xec0] sm:$0xff]
    %v551 = vld [vmem:[#allocation6 + $0xec8] sm:$0xff]
    %v552 = vld [vmem:[#allocation6 + $0xed0] sm:$0xff]
    %v553 = vld [vmem:[#allocation6 + $0xed8] sm:$0xff]
    %v554 = vld [vmem:[#allocation6 + $0xee0] sm:$0xff]
    %v555 = vld [vmem:[#allocation6 + $0xee8] sm:$0xff]
    %v556 = vld [vmem:[#allocation6 + $0xef0] sm:$0xff]
    %v557 = vld [vmem:[#allocation6 + $0xef8] sm:$0xff]
    %v558 = vmax.f32 %v78, 1e-06
    %v559 = vmax.f32 %v79, 1e-06
    %v560 = vmax.f32 %v80, 1e-06
    %v561 = vmax.f32 %v81, 1e-06
    %v562 = vmax.f32 %v82, 1e-06
    %v563 = vmax.f32 %v83, 1e-06
    %v564 = vmax.f32 %v84, 1e-06
    %v565 = vmax.f32 %v85, 1e-06
    %v566 = vmax.f32 %v86, 1e-06
    %v567 = vmax.f32 %v87, 1e-06
    %v568 = vmax.f32 %v88, 1e-06
    %v569 = vmax.f32 %v89, 1e-06
    %v570 = vmax.f32 %v90, 1e-06
    %v571 = vmax.f32 %v91, 1e-06
    %v572 = vmax.f32 %v92, 1e-06
    %v573 = vmax.f32 %v93, 1e-06
    %v574 = vmax.f32 %v94, 1e-06
    %v575 = vmax.f32 %v95, 1e-06
    %v576 = vmax.f32 %v96, 1e-06
    %v577 = vmax.f32 %v97, 1e-06
    %v578 = vmax.f32 %v98, 1e-06
    %v579 = vmax.f32 %v99, 1e-06
    %v580 = vmax.f32 %v100, 1e-06
    %v581 = vmax.f32 %v101, 1e-06
    %v582 = vmax.f32 %v102, 1e-06
    %v583 = vmax.f32 %v103, 1e-06
    %v584 = vmax.f32 %v104, 1e-06
    %v585 = vmax.f32 %v105, 1e-06
    %v586 = vmax.f32 %v106, 1e-06
    %v587 = vmax.f32 %v107, 1e-06
    %v588 = vmax.f32 %v108, 1e-06
    %v589 = vmax.f32 %v109, 1e-06
    %v590 = vmax.f32 %v110, 1e-06
    %v591 = vmax.f32 %v111, 1e-06
    %v592 = vmax.f32 %v112, 1e-06
    %v593 = vmax.f32 %v113, 1e-06
    %v594 = vmax.f32 %v114, 1e-06
    %v595 = vmax.f32 %v115, 1e-06
    %v596 = vmax.f32 %v116, 1e-06
    %v597 = vmax.f32 %v117, 1e-06
    %v598 = vmax.f32 %v118, 1e-06
    %v599 = vmax.f32 %v119, 1e-06
    %v600 = vmax.f32 %v120, 1e-06
    %v601 = vmax.f32 %v121, 1e-06
    %v602 = vmax.f32 %v122, 1e-06
    %v603 = vmax.f32 %v123, 1e-06
    %v604 = vmax.f32 %v124, 1e-06
    %v605 = vmax.f32 %v125, 1e-06
    %v606 = vmax.f32 %v126, 1e-06
    %v607 = vmax.f32 %v127, 1e-06
    %v608 = vmax.f32 %v128, 1e-06
    %v609 = vmax.f32 %v129, 1e-06
    %v610 = vmax.f32 %v130, 1e-06
    %v611 = vmax.f32 %v131, 1e-06
    %v612 = vmax.f32 %v132, 1e-06
    %v613 = vmax.f32 %v133, 1e-06
    %v614 = vmax.f32 %v134, 1e-06
    %v615 = vmax.f32 %v135, 1e-06
    %v616 = vmax.f32 %v136, 1e-06
    %v617 = vmax.f32 %v137, 1e-06
    %v618 = vmax.f32 %v138, 1e-06
    %v619 = vmax.f32 %v139, 1e-06
    %v620 = vmax.f32 %v140, 1e-06
    %v621 = vmax.f32 %v141, 1e-06
    %v622 = vmax.f32 %v142, 1e-06
    %v623 = vmax.f32 %v143, 1e-06
    %v624 = vmax.f32 %v144, 1e-06
    %v625 = vmax.f32 %v145, 1e-06
    %v626 = vmax.f32 %v146, 1e-06
    %v627 = vmax.f32 %v147, 1e-06
    %v628 = vmax.f32 %v148, 1e-06
    %v629 = vmax.f32 %v149, 1e-06
    %v630 = vmax.f32 %v150, 1e-06
    %v631 = vmax.f32 %v151, 1e-06
    %v632 = vmax.f32 %v152, 1e-06
    %v633 = vmax.f32 %v153, 1e-06
    %v634 = vmax.f32 %v154, 1e-06
    %v635 = vmax.f32 %v155, 1e-06
    %v636 = vmax.f32 %v156, 1e-06
    %v637 = vmax.f32 %v157, 1e-06
    %v638 = vmax.f32 %v158, 1e-06
    %v639 = vmax.f32 %v159, 1e-06
    %v640 = vmax.f32 %v160, 1e-06
    %v641 = vmax.f32 %v161, 1e-06
    %v642 = vmax.f32 %v162, 1e-06
    %v643 = vmax.f32 %v163, 1e-06
    %v644 = vmax.f32 %v164, 1e-06
    %v645 = vmax.f32 %v165, 1e-06
    %v646 = vmax.f32 %v166, 1e-06
    %v647 = vmax.f32 %v167, 1e-06
    %v648 = vmax.f32 %v168, 1e-06
    %v649 = vmax.f32 %v169, 1e-06
    %v650 = vmax.f32 %v170, 1e-06
    %v651 = vmax.f32 %v171, 1e-06
    %v652 = vmax.f32 %v172, 1e-06
    %v653 = vmax.f32 %v173, 1e-06
    %v654 = vmax.f32 %v174, 1e-06
    %v655 = vmax.f32 %v175, 1e-06
    %v656 = vmax.f32 %v176, 1e-06
    %v657 = vmax.f32 %v177, 1e-06
    %v658 = vmax.f32 %v178, 1e-06
    %v659 = vmax.f32 %v179, 1e-06
    %v660 = vmax.f32 %v180, 1e-06
    %v661 = vmax.f32 %v181, 1e-06
    %v662 = vmax.f32 %v182, 1e-06
    %v663 = vmax.f32 %v183, 1e-06
    %v664 = vmax.f32 %v184, 1e-06
    %v665 = vmax.f32 %v185, 1e-06
    %v666 = vmax.f32 %v186, 1e-06
    %v667 = vmax.f32 %v187, 1e-06
    %v668 = vmax.f32 %v188, 1e-06
    %v669 = vmax.f32 %v189, 1e-06
    %v670 = vmax.f32 %v190, 1e-06
    %v671 = vmax.f32 %v191, 1e-06
    %v672 = vmax.f32 %v192, 1e-06
    %v673 = vmax.f32 %v193, 1e-06
    %v674 = vmax.f32 %v194, 1e-06
    %v675 = vmax.f32 %v195, 1e-06
    %v676 = vmax.f32 %v196, 1e-06
    %v677 = vmax.f32 %v197, 1e-06
    %v678 = vmax.f32 %v198, 1e-06
    %v679 = vmax.f32 %v199, 1e-06
    %v680 = vmax.f32 %v200, 1e-06
    %v681 = vmax.f32 %v201, 1e-06
    %v682 = vmax.f32 %v202, 1e-06
    %v683 = vmax.f32 %v203, 1e-06
    %v684 = vmax.f32 %v204, 1e-06
    %v685 = vmax.f32 %v205, 1e-06
    %v686 = vmax.f32 %v206, 1e-06
    %v687 = vmax.f32 %v207, 1e-06
    %v688 = vmax.f32 %v208, 1e-06
    %v689 = vmax.f32 %v209, 1e-06
    %v690 = vmax.f32 %v210, 1e-06
    %v691 = vmax.f32 %v211, 1e-06
    %v692 = vmax.f32 %v212, 1e-06
    %v693 = vmax.f32 %v213, 1e-06
    %v694 = vmax.f32 %v214, 1e-06
    %v695 = vmax.f32 %v215, 1e-06
    %v696 = vmax.f32 %v216, 1e-06
    %v697 = vmax.f32 %v217, 1e-06
    %v698 = vmax.f32 %v218, 1e-06
    %v699 = vmax.f32 %v219, 1e-06
    %v700 = vmax.f32 %v220, 1e-06
    %v701 = vmax.f32 %v221, 1e-06
    %v702 = vmax.f32 %v222, 1e-06
    %v703 = vmax.f32 %v223, 1e-06
    %v704 = vmax.f32 %v224, 1e-06
    %v705 = vmax.f32 %v225, 1e-06
    %v706 = vmax.f32 %v226, 1e-06
    %v707 = vmax.f32 %v227, 1e-06
    %v708 = vmax.f32 %v228, 1e-06
    %v709 = vmax.f32 %v229, 1e-06
    %v710 = vmax.f32 %v230, 1e-06
    %v711 = vmax.f32 %v231, 1e-06
    %v712 = vmax.f32 %v232, 1e-06
    %v713 = vmax.f32 %v233, 1e-06
    %v714 = vmax.f32 %v234, 1e-06
    %v715 = vmax.f32 %v235, 1e-06
    %v716 = vmax.f32 %v236, 1e-06
    %v717 = vmax.f32 %v237, 1e-06
    %v718 = vmax.f32 %v238, 1e-06
    %v719 = vmax.f32 %v239, 1e-06
    %v720 = vmax.f32 %v240, 1e-06
    %v721 = vmax.f32 %v241, 1e-06
    %v722 = vmax.f32 %v242, 1e-06
    %v723 = vmax.f32 %v243, 1e-06
    %v724 = vmax.f32 %v244, 1e-06
    %v725 = vmax.f32 %v245, 1e-06
    %v726 = vmax.f32 %v246, 1e-06
    %v727 = vmax.f32 %v247, 1e-06
    %v728 = vmax.f32 %v248, 1e-06
    %v729 = vmax.f32 %v249, 1e-06
    %v730 = vmax.f32 %v250, 1e-06
    %v731 = vmax.f32 %v251, 1e-06
    %v732 = vmax.f32 %v252, 1e-06
    %v733 = vmax.f32 %v253, 1e-06
    %v734 = vmax.f32 %v254, 1e-06
    %v735 = vmax.f32 %v255, 1e-06
    %v736 = vmax.f32 %v256, 1e-06
    %v737 = vmax.f32 %v257, 1e-06
    %v738 = vmax.f32 %v258, 1e-06
    %v739 = vmax.f32 %v259, 1e-06
    %v740 = vmax.f32 %v260, 1e-06
    %v741 = vmax.f32 %v261, 1e-06
    %v742 = vmax.f32 %v262, 1e-06
    %v743 = vmax.f32 %v263, 1e-06
    %v744 = vmax.f32 %v264, 1e-06
    %v745 = vmax.f32 %v265, 1e-06
    %v746 = vmax.f32 %v266, 1e-06
    %v747 = vmax.f32 %v267, 1e-06
    %v748 = vmax.f32 %v268, 1e-06
    %v749 = vmax.f32 %v269, 1e-06
    %v750 = vmax.f32 %v270, 1e-06
    %v751 = vmax.f32 %v271, 1e-06
    %v752 = vmax.f32 %v272, 1e-06
    %v753 = vmax.f32 %v273, 1e-06
    %v754 = vmax.f32 %v274, 1e-06
    %v755 = vmax.f32 %v275, 1e-06
    %v756 = vmax.f32 %v276, 1e-06
    %v757 = vmax.f32 %v277, 1e-06
    %v758 = vmax.f32 %v278, 1e-06
    %v759 = vmax.f32 %v279, 1e-06
    %v760 = vmax.f32 %v280, 1e-06
    %v761 = vmax.f32 %v281, 1e-06
    %v762 = vmax.f32 %v282, 1e-06
    %v763 = vmax.f32 %v283, 1e-06
    %v764 = vmax.f32 %v284, 1e-06
    %v765 = vmax.f32 %v285, 1e-06
    %v766 = vmax.f32 %v286, 1e-06
    %v767 = vmax.f32 %v287, 1e-06
    %v768 = vmax.f32 %v288, 1e-06
    %v769 = vmax.f32 %v289, 1e-06
    %v770 = vmax.f32 %v290, 1e-06
    %v771 = vmax.f32 %v291, 1e-06
    %v772 = vmax.f32 %v292, 1e-06
    %v773 = vmax.f32 %v293, 1e-06
    %v774 = vmax.f32 %v294, 1e-06
    %v775 = vmax.f32 %v295, 1e-06
    %v776 = vmax.f32 %v296, 1e-06
    %v777 = vmax.f32 %v297, 1e-06
    %v778 = vmax.f32 %v298, 1e-06
    %v779 = vmax.f32 %v299, 1e-06
    %v780 = vmax.f32 %v300, 1e-06
    %v781 = vmax.f32 %v301, 1e-06
    %v782 = vmax.f32 %v302, 1e-06
    %v783 = vmax.f32 %v303, 1e-06
    %v784 = vmax.f32 %v304, 1e-06
    %v785 = vmax.f32 %v305, 1e-06
    %v786 = vmax.f32 %v306, 1e-06
    %v787 = vmax.f32 %v307, 1e-06
    %v788 = vmax.f32 %v308, 1e-06
    %v789 = vmax.f32 %v309, 1e-06
    %v790 = vmax.f32 %v310, 1e-06
    %v791 = vmax.f32 %v311, 1e-06
    %v792 = vmax.f32 %v312, 1e-06
    %v793 = vmax.f32 %v313, 1e-06
    %v794 = vmax.f32 %v314, 1e-06
    %v795 = vmax.f32 %v315, 1e-06
    %v796 = vmax.f32 %v316, 1e-06
    %v797 = vmax.f32 %v317, 1e-06
    %v798 = vmax.f32 %v318, 1e-06
    %v799 = vmax.f32 %v319, 1e-06
    %v800 = vmax.f32 %v320, 1e-06
    %v801 = vmax.f32 %v321, 1e-06
    %v802 = vmax.f32 %v322, 1e-06
    %v803 = vmax.f32 %v323, 1e-06
    %v804 = vmax.f32 %v324, 1e-06
    %v805 = vmax.f32 %v325, 1e-06
    %v806 = vmax.f32 %v326, 1e-06
    %v807 = vmax.f32 %v327, 1e-06
    %v808 = vmax.f32 %v328, 1e-06
    %v809 = vmax.f32 %v329, 1e-06
    %v810 = vmax.f32 %v330, 1e-06
    %v811 = vmax.f32 %v331, 1e-06
    %v812 = vmax.f32 %v332, 1e-06
    %v813 = vmax.f32 %v333, 1e-06
    %v814 = vmax.f32 %v334, 1e-06
    %v815 = vmax.f32 %v335, 1e-06
    %v816 = vmax.f32 %v336, 1e-06
    %v817 = vmax.f32 %v337, 1e-06
    %v818 = vmax.f32 %v338, 1e-06
    %v819 = vmax.f32 %v339, 1e-06
    %v820 = vmax.f32 %v340, 1e-06
    %v821 = vmax.f32 %v341, 1e-06
    %v822 = vmax.f32 %v342, 1e-06
    %v823 = vmax.f32 %v343, 1e-06
    %v824 = vmax.f32 %v344, 1e-06
    %v825 = vmax.f32 %v345, 1e-06
    %v826 = vmax.f32 %v346, 1e-06
    %v827 = vmax.f32 %v347, 1e-06
    %v828 = vmax.f32 %v348, 1e-06
    %v829 = vmax.f32 %v349, 1e-06
    %v830 = vmax.f32 %v350, 1e-06
    %v831 = vmax.f32 %v351, 1e-06
    %v832 = vmax.f32 %v352, 1e-06
    %v833 = vmax.f32 %v353, 1e-06
    %v834 = vmax.f32 %v354, 1e-06
    %v835 = vmax.f32 %v355, 1e-06
    %v836 = vmax.f32 %v356, 1e-06
    %v837 = vmax.f32 %v357, 1e-06
    %v838 = vmax.f32 %v358, 1e-06
    %v839 = vmax.f32 %v359, 1e-06
    %v840 = vmax.f32 %v360, 1e-06
    %v841 = vmax.f32 %v361, 1e-06
    %v842 = vmax.f32 %v362, 1e-06
    %v843 = vmax.f32 %v363, 1e-06
    %v844 = vmax.f32 %v364, 1e-06
    %v845 = vmax.f32 %v365, 1e-06
    %v846 = vmax.f32 %v366, 1e-06
    %v847 = vmax.f32 %v367, 1e-06
    %v848 = vmax.f32 %v368, 1e-06
    %v849 = vmax.f32 %v369, 1e-06
    %v850 = vmax.f32 %v370, 1e-06
    %v851 = vmax.f32 %v371, 1e-06
    %v852 = vmax.f32 %v372, 1e-06
    %v853 = vmax.f32 %v373, 1e-06
    %v854 = vmax.f32 %v374, 1e-06
    %v855 = vmax.f32 %v375, 1e-06
    %v856 = vmax.f32 %v376, 1e-06
    %v857 = vmax.f32 %v377, 1e-06
    %v858 = vmax.f32 %v378, 1e-06
    %v859 = vmax.f32 %v379, 1e-06
    %v860 = vmax.f32 %v380, 1e-06
    %v861 = vmax.f32 %v381, 1e-06
    %v862 = vmax.f32 %v382, 1e-06
    %v863 = vmax.f32 %v383, 1e-06
    %v864 = vmax.f32 %v384, 1e-06
    %v865 = vmax.f32 %v385, 1e-06
    %v866 = vmax.f32 %v386, 1e-06
    %v867 = vmax.f32 %v387, 1e-06
    %v868 = vmax.f32 %v388, 1e-06
    %v869 = vmax.f32 %v389, 1e-06
    %v870 = vmax.f32 %v390, 1e-06
    %v871 = vmax.f32 %v391, 1e-06
    %v872 = vmax.f32 %v392, 1e-06
    %v873 = vmax.f32 %v393, 1e-06
    %v874 = vmax.f32 %v394, 1e-06
    %v875 = vmax.f32 %v395, 1e-06
    %v876 = vmax.f32 %v396, 1e-06
    %v877 = vmax.f32 %v397, 1e-06
    %v878 = vmax.f32 %v398, 1e-06
    %v879 = vmax.f32 %v399, 1e-06
    %v880 = vmax.f32 %v400, 1e-06
    %v881 = vmax.f32 %v401, 1e-06
    %v882 = vmax.f32 %v402, 1e-06
    %v883 = vmax.f32 %v403, 1e-06
    %v884 = vmax.f32 %v404, 1e-06
    %v885 = vmax.f32 %v405, 1e-06
    %v886 = vmax.f32 %v406, 1e-06
    %v887 = vmax.f32 %v407, 1e-06
    %v888 = vmax.f32 %v408, 1e-06
    %v889 = vmax.f32 %v409, 1e-06
    %v890 = vmax.f32 %v410, 1e-06
    %v891 = vmax.f32 %v411, 1e-06
    %v892 = vmax.f32 %v412, 1e-06
    %v893 = vmax.f32 %v413, 1e-06
    %v894 = vmax.f32 %v414, 1e-06
    %v895 = vmax.f32 %v415, 1e-06
    %v896 = vmax.f32 %v416, 1e-06
    %v897 = vmax.f32 %v417, 1e-06
    %v898 = vmax.f32 %v418, 1e-06
    %v899 = vmax.f32 %v419, 1e-06
    %v900 = vmax.f32 %v420, 1e-06
    %v901 = vmax.f32 %v421, 1e-06
    %v902 = vmax.f32 %v422, 1e-06
    %v903 = vmax.f32 %v423, 1e-06
    %v904 = vmax.f32 %v424, 1e-06
    %v905 = vmax.f32 %v425, 1e-06
    %v906 = vmax.f32 %v426, 1e-06
    %v907 = vmax.f32 %v427, 1e-06
    %v908 = vmax.f32 %v428, 1e-06
    %v909 = vmax.f32 %v429, 1e-06
    %v910 = vmax.f32 %v430, 1e-06
    %v911 = vmax.f32 %v431, 1e-06
    %v912 = vmax.f32 %v432, 1e-06
    %v913 = vmax.f32 %v433, 1e-06
    %v914 = vmax.f32 %v434, 1e-06
    %v915 = vmax.f32 %v435, 1e-06
    %v916 = vmax.f32 %v436, 1e-06
    %v917 = vmax.f32 %v437, 1e-06
    %v918 = vmax.f32 %v438, 1e-06
    %v919 = vmax.f32 %v439, 1e-06
    %v920 = vmax.f32 %v440, 1e-06
    %v921 = vmax.f32 %v441, 1e-06
    %v922 = vmax.f32 %v442, 1e-06
    %v923 = vmax.f32 %v443, 1e-06
    %v924 = vmax.f32 %v444, 1e-06
    %v925 = vmax.f32 %v445, 1e-06
    %v926 = vmax.f32 %v446, 1e-06
    %v927 = vmax.f32 %v447, 1e-06
    %v928 = vmax.f32 %v448, 1e-06
    %v929 = vmax.f32 %v449, 1e-06
    %v930 = vmax.f32 %v450, 1e-06
    %v931 = vmax.f32 %v451, 1e-06
    %v932 = vmax.f32 %v452, 1e-06
    %v933 = vmax.f32 %v453, 1e-06
    %v934 = vmax.f32 %v454, 1e-06
    %v935 = vmax.f32 %v455, 1e-06
    %v936 = vmax.f32 %v456, 1e-06
    %v937 = vmax.f32 %v457, 1e-06
    %v938 = vmax.f32 %v458, 1e-06
    %v939 = vmax.f32 %v459, 1e-06
    %v940 = vmax.f32 %v460, 1e-06
    %v941 = vmax.f32 %v461, 1e-06
    %v942 = vmax.f32 %v462, 1e-06
    %v943 = vmax.f32 %v463, 1e-06
    %v944 = vmax.f32 %v464, 1e-06
    %v945 = vmax.f32 %v465, 1e-06
    %v946 = vmax.f32 %v466, 1e-06
    %v947 = vmax.f32 %v467, 1e-06
    %v948 = vmax.f32 %v468, 1e-06
    %v949 = vmax.f32 %v469, 1e-06
    %v950 = vmax.f32 %v470, 1e-06
    %v951 = vmax.f32 %v471, 1e-06
    %v952 = vmax.f32 %v472, 1e-06
    %v953 = vmax.f32 %v473, 1e-06
    %v954 = vmax.f32 %v474, 1e-06
    %v955 = vmax.f32 %v475, 1e-06
    %v956 = vmax.f32 %v476, 1e-06
    %v957 = vmax.f32 %v477, 1e-06
    %v958 = vmax.f32 %v478, 1e-06
    %v959 = vmax.f32 %v479, 1e-06
    %v960 = vmax.f32 %v480, 1e-06
    %v961 = vmax.f32 %v481, 1e-06
    %v962 = vmax.f32 %v482, 1e-06
    %v963 = vmax.f32 %v483, 1e-06
    %v964 = vmax.f32 %v484, 1e-06
    %v965 = vmax.f32 %v485, 1e-06
    %v966 = vmax.f32 %v486, 1e-06
    %v967 = vmax.f32 %v487, 1e-06
    %v968 = vmax.f32 %v488, 1e-06
    %v969 = vmax.f32 %v489, 1e-06
    %v970 = vmax.f32 %v490, 1e-06
    %v971 = vmax.f32 %v491, 1e-06
    %v972 = vmax.f32 %v492, 1e-06
    %v973 = vmax.f32 %v493, 1e-06
    %v974 = vmax.f32 %v494, 1e-06
    %v975 = vmax.f32 %v495, 1e-06
    %v976 = vmax.f32 %v496, 1e-06
    %v977 = vmax.f32 %v497, 1e-06
    %v978 = vmax.f32 %v498, 1e-06
    %v979 = vmax.f32 %v499, 1e-06
    %v980 = vmax.f32 %v500, 1e-06
    %v981 = vmax.f32 %v501, 1e-06
    %v982 = vmax.f32 %v502, 1e-06
    %v983 = vmax.f32 %v503, 1e-06
    %v984 = vmax.f32 %v504, 1e-06
    %v985 = vmax.f32 %v505, 1e-06
    %v986 = vmax.f32 %v506, 1e-06
    %v987 = vmax.f32 %v507, 1e-06
    %v988 = vmax.f32 %v508, 1e-06
    %v989 = vmax.f32 %v509, 1e-06
    %v990 = vmax.f32 %v510, 1e-06
    %v991 = vmax.f32 %v511, 1e-06
    %v992 = vmax.f32 %v512, 1e-06
    %v993 = vmax.f32 %v513, 1e-06
    %v994 = vmax.f32 %v514, 1e-06
    %v995 = vmax.f32 %v515, 1e-06
    %v996 = vmax.f32 %v516, 1e-06
    %v997 = vmax.f32 %v517, 1e-06
    %v998 = vmax.f32 %v518, 1e-06
    %v999 = vmax.f32 %v519, 1e-06
    %v1000 = vmax.f32 %v520, 1e-06
    %v1001 = vmax.f32 %v521, 1e-06
    %v1002 = vmax.f32 %v522, 1e-06
    %v1003 = vmax.f32 %v523, 1e-06
    %v1004 = vmax.f32 %v524, 1e-06
    %v1005 = vmax.f32 %v525, 1e-06
    %v1006 = vmax.f32 %v526, 1e-06
    %v1007 = vmax.f32 %v527, 1e-06
    %v1008 = vmax.f32 %v528, 1e-06
    %v1009 = vmax.f32 %v529, 1e-06
    %v1010 = vmax.f32 %v530, 1e-06
    %v1011 = vmax.f32 %v531, 1e-06
    %v1012 = vmax.f32 %v532, 1e-06
    %v1013 = vmax.f32 %v533, 1e-06
    %v1014 = vmax.f32 %v534, 1e-06
    %v1015 = vmax.f32 %v535, 1e-06
    %v1016 = vmax.f32 %v536, 1e-06
    %v1017 = vmax.f32 %v537, 1e-06
    %v1018 = vmax.f32 %v538, 1e-06
    %v1019 = vmax.f32 %v539, 1e-06
    %v1020 = vmax.f32 %v540, 1e-06
    %v1021 = vmax.f32 %v541, 1e-06
    %v1022 = vmax.f32 %v542, 1e-06
    %v1023 = vmax.f32 %v543, 1e-06
    %v1024 = vmax.f32 %v544, 1e-06
    %v1025 = vmax.f32 %v545, 1e-06
    %v1026 = vmax.f32 %v546, 1e-06
    %v1027 = vmax.f32 %v547, 1e-06
    %v1028 = vmax.f32 %v548, 1e-06
    %v1029 = vmax.f32 %v549, 1e-06
    %v1030 = vmax.f32 %v550, 1e-06
    %v1031 = vmax.f32 %v551, 1e-06
    %v1032 = vmax.f32 %v552, 1e-06
    %v1033 = vmax.f32 %v553, 1e-06
    %v1034 = vmax.f32 %v554, 1e-06
    %v1035 = vmax.f32 %v555, 1e-06
    %v1036 = vmax.f32 %v556, 1e-06
    %v1037 = vmax.f32 %v557, 1e-06
    %v1038 = vstv %s76
    %v1039 = vpow.f32 %v558, %v1038
    %v1040 = vpow.f32 %v559, %v1038
    %v1041 = vpow.f32 %v560, %v1038
    %v1042 = vpow.f32 %v561, %v1038
    %v1043 = vpow.f32 %v562, %v1038
    %v1044 = vpow.f32 %v563, %v1038
    %v1045 = vpow.f32 %v564, %v1038
    %v1046 = vpow.f32 %v565, %v1038
    %v1047 = vpow.f32 %v566, %v1038
    %v1048 = vpow.f32 %v567, %v1038
    %v1049 = vpow.f32 %v568, %v1038
    %v1050 = vpow.f32 %v569, %v1038
    %v1051 = vpow.f32 %v570, %v1038
    %v1052 = vpow.f32 %v571, %v1038
    %v1053 = vpow.f32 %v572, %v1038
    %v1054 = vpow.f32 %v573, %v1038
    %v1055 = vpow.f32 %v574, %v1038
    %v1056 = vpow.f32 %v575, %v1038
    %v1057 = vpow.f32 %v576, %v1038
    %v1058 = vpow.f32 %v577, %v1038
    %v1059 = vpow.f32 %v578, %v1038
    %v1060 = vpow.f32 %v579, %v1038
    %v1061 = vpow.f32 %v580, %v1038
    %v1062 = vpow.f32 %v581, %v1038
    %v1063 = vpow.f32 %v582, %v1038
    %v1064 = vpow.f32 %v583, %v1038
    %v1065 = vpow.f32 %v584, %v1038
    %v1066 = vpow.f32 %v585, %v1038
    %v1067 = vpow.f32 %v586, %v1038
    %v1068 = vpow.f32 %v587, %v1038
    %v1069 = vpow.f32 %v588, %v1038
    %v1070 = vpow.f32 %v589, %v1038
    %v1071 = vpow.f32 %v590, %v1038
    %v1072 = vpow.f32 %v591, %v1038
    %v1073 = vpow.f32 %v592, %v1038
    %v1074 = vpow.f32 %v593, %v1038
    %v1075 = vpow.f32 %v594, %v1038
    %v1076 = vpow.f32 %v595, %v1038
    %v1077 = vpow.f32 %v596, %v1038
    %v1078 = vpow.f32 %v597, %v1038
    %v1079 = vpow.f32 %v598, %v1038
    %v1080 = vpow.f32 %v599, %v1038
    %v1081 = vpow.f32 %v600, %v1038
    %v1082 = vpow.f32 %v601, %v1038
    %v1083 = vpow.f32 %v602, %v1038
    %v1084 = vpow.f32 %v603, %v1038
    %v1085 = vpow.f32 %v604, %v1038
    %v1086 = vpow.f32 %v605, %v1038
    %v1087 = vpow.f32 %v606, %v1038
    %v1088 = vpow.f32 %v607, %v1038
    %v1089 = vpow.f32 %v608, %v1038
    %v1090 = vpow.f32 %v609, %v1038
    %v1091 = vpow.f32 %v610, %v1038
    %v1092 = vpow.f32 %v611, %v1038
    %v1093 = vpow.f32 %v612, %v1038
    %v1094 = vpow.f32 %v613, %v1038
    %v1095 = vpow.f32 %v614, %v1038
    %v1096 = vpow.f32 %v615, %v1038
    %v1097 = vpow.f32 %v616, %v1038
    %v1098 = vpow.f32 %v617, %v1038
    %v1099 = vpow.f32 %v618, %v1038
    %v1100 = vpow.f32 %v619, %v1038
    %v1101 = vpow.f32 %v620, %v1038
    %v1102 = vpow.f32 %v621, %v1038
    %v1103 = vpow.f32 %v622, %v1038
    %v1104 = vpow.f32 %v623, %v1038
    %v1105 = vpow.f32 %v624, %v1038
    %v1106 = vpow.f32 %v625, %v1038
    %v1107 = vpow.f32 %v626, %v1038
    %v1108 = vpow.f32 %v627, %v1038
    %v1109 = vpow.f32 %v628, %v1038
    %v1110 = vpow.f32 %v629, %v1038
    %v1111 = vpow.f32 %v630, %v1038
    %v1112 = vpow.f32 %v631, %v1038
    %v1113 = vpow.f32 %v632, %v1038
    %v1114 = vpow.f32 %v633, %v1038
    %v1115 = vpow.f32 %v634, %v1038
    %v1116 = vpow.f32 %v635, %v1038
    %v1117 = vpow.f32 %v636, %v1038
    %v1118 = vpow.f32 %v637, %v1038
    %v1119 = vpow.f32 %v638, %v1038
    %v1120 = vpow.f32 %v639, %v1038
    %v1121 = vpow.f32 %v640, %v1038
    %v1122 = vpow.f32 %v641, %v1038
    %v1123 = vpow.f32 %v642, %v1038
    %v1124 = vpow.f32 %v643, %v1038
    %v1125 = vpow.f32 %v644, %v1038
    %v1126 = vpow.f32 %v645, %v1038
    %v1127 = vpow.f32 %v646, %v1038
    %v1128 = vpow.f32 %v647, %v1038
    %v1129 = vpow.f32 %v648, %v1038
    %v1130 = vpow.f32 %v649, %v1038
    %v1131 = vpow.f32 %v650, %v1038
    %v1132 = vpow.f32 %v651, %v1038
    %v1133 = vpow.f32 %v652, %v1038
    %v1134 = vpow.f32 %v653, %v1038
    %v1135 = vpow.f32 %v654, %v1038
    %v1136 = vpow.f32 %v655, %v1038
    %v1137 = vpow.f32 %v656, %v1038
    %v1138 = vpow.f32 %v657, %v1038
    %v1139 = vpow.f32 %v658, %v1038
    %v1140 = vpow.f32 %v659, %v1038
    %v1141 = vpow.f32 %v660, %v1038
    %v1142 = vpow.f32 %v661, %v1038
    %v1143 = vpow.f32 %v662, %v1038
    %v1144 = vpow.f32 %v663, %v1038
    %v1145 = vpow.f32 %v664, %v1038
    %v1146 = vpow.f32 %v665, %v1038
    %v1147 = vpow.f32 %v666, %v1038
    %v1148 = vpow.f32 %v667, %v1038
    %v1149 = vpow.f32 %v668, %v1038
    %v1150 = vpow.f32 %v669, %v1038
    %v1151 = vpow.f32 %v670, %v1038
    %v1152 = vpow.f32 %v671, %v1038
    %v1153 = vpow.f32 %v672, %v1038
    %v1154 = vpow.f32 %v673, %v1038
    %v1155 = vpow.f32 %v674, %v1038
    %v1156 = vpow.f32 %v675, %v1038
    %v1157 = vpow.f32 %v676, %v1038
    %v1158 = vpow.f32 %v677, %v1038
    %v1159 = vpow.f32 %v678, %v1038
    %v1160 = vpow.f32 %v679, %v1038
    %v1161 = vpow.f32 %v680, %v1038
    %v1162 = vpow.f32 %v681, %v1038
    %v1163 = vpow.f32 %v682, %v1038
    %v1164 = vpow.f32 %v683, %v1038
    %v1165 = vpow.f32 %v684, %v1038
    %v1166 = vpow.f32 %v685, %v1038
    %v1167 = vpow.f32 %v686, %v1038
    %v1168 = vpow.f32 %v687, %v1038
    %v1169 = vpow.f32 %v688, %v1038
    %v1170 = vpow.f32 %v689, %v1038
    %v1171 = vpow.f32 %v690, %v1038
    %v1172 = vpow.f32 %v691, %v1038
    %v1173 = vpow.f32 %v692, %v1038
    %v1174 = vpow.f32 %v693, %v1038
    %v1175 = vpow.f32 %v694, %v1038
    %v1176 = vpow.f32 %v695, %v1038
    %v1177 = vpow.f32 %v696, %v1038
    %v1178 = vpow.f32 %v697, %v1038
    %v1179 = vpow.f32 %v698, %v1038
    %v1180 = vpow.f32 %v699, %v1038
    %v1181 = vpow.f32 %v700, %v1038
    %v1182 = vpow.f32 %v701, %v1038
    %v1183 = vpow.f32 %v702, %v1038
    %v1184 = vpow.f32 %v703, %v1038
    %v1185 = vpow.f32 %v704, %v1038
    %v1186 = vpow.f32 %v705, %v1038
    %v1187 = vpow.f32 %v706, %v1038
    %v1188 = vpow.f32 %v707, %v1038
    %v1189 = vpow.f32 %v708, %v1038
    %v1190 = vpow.f32 %v709, %v1038
    %v1191 = vpow.f32 %v710, %v1038
    %v1192 = vpow.f32 %v711, %v1038
    %v1193 = vpow.f32 %v712, %v1038
    %v1194 = vpow.f32 %v713, %v1038
    %v1195 = vpow.f32 %v714, %v1038
    %v1196 = vpow.f32 %v715, %v1038
    %v1197 = vpow.f32 %v716, %v1038
    %v1198 = vpow.f32 %v717, %v1038
    %v1199 = vpow.f32 %v718, %v1038
    %v1200 = vpow.f32 %v719, %v1038
    %v1201 = vpow.f32 %v720, %v1038
    %v1202 = vpow.f32 %v721, %v1038
    %v1203 = vpow.f32 %v722, %v1038
    %v1204 = vpow.f32 %v723, %v1038
    %v1205 = vpow.f32 %v724, %v1038
    %v1206 = vpow.f32 %v725, %v1038
    %v1207 = vpow.f32 %v726, %v1038
    %v1208 = vpow.f32 %v727, %v1038
    %v1209 = vpow.f32 %v728, %v1038
    %v1210 = vpow.f32 %v729, %v1038
    %v1211 = vpow.f32 %v730, %v1038
    %v1212 = vpow.f32 %v731, %v1038
    %v1213 = vpow.f32 %v732, %v1038
    %v1214 = vpow.f32 %v733, %v1038
    %v1215 = vpow.f32 %v734, %v1038
    %v1216 = vpow.f32 %v735, %v1038
    %v1217 = vpow.f32 %v736, %v1038
    %v1218 = vpow.f32 %v737, %v1038
    %v1219 = vpow.f32 %v738, %v1038
    %v1220 = vpow.f32 %v739, %v1038
    %v1221 = vpow.f32 %v740, %v1038
    %v1222 = vpow.f32 %v741, %v1038
    %v1223 = vpow.f32 %v742, %v1038
    %v1224 = vpow.f32 %v743, %v1038
    %v1225 = vpow.f32 %v744, %v1038
    %v1226 = vpow.f32 %v745, %v1038
    %v1227 = vpow.f32 %v746, %v1038
    %v1228 = vpow.f32 %v747, %v1038
    %v1229 = vpow.f32 %v748, %v1038
    %v1230 = vpow.f32 %v749, %v1038
    %v1231 = vpow.f32 %v750, %v1038
    %v1232 = vpow.f32 %v751, %v1038
    %v1233 = vpow.f32 %v752, %v1038
    %v1234 = vpow.f32 %v753, %v1038
    %v1235 = vpow.f32 %v754, %v1038
    %v1236 = vpow.f32 %v755, %v1038
    %v1237 = vpow.f32 %v756, %v1038
    %v1238 = vpow.f32 %v757, %v1038
    %v1239 = vpow.f32 %v758, %v1038
    %v1240 = vpow.f32 %v759, %v1038
    %v1241 = vpow.f32 %v760, %v1038
    %v1242 = vpow.f32 %v761, %v1038
    %v1243 = vpow.f32 %v762, %v1038
    %v1244 = vpow.f32 %v763, %v1038
    %v1245 = vpow.f32 %v764, %v1038
    %v1246 = vpow.f32 %v765, %v1038
    %v1247 = vpow.f32 %v766, %v1038
    %v1248 = vpow.f32 %v767, %v1038
    %v1249 = vpow.f32 %v768, %v1038
    %v1250 = vpow.f32 %v769, %v1038
    %v1251 = vpow.f32 %v770, %v1038
    %v1252 = vpow.f32 %v771, %v1038
    %v1253 = vpow.f32 %v772, %v1038
    %v1254 = vpow.f32 %v773, %v1038
    %v1255 = vpow.f32 %v774, %v1038
    %v1256 = vpow.f32 %v775, %v1038
    %v1257 = vpow.f32 %v776, %v1038
    %v1258 = vpow.f32 %v777, %v1038
    %v1259 = vpow.f32 %v778, %v1038
    %v1260 = vpow.f32 %v779, %v1038
    %v1261 = vpow.f32 %v780, %v1038
    %v1262 = vpow.f32 %v781, %v1038
    %v1263 = vpow.f32 %v782, %v1038
    %v1264 = vpow.f32 %v783, %v1038
    %v1265 = vpow.f32 %v784, %v1038
    %v1266 = vpow.f32 %v785, %v1038
    %v1267 = vpow.f32 %v786, %v1038
    %v1268 = vpow.f32 %v787, %v1038
    %v1269 = vpow.f32 %v788, %v1038
    %v1270 = vpow.f32 %v789, %v1038
    %v1271 = vpow.f32 %v790, %v1038
    %v1272 = vpow.f32 %v791, %v1038
    %v1273 = vpow.f32 %v792, %v1038
    %v1274 = vpow.f32 %v793, %v1038
    %v1275 = vpow.f32 %v794, %v1038
    %v1276 = vpow.f32 %v795, %v1038
    %v1277 = vpow.f32 %v796, %v1038
    %v1278 = vpow.f32 %v797, %v1038
    %v1279 = vpow.f32 %v798, %v1038
    %v1280 = vpow.f32 %v799, %v1038
    %v1281 = vpow.f32 %v800, %v1038
    %v1282 = vpow.f32 %v801, %v1038
    %v1283 = vpow.f32 %v802, %v1038
    %v1284 = vpow.f32 %v803, %v1038
    %v1285 = vpow.f32 %v804, %v1038
    %v1286 = vpow.f32 %v805, %v1038
    %v1287 = vpow.f32 %v806, %v1038
    %v1288 = vpow.f32 %v807, %v1038
    %v1289 = vpow.f32 %v808, %v1038
    %v1290 = vpow.f32 %v809, %v1038
    %v1291 = vpow.f32 %v810, %v1038
    %v1292 = vpow.f32 %v811, %v1038
    %v1293 = vpow.f32 %v812, %v1038
    %v1294 = vpow.f32 %v813, %v1038
    %v1295 = vpow.f32 %v814, %v1038
    %v1296 = vpow.f32 %v815, %v1038
    %v1297 = vpow.f32 %v816, %v1038
    %v1298 = vpow.f32 %v817, %v1038
    %v1299 = vpow.f32 %v818, %v1038
    %v1300 = vpow.f32 %v819, %v1038
    %v1301 = vpow.f32 %v820, %v1038
    %v1302 = vpow.f32 %v821, %v1038
    %v1303 = vpow.f32 %v822, %v1038
    %v1304 = vpow.f32 %v823, %v1038
    %v1305 = vpow.f32 %v824, %v1038
    %v1306 = vpow.f32 %v825, %v1038
    %v1307 = vpow.f32 %v826, %v1038
    %v1308 = vpow.f32 %v827, %v1038
    %v1309 = vpow.f32 %v828, %v1038
    %v1310 = vpow.f32 %v829, %v1038
    %v1311 = vpow.f32 %v830, %v1038
    %v1312 = vpow.f32 %v831, %v1038
    %v1313 = vpow.f32 %v832, %v1038
    %v1314 = vpow.f32 %v833, %v1038
    %v1315 = vpow.f32 %v834, %v1038
    %v1316 = vpow.f32 %v835, %v1038
    %v1317 = vpow.f32 %v836, %v1038
    %v1318 = vpow.f32 %v837, %v1038
    %v1319 = vpow.f32 %v838, %v1038
    %v1320 = vpow.f32 %v839, %v1038
    %v1321 = vpow.f32 %v840, %v1038
    %v1322 = vpow.f32 %v841, %v1038
    %v1323 = vpow.f32 %v842, %v1038
    %v1324 = vpow.f32 %v843, %v1038
    %v1325 = vpow.f32 %v844, %v1038
    %v1326 = vpow.f32 %v845, %v1038
    %v1327 = vpow.f32 %v846, %v1038
    %v1328 = vpow.f32 %v847, %v1038
    %v1329 = vpow.f32 %v848, %v1038
    %v1330 = vpow.f32 %v849, %v1038
    %v1331 = vpow.f32 %v850, %v1038
    %v1332 = vpow.f32 %v851, %v1038
    %v1333 = vpow.f32 %v852, %v1038
    %v1334 = vpow.f32 %v853, %v1038
    %v1335 = vpow.f32 %v854, %v1038
    %v1336 = vpow.f32 %v855, %v1038
    %v1337 = vpow.f32 %v856, %v1038
    %v1338 = vpow.f32 %v857, %v1038
    %v1339 = vpow.f32 %v858, %v1038
    %v1340 = vpow.f32 %v859, %v1038
    %v1341 = vpow.f32 %v860, %v1038
    %v1342 = vpow.f32 %v861, %v1038
    %v1343 = vpow.f32 %v862, %v1038
    %v1344 = vpow.f32 %v863, %v1038
    %v1345 = vpow.f32 %v864, %v1038
    %v1346 = vpow.f32 %v865, %v1038
    %v1347 = vpow.f32 %v866, %v1038
    %v1348 = vpow.f32 %v867, %v1038
    %v1349 = vpow.f32 %v868, %v1038
    %v1350 = vpow.f32 %v869, %v1038
    %v1351 = vpow.f32 %v870, %v1038
    %v1352 = vpow.f32 %v871, %v1038
    %v1353 = vpow.f32 %v872, %v1038
    %v1354 = vpow.f32 %v873, %v1038
    %v1355 = vpow.f32 %v874, %v1038
    %v1356 = vpow.f32 %v875, %v1038
    %v1357 = vpow.f32 %v876, %v1038
    %v1358 = vpow.f32 %v877, %v1038
    %v1359 = vpow.f32 %v878, %v1038
    %v1360 = vpow.f32 %v879, %v1038
    %v1361 = vpow.f32 %v880, %v1038
    %v1362 = vpow.f32 %v881, %v1038
    %v1363 = vpow.f32 %v882, %v1038
    %v1364 = vpow.f32 %v883, %v1038
    %v1365 = vpow.f32 %v884, %v1038
    %v1366 = vpow.f32 %v885, %v1038
    %v1367 = vpow.f32 %v886, %v1038
    %v1368 = vpow.f32 %v887, %v1038
    %v1369 = vpow.f32 %v888, %v1038
    %v1370 = vpow.f32 %v889, %v1038
    %v1371 = vpow.f32 %v890, %v1038
    %v1372 = vpow.f32 %v891, %v1038
    %v1373 = vpow.f32 %v892, %v1038
    %v1374 = vpow.f32 %v893, %v1038
    %v1375 = vpow.f32 %v894, %v1038
    %v1376 = vpow.f32 %v895, %v1038
    %v1377 = vpow.f32 %v896, %v1038
    %v1378 = vpow.f32 %v897, %v1038
    %v1379 = vpow.f32 %v898, %v1038
    %v1380 = vpow.f32 %v899, %v1038
    %v1381 = vpow.f32 %v900, %v1038
    %v1382 = vpow.f32 %v901, %v1038
    %v1383 = vpow.f32 %v902, %v1038
    %v1384 = vpow.f32 %v903, %v1038
    %v1385 = vpow.f32 %v904, %v1038
    %v1386 = vpow.f32 %v905, %v1038
    %v1387 = vpow.f32 %v906, %v1038
    %v1388 = vpow.f32 %v907, %v1038
    %v1389 = vpow.f32 %v908, %v1038
    %v1390 = vpow.f32 %v909, %v1038
    %v1391 = vpow.f32 %v910, %v1038
    %v1392 = vpow.f32 %v911, %v1038
    %v1393 = vpow.f32 %v912, %v1038
    %v1394 = vpow.f32 %v913, %v1038
    %v1395 = vpow.f32 %v914, %v1038
    %v1396 = vpow.f32 %v915, %v1038
    %v1397 = vpow.f32 %v916, %v1038
    %v1398 = vpow.f32 %v917, %v1038
    %v1399 = vpow.f32 %v918, %v1038
    %v1400 = vpow.f32 %v919, %v1038
    %v1401 = vpow.f32 %v920, %v1038
    %v1402 = vpow.f32 %v921, %v1038
    %v1403 = vpow.f32 %v922, %v1038
    %v1404 = vpow.f32 %v923, %v1038
    %v1405 = vpow.f32 %v924, %v1038
    %v1406 = vpow.f32 %v925, %v1038
    %v1407 = vpow.f32 %v926, %v1038
    %v1408 = vpow.f32 %v927, %v1038
    %v1409 = vpow.f32 %v928, %v1038
    %v1410 = vpow.f32 %v929, %v1038
    %v1411 = vpow.f32 %v930, %v1038
    %v1412 = vpow.f32 %v931, %v1038
    %v1413 = vpow.f32 %v932, %v1038
    %v1414 = vpow.f32 %v933, %v1038
    %v1415 = vpow.f32 %v934, %v1038
    %v1416 = vpow.f32 %v935, %v1038
    %v1417 = vpow.f32 %v936, %v1038
    %v1418 = vpow.f32 %v937, %v1038
    %v1419 = vpow.f32 %v938, %v1038
    %v1420 = vpow.f32 %v939, %v1038
    %v1421 = vpow.f32 %v940, %v1038
    %v1422 = vpow.f32 %v941, %v1038
    %v1423 = vpow.f32 %v942, %v1038
    %v1424 = vpow.f32 %v943, %v1038
    %v1425 = vpow.f32 %v944, %v1038
    %v1426 = vpow.f32 %v945, %v1038
    %v1427 = vpow.f32 %v946, %v1038
    %v1428 = vpow.f32 %v947, %v1038
    %v1429 = vpow.f32 %v948, %v1038
    %v1430 = vpow.f32 %v949, %v1038
    %v1431 = vpow.f32 %v950, %v1038
    %v1432 = vpow.f32 %v951, %v1038
    %v1433 = vpow.f32 %v952, %v1038
    %v1434 = vpow.f32 %v953, %v1038
    %v1435 = vpow.f32 %v954, %v1038
    %v1436 = vpow.f32 %v955, %v1038
    %v1437 = vpow.f32 %v956, %v1038
    %v1438 = vpow.f32 %v957, %v1038
    %v1439 = vpow.f32 %v958, %v1038
    %v1440 = vpow.f32 %v959, %v1038
    %v1441 = vpow.f32 %v960, %v1038
    %v1442 = vpow.f32 %v961, %v1038
    %v1443 = vpow.f32 %v962, %v1038
    %v1444 = vpow.f32 %v963, %v1038
    %v1445 = vpow.f32 %v964, %v1038
    %v1446 = vpow.f32 %v965, %v1038
    %v1447 = vpow.f32 %v966, %v1038
    %v1448 = vpow.f32 %v967, %v1038
    %v1449 = vpow.f32 %v968, %v1038
    %v1450 = vpow.f32 %v969, %v1038
    %v1451 = vpow.f32 %v970, %v1038
    %v1452 = vpow.f32 %v971, %v1038
    %v1453 = vpow.f32 %v972, %v1038
    %v1454 = vpow.f32 %v973, %v1038
    %v1455 = vpow.f32 %v974, %v1038
    %v1456 = vpow.f32 %v975, %v1038
    %v1457 = vpow.f32 %v976, %v1038
    %v1458 = vpow.f32 %v977, %v1038
    %v1459 = vpow.f32 %v978, %v1038
    %v1460 = vpow.f32 %v979, %v1038
    %v1461 = vpow.f32 %v980, %v1038
    %v1462 = vpow.f32 %v981, %v1038
    %v1463 = vpow.f32 %v982, %v1038
    %v1464 = vpow.f32 %v983, %v1038
    %v1465 = vpow.f32 %v984, %v1038
    %v1466 = vpow.f32 %v985, %v1038
    %v1467 = vpow.f32 %v986, %v1038
    %v1468 = vpow.f32 %v987, %v1038
    %v1469 = vpow.f32 %v988, %v1038
    %v1470 = vpow.f32 %v989, %v1038
    %v1471 = vpow.f32 %v990, %v1038
    %v1472 = vpow.f32 %v991, %v1038
    %v1473 = vpow.f32 %v992, %v1038
    %v1474 = vpow.f32 %v993, %v1038
    %v1475 = vpow.f32 %v994, %v1038
    %v1476 = vpow.f32 %v995, %v1038
    %v1477 = vpow.f32 %v996, %v1038
    %v1478 = vpow.f32 %v997, %v1038
    %v1479 = vpow.f32 %v998, %v1038
    %v1480 = vpow.f32 %v999, %v1038
    %v1481 = vpow.f32 %v1000, %v1038
    %v1482 = vpow.f32 %v1001, %v1038
    %v1483 = vpow.f32 %v1002, %v1038
    %v1484 = vpow.f32 %v1003, %v1038
    %v1485 = vpow.f32 %v1004, %v1038
    %v1486 = vpow.f32 %v1005, %v1038
    %v1487 = vpow.f32 %v1006, %v1038
    %v1488 = vpow.f32 %v1007, %v1038
    %v1489 = vpow.f32 %v1008, %v1038
    %v1490 = vpow.f32 %v1009, %v1038
    %v1491 = vpow.f32 %v1010, %v1038
    %v1492 = vpow.f32 %v1011, %v1038
    %v1493 = vpow.f32 %v1012, %v1038
    %v1494 = vpow.f32 %v1013, %v1038
    %v1495 = vpow.f32 %v1014, %v1038
    %v1496 = vpow.f32 %v1015, %v1038
    %v1497 = vpow.f32 %v1016, %v1038
    %v1498 = vpow.f32 %v1017, %v1038
    %v1499 = vpow.f32 %v1018, %v1038
    %v1500 = vpow.f32 %v1019, %v1038
    %v1501 = vpow.f32 %v1020, %v1038
    %v1502 = vpow.f32 %v1021, %v1038
    %v1503 = vpow.f32 %v1022, %v1038
    %v1504 = vpow.f32 %v1023, %v1038
    %v1505 = vpow.f32 %v1024, %v1038
    %v1506 = vpow.f32 %v1025, %v1038
    %v1507 = vpow.f32 %v1026, %v1038
    %v1508 = vpow.f32 %v1027, %v1038
    %v1509 = vpow.f32 %v1028, %v1038
    %v1510 = vpow.f32 %v1029, %v1038
    %v1511 = vpow.f32 %v1030, %v1038
    %v1512 = vpow.f32 %v1031, %v1038
    %v1513 = vpow.f32 %v1032, %v1038
    %v1514 = vpow.f32 %v1033, %v1038
    %v1515 = vpow.f32 %v1034, %v1038
    %v1516 = vpow.f32 %v1035, %v1038
    %v1517 = vpow.f32 %v1036, %v1038
    %v1518 = vpow.f32 %v1037, %v1038
    %1519 = vadd.xlane.f32.xlu0 %v1039
    %v1520 = vpop.xlane.xlu0 %1519
    %1521 = vadd.xlane.f32.xlu0 %v1040
    %v1522 = vpop.xlane.xlu0 %1521
    %1523 = vadd.xlane.f32.xlu0 %v1041
    %v1524 = vpop.xlane.xlu0 %1523
    %1525 = vadd.xlane.f32.xlu0 %v1042
    %v1526 = vpop.xlane.xlu0 %1525
    %1527 = vadd.xlane.f32.xlu0 %v1043
    %v1528 = vpop.xlane.xlu0 %1527
    %1529 = vadd.xlane.f32.xlu0 %v1044
    %v1530 = vpop.xlane.xlu0 %1529
    %1531 = vadd.xlane.f32.xlu0 %v1045
    %v1532 = vpop.xlane.xlu0 %1531
    %1533 = vadd.xlane.f32.xlu0 %v1046
    %v1534 = vpop.xlane.xlu0 %1533
    %1535 = vadd.xlane.f32.xlu0 %v1047
    %v1536 = vpop.xlane.xlu0 %1535
    %1537 = vadd.xlane.f32.xlu0 %v1048
    %v1538 = vpop.xlane.xlu0 %1537
    %1539 = vadd.xlane.f32.xlu0 %v1049
    %v1540 = vpop.xlane.xlu0 %1539
    %1541 = vadd.xlane.f32.xlu0 %v1050
    %v1542 = vpop.xlane.xlu0 %1541
    %1543 = vadd.xlane.f32.xlu0 %v1051
    %v1544 = vpop.xlane.xlu0 %1543
    %1545 = vadd.xlane.f32.xlu0 %v1052
    %v1546 = vpop.xlane.xlu0 %1545
    %1547 = vadd.xlane.f32.xlu0 %v1053
    %v1548 = vpop.xlane.xlu0 %1547
    %1549 = vadd.xlane.f32.xlu0 %v1054
    %v1550 = vpop.xlane.xlu0 %1549
    %1551 = vadd.xlane.f32.xlu0 %v1055
    %v1552 = vpop.xlane.xlu0 %1551
    %1553 = vadd.xlane.f32.xlu0 %v1056
    %v1554 = vpop.xlane.xlu0 %1553
    %1555 = vadd.xlane.f32.xlu0 %v1057
    %v1556 = vpop.xlane.xlu0 %1555
    %1557 = vadd.xlane.f32.xlu0 %v1058
    %v1558 = vpop.xlane.xlu0 %1557
    %1559 = vadd.xlane.f32.xlu0 %v1059
    %v1560 = vpop.xlane.xlu0 %1559
    %1561 = vadd.xlane.f32.xlu0 %v1060
    %v1562 = vpop.xlane.xlu0 %1561
    %1563 = vadd.xlane.f32.xlu0 %v1061
    %v1564 = vpop.xlane.xlu0 %1563
    %1565 = vadd.xlane.f32.xlu0 %v1062
    %v1566 = vpop.xlane.xlu0 %1565
    %1567 = vadd.xlane.f32.xlu0 %v1063
    %v1568 = vpop.xlane.xlu0 %1567
    %1569 = vadd.xlane.f32.xlu0 %v1064
    %v1570 = vpop.xlane.xlu0 %1569
    %1571 = vadd.xlane.f32.xlu0 %v1065
    %v1572 = vpop.xlane.xlu0 %1571
    %1573 = vadd.xlane.f32.xlu0 %v1066
    %v1574 = vpop.xlane.xlu0 %1573
    %1575 = vadd.xlane.f32.xlu0 %v1067
    %v1576 = vpop.xlane.xlu0 %1575
    %1577 = vadd.xlane.f32.xlu0 %v1068
    %v1578 = vpop.xlane.xlu0 %1577
    %1579 = vadd.xlane.f32.xlu0 %v1069
    %v1580 = vpop.xlane.xlu0 %1579
    %1581 = vadd.xlane.f32.xlu0 %v1070
    %v1582 = vpop.xlane.xlu0 %1581
    %1583 = vadd.xlane.f32.xlu0 %v1071
    %v1584 = vpop.xlane.xlu0 %1583
    %1585 = vadd.xlane.f32.xlu0 %v1072
    %v1586 = vpop.xlane.xlu0 %1585
    %1587 = vadd.xlane.f32.xlu0 %v1073
    %v1588 = vpop.xlane.xlu0 %1587
    %1589 = vadd.xlane.f32.xlu0 %v1074
    %v1590 = vpop.xlane.xlu0 %1589
    %1591 = vadd.xlane.f32.xlu0 %v1075
    %v1592 = vpop.xlane.xlu0 %1591
    %1593 = vadd.xlane.f32.xlu0 %v1076
    %v1594 = vpop.xlane.xlu0 %1593
    %1595 = vadd.xlane.f32.xlu0 %v1077
    %v1596 = vpop.xlane.xlu0 %1595
    %1597 = vadd.xlane.f32.xlu0 %v1078
    %v1598 = vpop.xlane.xlu0 %1597
    %1599 = vadd.xlane.f32.xlu0 %v1079
    %v1600 = vpop.xlane.xlu0 %1599
    %1601 = vadd.xlane.f32.xlu0 %v1080
    %v1602 = vpop.xlane.xlu0 %1601
    %1603 = vadd.xlane.f32.xlu0 %v1081
    %v1604 = vpop.xlane.xlu0 %1603
    %1605 = vadd.xlane.f32.xlu0 %v1082
    %v1606 = vpop.xlane.xlu0 %1605
    %1607 = vadd.xlane.f32.xlu0 %v1083
    %v1608 = vpop.xlane.xlu0 %1607
    %1609 = vadd.xlane.f32.xlu0 %v1084
    %v1610 = vpop.xlane.xlu0 %1609
    %1611 = vadd.xlane.f32.xlu0 %v1085
    %v1612 = vpop.xlane.xlu0 %1611
    %1613 = vadd.xlane.f32.xlu0 %v1086
    %v1614 = vpop.xlane.xlu0 %1613
    %1615 = vadd.xlane.f32.xlu0 %v1087
    %v1616 = vpop.xlane.xlu0 %1615
    %1617 = vadd.xlane.f32.xlu0 %v1088
    %v1618 = vpop.xlane.xlu0 %1617
    %1619 = vadd.xlane.f32.xlu0 %v1089
    %v1620 = vpop.xlane.xlu0 %1619
    %1621 = vadd.xlane.f32.xlu0 %v1090
    %v1622 = vpop.xlane.xlu0 %1621
    %1623 = vadd.xlane.f32.xlu0 %v1091
    %v1624 = vpop.xlane.xlu0 %1623
    %1625 = vadd.xlane.f32.xlu0 %v1092
    %v1626 = vpop.xlane.xlu0 %1625
    %1627 = vadd.xlane.f32.xlu0 %v1093
    %v1628 = vpop.xlane.xlu0 %1627
    %1629 = vadd.xlane.f32.xlu0 %v1094
    %v1630 = vpop.xlane.xlu0 %1629
    %1631 = vadd.xlane.f32.xlu0 %v1095
    %v1632 = vpop.xlane.xlu0 %1631
    %1633 = vadd.xlane.f32.xlu0 %v1096
    %v1634 = vpop.xlane.xlu0 %1633
    %1635 = vadd.xlane.f32.xlu0 %v1097
    %v1636 = vpop.xlane.xlu0 %1635
    %1637 = vadd.xlane.f32.xlu0 %v1098
    %v1638 = vpop.xlane.xlu0 %1637
    %1639 = vadd.xlane.f32.xlu0 %v1099
    %v1640 = vpop.xlane.xlu0 %1639
    %1641 = vadd.xlane.f32.xlu0 %v1100
    %v1642 = vpop.xlane.xlu0 %1641
    %1643 = vadd.xlane.f32.xlu0 %v1101
    %v1644 = vpop.xlane.xlu0 %1643
    %1645 = vadd.xlane.f32.xlu0 %v1102
    %v1646 = vpop.xlane.xlu0 %1645
    %1647 = vadd.xlane.f32.xlu0 %v1103
    %v1648 = vpop.xlane.xlu0 %1647
    %1649 = vadd.xlane.f32.xlu0 %v1104
    %v1650 = vpop.xlane.xlu0 %1649
    %1651 = vadd.xlane.f32.xlu0 %v1105
    %v1652 = vpop.xlane.xlu0 %1651
    %1653 = vadd.xlane.f32.xlu0 %v1106
    %v1654 = vpop.xlane.xlu0 %1653
    %1655 = vadd.xlane.f32.xlu0 %v1107
    %v1656 = vpop.xlane.xlu0 %1655
    %1657 = vadd.xlane.f32.xlu0 %v1108
    %v1658 = vpop.xlane.xlu0 %1657
    %1659 = vadd.xlane.f32.xlu0 %v1109
    %v1660 = vpop.xlane.xlu0 %1659
    %1661 = vadd.xlane.f32.xlu0 %v1110
    %v1662 = vpop.xlane.xlu0 %1661
    %1663 = vadd.xlane.f32.xlu0 %v1111
    %v1664 = vpop.xlane.xlu0 %1663
    %1665 = vadd.xlane.f32.xlu0 %v1112
    %v1666 = vpop.xlane.xlu0 %1665
    %1667 = vadd.xlane.f32.xlu0 %v1113
    %v1668 = vpop.xlane.xlu0 %1667
    %1669 = vadd.xlane.f32.xlu0 %v1114
    %v1670 = vpop.xlane.xlu0 %1669
    %1671 = vadd.xlane.f32.xlu0 %v1115
    %v1672 = vpop.xlane.xlu0 %1671
    %1673 = vadd.xlane.f32.xlu0 %v1116
    %v1674 = vpop.xlane.xlu0 %1673
    %1675 = vadd.xlane.f32.xlu0 %v1117
    %v1676 = vpop.xlane.xlu0 %1675
    %1677 = vadd.xlane.f32.xlu0 %v1118
    %v1678 = vpop.xlane.xlu0 %1677
    %1679 = vadd.xlane.f32.xlu0 %v1119
    %v1680 = vpop.xlane.xlu0 %1679
    %1681 = vadd.xlane.f32.xlu0 %v1120
    %v1682 = vpop.xlane.xlu0 %1681
    %1683 = vadd.xlane.f32.xlu0 %v1121
    %v1684 = vpop.xlane.xlu0 %1683
    %1685 = vadd.xlane.f32.xlu0 %v1122
    %v1686 = vpop.xlane.xlu0 %1685
    %1687 = vadd.xlane.f32.xlu0 %v1123
    %v1688 = vpop.xlane.xlu0 %1687
    %1689 = vadd.xlane.f32.xlu0 %v1124
    %v1690 = vpop.xlane.xlu0 %1689
    %1691 = vadd.xlane.f32.xlu0 %v1125
    %v1692 = vpop.xlane.xlu0 %1691
    %1693 = vadd.xlane.f32.xlu0 %v1126
    %v1694 = vpop.xlane.xlu0 %1693
    %1695 = vadd.xlane.f32.xlu0 %v1127
    %v1696 = vpop.xlane.xlu0 %1695
    %1697 = vadd.xlane.f32.xlu0 %v1128
    %v1698 = vpop.xlane.xlu0 %1697
    %1699 = vadd.xlane.f32.xlu0 %v1129
    %v1700 = vpop.xlane.xlu0 %1699
    %1701 = vadd.xlane.f32.xlu0 %v1130
    %v1702 = vpop.xlane.xlu0 %1701
    %1703 = vadd.xlane.f32.xlu0 %v1131
    %v1704 = vpop.xlane.xlu0 %1703
    %1705 = vadd.xlane.f32.xlu0 %v1132
    %v1706 = vpop.xlane.xlu0 %1705
    %1707 = vadd.xlane.f32.xlu0 %v1133
    %v1708 = vpop.xlane.xlu0 %1707
    %1709 = vadd.xlane.f32.xlu0 %v1134
    %v1710 = vpop.xlane.xlu0 %1709
    %1711 = vadd.xlane.f32.xlu0 %v1135
    %v1712 = vpop.xlane.xlu0 %1711
    %1713 = vadd.xlane.f32.xlu0 %v1136
    %v1714 = vpop.xlane.xlu0 %1713
    %1715 = vadd.xlane.f32.xlu0 %v1137
    %v1716 = vpop.xlane.xlu0 %1715
    %1717 = vadd.xlane.f32.xlu0 %v1138
    %v1718 = vpop.xlane.xlu0 %1717
    %1719 = vadd.xlane.f32.xlu0 %v1139
    %v1720 = vpop.xlane.xlu0 %1719
    %1721 = vadd.xlane.f32.xlu0 %v1140
    %v1722 = vpop.xlane.xlu0 %1721
    %1723 = vadd.xlane.f32.xlu0 %v1141
    %v1724 = vpop.xlane.xlu0 %1723
    %1725 = vadd.xlane.f32.xlu0 %v1142
    %v1726 = vpop.xlane.xlu0 %1725
    %1727 = vadd.xlane.f32.xlu0 %v1143
    %v1728 = vpop.xlane.xlu0 %1727
    %1729 = vadd.xlane.f32.xlu0 %v1144
    %v1730 = vpop.xlane.xlu0 %1729
    %1731 = vadd.xlane.f32.xlu0 %v1145
    %v1732 = vpop.xlane.xlu0 %1731
    %1733 = vadd.xlane.f32.xlu0 %v1146
    %v1734 = vpop.xlane.xlu0 %1733
    %1735 = vadd.xlane.f32.xlu0 %v1147
    %v1736 = vpop.xlane.xlu0 %1735
    %1737 = vadd.xlane.f32.xlu0 %v1148
    %v1738 = vpop.xlane.xlu0 %1737
    %1739 = vadd.xlane.f32.xlu0 %v1149
    %v1740 = vpop.xlane.xlu0 %1739
    %1741 = vadd.xlane.f32.xlu0 %v1150
    %v1742 = vpop.xlane.xlu0 %1741
    %1743 = vadd.xlane.f32.xlu0 %v1151
    %v1744 = vpop.xlane.xlu0 %1743
    %1745 = vadd.xlane.f32.xlu0 %v1152
    %v1746 = vpop.xlane.xlu0 %1745
    %1747 = vadd.xlane.f32.xlu0 %v1153
    %v1748 = vpop.xlane.xlu0 %1747
    %1749 = vadd.xlane.f32.xlu0 %v1154
    %v1750 = vpop.xlane.xlu0 %1749
    %1751 = vadd.xlane.f32.xlu0 %v1155
    %v1752 = vpop.xlane.xlu0 %1751
    %1753 = vadd.xlane.f32.xlu0 %v1156
    %v1754 = vpop.xlane.xlu0 %1753
    %1755 = vadd.xlane.f32.xlu0 %v1157
    %v1756 = vpop.xlane.xlu0 %1755
    %1757 = vadd.xlane.f32.xlu0 %v1158
    %v1758 = vpop.xlane.xlu0 %1757
    %1759 = vadd.xlane.f32.xlu0 %v1159
    %v1760 = vpop.xlane.xlu0 %1759
    %1761 = vadd.xlane.f32.xlu0 %v1160
    %v1762 = vpop.xlane.xlu0 %1761
    %1763 = vadd.xlane.f32.xlu0 %v1161
    %v1764 = vpop.xlane.xlu0 %1763
    %1765 = vadd.xlane.f32.xlu0 %v1162
    %v1766 = vpop.xlane.xlu0 %1765
    %1767 = vadd.xlane.f32.xlu0 %v1163
    %v1768 = vpop.xlane.xlu0 %1767
    %1769 = vadd.xlane.f32.xlu0 %v1164
    %v1770 = vpop.xlane.xlu0 %1769
    %1771 = vadd.xlane.f32.xlu0 %v1165
    %v1772 = vpop.xlane.xlu0 %1771
    %1773 = vadd.xlane.f32.xlu0 %v1166
    %v1774 = vpop.xlane.xlu0 %1773
    %1775 = vadd.xlane.f32.xlu0 %v1167
    %v1776 = vpop.xlane.xlu0 %1775
    %1777 = vadd.xlane.f32.xlu0 %v1168
    %v1778 = vpop.xlane.xlu0 %1777
    %1779 = vadd.xlane.f32.xlu0 %v1169
    %v1780 = vpop.xlane.xlu0 %1779
    %1781 = vadd.xlane.f32.xlu0 %v1170
    %v1782 = vpop.xlane.xlu0 %1781
    %1783 = vadd.xlane.f32.xlu0 %v1171
    %v1784 = vpop.xlane.xlu0 %1783
    %1785 = vadd.xlane.f32.xlu0 %v1172
    %v1786 = vpop.xlane.xlu0 %1785
    %1787 = vadd.xlane.f32.xlu0 %v1173
    %v1788 = vpop.xlane.xlu0 %1787
    %1789 = vadd.xlane.f32.xlu0 %v1174
    %v1790 = vpop.xlane.xlu0 %1789
    %1791 = vadd.xlane.f32.xlu0 %v1175
    %v1792 = vpop.xlane.xlu0 %1791
    %1793 = vadd.xlane.f32.xlu0 %v1176
    %v1794 = vpop.xlane.xlu0 %1793
    %1795 = vadd.xlane.f32.xlu0 %v1177
    %v1796 = vpop.xlane.xlu0 %1795
    %1797 = vadd.xlane.f32.xlu0 %v1178
    %v1798 = vpop.xlane.xlu0 %1797
    %1799 = vadd.xlane.f32.xlu0 %v1179
    %v1800 = vpop.xlane.xlu0 %1799
    %1801 = vadd.xlane.f32.xlu0 %v1180
    %v1802 = vpop.xlane.xlu0 %1801
    %1803 = vadd.xlane.f32.xlu0 %v1181
    %v1804 = vpop.xlane.xlu0 %1803
    %1805 = vadd.xlane.f32.xlu0 %v1182
    %v1806 = vpop.xlane.xlu0 %1805
    %1807 = vadd.xlane.f32.xlu0 %v1183
    %v1808 = vpop.xlane.xlu0 %1807
    %1809 = vadd.xlane.f32.xlu0 %v1184
    %v1810 = vpop.xlane.xlu0 %1809
    %1811 = vadd.xlane.f32.xlu0 %v1185
    %v1812 = vpop.xlane.xlu0 %1811
    %1813 = vadd.xlane.f32.xlu0 %v1186
    %v1814 = vpop.xlane.xlu0 %1813
    %1815 = vadd.xlane.f32.xlu0 %v1187
    %v1816 = vpop.xlane.xlu0 %1815
    %1817 = vadd.xlane.f32.xlu0 %v1188
    %v1818 = vpop.xlane.xlu0 %1817
    %1819 = vadd.xlane.f32.xlu0 %v1189
    %v1820 = vpop.xlane.xlu0 %1819
    %1821 = vadd.xlane.f32.xlu0 %v1190
    %v1822 = vpop.xlane.xlu0 %1821
    %1823 = vadd.xlane.f32.xlu0 %v1191
    %v1824 = vpop.xlane.xlu0 %1823
    %1825 = vadd.xlane.f32.xlu0 %v1192
    %v1826 = vpop.xlane.xlu0 %1825
    %1827 = vadd.xlane.f32.xlu0 %v1193
    %v1828 = vpop.xlane.xlu0 %1827
    %1829 = vadd.xlane.f32.xlu0 %v1194
    %v1830 = vpop.xlane.xlu0 %1829
    %1831 = vadd.xlane.f32.xlu0 %v1195
    %v1832 = vpop.xlane.xlu0 %1831
    %1833 = vadd.xlane.f32.xlu0 %v1196
    %v1834 = vpop.xlane.xlu0 %1833
    %1835 = vadd.xlane.f32.xlu0 %v1197
    %v1836 = vpop.xlane.xlu0 %1835
    %1837 = vadd.xlane.f32.xlu0 %v1198
    %v1838 = vpop.xlane.xlu0 %1837
    %1839 = vadd.xlane.f32.xlu0 %v1199
    %v1840 = vpop.xlane.xlu0 %1839
    %1841 = vadd.xlane.f32.xlu0 %v1200
    %v1842 = vpop.xlane.xlu0 %1841
    %1843 = vadd.xlane.f32.xlu0 %v1201
    %v1844 = vpop.xlane.xlu0 %1843
    %1845 = vadd.xlane.f32.xlu0 %v1202
    %v1846 = vpop.xlane.xlu0 %1845
    %1847 = vadd.xlane.f32.xlu0 %v1203
    %v1848 = vpop.xlane.xlu0 %1847
    %1849 = vadd.xlane.f32.xlu0 %v1204
    %v1850 = vpop.xlane.xlu0 %1849
    %1851 = vadd.xlane.f32.xlu0 %v1205
    %v1852 = vpop.xlane.xlu0 %1851
    %1853 = vadd.xlane.f32.xlu0 %v1206
    %v1854 = vpop.xlane.xlu0 %1853
    %1855 = vadd.xlane.f32.xlu0 %v1207
    %v1856 = vpop.xlane.xlu0 %1855
    %1857 = vadd.xlane.f32.xlu0 %v1208
    %v1858 = vpop.xlane.xlu0 %1857
    %1859 = vadd.xlane.f32.xlu0 %v1209
    %v1860 = vpop.xlane.xlu0 %1859
    %1861 = vadd.xlane.f32.xlu0 %v1210
    %v1862 = vpop.xlane.xlu0 %1861
    %1863 = vadd.xlane.f32.xlu0 %v1211
    %v1864 = vpop.xlane.xlu0 %1863
    %1865 = vadd.xlane.f32.xlu0 %v1212
    %v1866 = vpop.xlane.xlu0 %1865
    %1867 = vadd.xlane.f32.xlu0 %v1213
    %v1868 = vpop.xlane.xlu0 %1867
    %1869 = vadd.xlane.f32.xlu0 %v1214
    %v1870 = vpop.xlane.xlu0 %1869
    %1871 = vadd.xlane.f32.xlu0 %v1215
    %v1872 = vpop.xlane.xlu0 %1871
    %1873 = vadd.xlane.f32.xlu0 %v1216
    %v1874 = vpop.xlane.xlu0 %1873
    %1875 = vadd.xlane.f32.xlu0 %v1217
    %v1876 = vpop.xlane.xlu0 %1875
    %1877 = vadd.xlane.f32.xlu0 %v1218
    %v1878 = vpop.xlane.xlu0 %1877
    %1879 = vadd.xlane.f32.xlu0 %v1219
    %v1880 = vpop.xlane.xlu0 %1879
    %1881 = vadd.xlane.f32.xlu0 %v1220
    %v1882 = vpop.xlane.xlu0 %1881
    %1883 = vadd.xlane.f32.xlu0 %v1221
    %v1884 = vpop.xlane.xlu0 %1883
    %1885 = vadd.xlane.f32.xlu0 %v1222
    %v1886 = vpop.xlane.xlu0 %1885
    %1887 = vadd.xlane.f32.xlu0 %v1223
    %v1888 = vpop.xlane.xlu0 %1887
    %1889 = vadd.xlane.f32.xlu0 %v1224
    %v1890 = vpop.xlane.xlu0 %1889
    %1891 = vadd.xlane.f32.xlu0 %v1225
    %v1892 = vpop.xlane.xlu0 %1891
    %1893 = vadd.xlane.f32.xlu0 %v1226
    %v1894 = vpop.xlane.xlu0 %1893
    %1895 = vadd.xlane.f32.xlu0 %v1227
    %v1896 = vpop.xlane.xlu0 %1895
    %1897 = vadd.xlane.f32.xlu0 %v1228
    %v1898 = vpop.xlane.xlu0 %1897
    %1899 = vadd.xlane.f32.xlu0 %v1229
    %v1900 = vpop.xlane.xlu0 %1899
    %1901 = vadd.xlane.f32.xlu0 %v1230
    %v1902 = vpop.xlane.xlu0 %1901
    %1903 = vadd.xlane.f32.xlu0 %v1231
    %v1904 = vpop.xlane.xlu0 %1903
    %1905 = vadd.xlane.f32.xlu0 %v1232
    %v1906 = vpop.xlane.xlu0 %1905
    %1907 = vadd.xlane.f32.xlu0 %v1233
    %v1908 = vpop.xlane.xlu0 %1907
    %1909 = vadd.xlane.f32.xlu0 %v1234
    %v1910 = vpop.xlane.xlu0 %1909
    %1911 = vadd.xlane.f32.xlu0 %v1235
    %v1912 = vpop.xlane.xlu0 %1911
    %1913 = vadd.xlane.f32.xlu0 %v1236
    %v1914 = vpop.xlane.xlu0 %1913
    %1915 = vadd.xlane.f32.xlu0 %v1237
    %v1916 = vpop.xlane.xlu0 %1915
    %1917 = vadd.xlane.f32.xlu0 %v1238
    %v1918 = vpop.xlane.xlu0 %1917
    %1919 = vadd.xlane.f32.xlu0 %v1239
    %v1920 = vpop.xlane.xlu0 %1919
    %1921 = vadd.xlane.f32.xlu0 %v1240
    %v1922 = vpop.xlane.xlu0 %1921
    %1923 = vadd.xlane.f32.xlu0 %v1241
    %v1924 = vpop.xlane.xlu0 %1923
    %1925 = vadd.xlane.f32.xlu0 %v1242
    %v1926 = vpop.xlane.xlu0 %1925
    %1927 = vadd.xlane.f32.xlu0 %v1243
    %v1928 = vpop.xlane.xlu0 %1927
    %1929 = vadd.xlane.f32.xlu0 %v1244
    %v1930 = vpop.xlane.xlu0 %1929
    %1931 = vadd.xlane.f32.xlu0 %v1245
    %v1932 = vpop.xlane.xlu0 %1931
    %1933 = vadd.xlane.f32.xlu0 %v1246
    %v1934 = vpop.xlane.xlu0 %1933
    %1935 = vadd.xlane.f32.xlu0 %v1247
    %v1936 = vpop.xlane.xlu0 %1935
    %1937 = vadd.xlane.f32.xlu0 %v1248
    %v1938 = vpop.xlane.xlu0 %1937
    %1939 = vadd.xlane.f32.xlu0 %v1249
    %v1940 = vpop.xlane.xlu0 %1939
    %1941 = vadd.xlane.f32.xlu0 %v1250
    %v1942 = vpop.xlane.xlu0 %1941
    %1943 = vadd.xlane.f32.xlu0 %v1251
    %v1944 = vpop.xlane.xlu0 %1943
    %1945 = vadd.xlane.f32.xlu0 %v1252
    %v1946 = vpop.xlane.xlu0 %1945
    %1947 = vadd.xlane.f32.xlu0 %v1253
    %v1948 = vpop.xlane.xlu0 %1947
    %1949 = vadd.xlane.f32.xlu0 %v1254
    %v1950 = vpop.xlane.xlu0 %1949
    %1951 = vadd.xlane.f32.xlu0 %v1255
    %v1952 = vpop.xlane.xlu0 %1951
    %1953 = vadd.xlane.f32.xlu0 %v1256
    %v1954 = vpop.xlane.xlu0 %1953
    %1955 = vadd.xlane.f32.xlu0 %v1257
    %v1956 = vpop.xlane.xlu0 %1955
    %1957 = vadd.xlane.f32.xlu0 %v1258
    %v1958 = vpop.xlane.xlu0 %1957
    %1959 = vadd.xlane.f32.xlu0 %v1259
    %v1960 = vpop.xlane.xlu0 %1959
    %1961 = vadd.xlane.f32.xlu0 %v1260
    %v1962 = vpop.xlane.xlu0 %1961
    %1963 = vadd.xlane.f32.xlu0 %v1261
    %v1964 = vpop.xlane.xlu0 %1963
    %1965 = vadd.xlane.f32.xlu0 %v1262
    %v1966 = vpop.xlane.xlu0 %1965
    %1967 = vadd.xlane.f32.xlu0 %v1263
    %v1968 = vpop.xlane.xlu0 %1967
    %1969 = vadd.xlane.f32.xlu0 %v1264
    %v1970 = vpop.xlane.xlu0 %1969
    %1971 = vadd.xlane.f32.xlu0 %v1265
    %v1972 = vpop.xlane.xlu0 %1971
    %1973 = vadd.xlane.f32.xlu0 %v1266
    %v1974 = vpop.xlane.xlu0 %1973
    %1975 = vadd.xlane.f32.xlu0 %v1267
    %v1976 = vpop.xlane.xlu0 %1975
    %1977 = vadd.xlane.f32.xlu0 %v1268
    %v1978 = vpop.xlane.xlu0 %1977
    %1979 = vadd.xlane.f32.xlu0 %v1269
    %v1980 = vpop.xlane.xlu0 %1979
    %1981 = vadd.xlane.f32.xlu0 %v1270
    %v1982 = vpop.xlane.xlu0 %1981
    %1983 = vadd.xlane.f32.xlu0 %v1271
    %v1984 = vpop.xlane.xlu0 %1983
    %1985 = vadd.xlane.f32.xlu0 %v1272
    %v1986 = vpop.xlane.xlu0 %1985
    %1987 = vadd.xlane.f32.xlu0 %v1273
    %v1988 = vpop.xlane.xlu0 %1987
    %1989 = vadd.xlane.f32.xlu0 %v1274
    %v1990 = vpop.xlane.xlu0 %1989
    %1991 = vadd.xlane.f32.xlu0 %v1275
    %v1992 = vpop.xlane.xlu0 %1991
    %1993 = vadd.xlane.f32.xlu0 %v1276
    %v1994 = vpop.xlane.xlu0 %1993
    %1995 = vadd.xlane.f32.xlu0 %v1277
    %v1996 = vpop.xlane.xlu0 %1995
    %1997 = vadd.xlane.f32.xlu0 %v1278
    %v1998 = vpop.xlane.xlu0 %1997
    %1999 = vadd.xlane.f32.xlu0 %v1279
    %v2000 = vpop.xlane.xlu0 %1999
    %2001 = vadd.xlane.f32.xlu0 %v1280
    %v2002 = vpop.xlane.xlu0 %2001
    %2003 = vadd.xlane.f32.xlu0 %v1281
    %v2004 = vpop.xlane.xlu0 %2003
    %2005 = vadd.xlane.f32.xlu0 %v1282
    %v2006 = vpop.xlane.xlu0 %2005
    %2007 = vadd.xlane.f32.xlu0 %v1283
    %v2008 = vpop.xlane.xlu0 %2007
    %2009 = vadd.xlane.f32.xlu0 %v1284
    %v2010 = vpop.xlane.xlu0 %2009
    %2011 = vadd.xlane.f32.xlu0 %v1285
    %v2012 = vpop.xlane.xlu0 %2011
    %2013 = vadd.xlane.f32.xlu0 %v1286
    %v2014 = vpop.xlane.xlu0 %2013
    %2015 = vadd.xlane.f32.xlu0 %v1287
    %v2016 = vpop.xlane.xlu0 %2015
    %2017 = vadd.xlane.f32.xlu0 %v1288
    %v2018 = vpop.xlane.xlu0 %2017
    %2019 = vadd.xlane.f32.xlu0 %v1289
    %v2020 = vpop.xlane.xlu0 %2019
    %2021 = vadd.xlane.f32.xlu0 %v1290
    %v2022 = vpop.xlane.xlu0 %2021
    %2023 = vadd.xlane.f32.xlu0 %v1291
    %v2024 = vpop.xlane.xlu0 %2023
    %2025 = vadd.xlane.f32.xlu0 %v1292
    %v2026 = vpop.xlane.xlu0 %2025
    %2027 = vadd.xlane.f32.xlu0 %v1293
    %v2028 = vpop.xlane.xlu0 %2027
    %2029 = vadd.xlane.f32.xlu0 %v1294
    %v2030 = vpop.xlane.xlu0 %2029
    %2031 = vadd.xlane.f32.xlu0 %v1295
    %v2032 = vpop.xlane.xlu0 %2031
    %2033 = vadd.xlane.f32.xlu0 %v1296
    %v2034 = vpop.xlane.xlu0 %2033
    %2035 = vadd.xlane.f32.xlu0 %v1297
    %v2036 = vpop.xlane.xlu0 %2035
    %2037 = vadd.xlane.f32.xlu0 %v1298
    %v2038 = vpop.xlane.xlu0 %2037
    %2039 = vadd.xlane.f32.xlu0 %v1299
    %v2040 = vpop.xlane.xlu0 %2039
    %2041 = vadd.xlane.f32.xlu0 %v1300
    %v2042 = vpop.xlane.xlu0 %2041
    %2043 = vadd.xlane.f32.xlu0 %v1301
    %v2044 = vpop.xlane.xlu0 %2043
    %2045 = vadd.xlane.f32.xlu0 %v1302
    %v2046 = vpop.xlane.xlu0 %2045
    %2047 = vadd.xlane.f32.xlu0 %v1303
    %v2048 = vpop.xlane.xlu0 %2047
    %2049 = vadd.xlane.f32.xlu0 %v1304
    %v2050 = vpop.xlane.xlu0 %2049
    %2051 = vadd.xlane.f32.xlu0 %v1305
    %v2052 = vpop.xlane.xlu0 %2051
    %2053 = vadd.xlane.f32.xlu0 %v1306
    %v2054 = vpop.xlane.xlu0 %2053
    %2055 = vadd.xlane.f32.xlu0 %v1307
    %v2056 = vpop.xlane.xlu0 %2055
    %2057 = vadd.xlane.f32.xlu0 %v1308
    %v2058 = vpop.xlane.xlu0 %2057
    %2059 = vadd.xlane.f32.xlu0 %v1309
    %v2060 = vpop.xlane.xlu0 %2059
    %2061 = vadd.xlane.f32.xlu0 %v1310
    %v2062 = vpop.xlane.xlu0 %2061
    %2063 = vadd.xlane.f32.xlu0 %v1311
    %v2064 = vpop.xlane.xlu0 %2063
    %2065 = vadd.xlane.f32.xlu0 %v1312
    %v2066 = vpop.xlane.xlu0 %2065
    %2067 = vadd.xlane.f32.xlu0 %v1313
    %v2068 = vpop.xlane.xlu0 %2067
    %2069 = vadd.xlane.f32.xlu0 %v1314
    %v2070 = vpop.xlane.xlu0 %2069
    %2071 = vadd.xlane.f32.xlu0 %v1315
    %v2072 = vpop.xlane.xlu0 %2071
    %2073 = vadd.xlane.f32.xlu0 %v1316
    %v2074 = vpop.xlane.xlu0 %2073
    %2075 = vadd.xlane.f32.xlu0 %v1317
    %v2076 = vpop.xlane.xlu0 %2075
    %2077 = vadd.xlane.f32.xlu0 %v1318
    %v2078 = vpop.xlane.xlu0 %2077
    %2079 = vadd.xlane.f32.xlu0 %v1319
    %v2080 = vpop.xlane.xlu0 %2079
    %2081 = vadd.xlane.f32.xlu0 %v1320
    %v2082 = vpop.xlane.xlu0 %2081
    %2083 = vadd.xlane.f32.xlu0 %v1321
    %v2084 = vpop.xlane.xlu0 %2083
    %2085 = vadd.xlane.f32.xlu0 %v1322
    %v2086 = vpop.xlane.xlu0 %2085
    %2087 = vadd.xlane.f32.xlu0 %v1323
    %v2088 = vpop.xlane.xlu0 %2087
    %2089 = vadd.xlane.f32.xlu0 %v1324
    %v2090 = vpop.xlane.xlu0 %2089
    %2091 = vadd.xlane.f32.xlu0 %v1325
    %v2092 = vpop.xlane.xlu0 %2091
    %2093 = vadd.xlane.f32.xlu0 %v1326
    %v2094 = vpop.xlane.xlu0 %2093
    %2095 = vadd.xlane.f32.xlu0 %v1327
    %v2096 = vpop.xlane.xlu0 %2095
    %2097 = vadd.xlane.f32.xlu0 %v1328
    %v2098 = vpop.xlane.xlu0 %2097
    %2099 = vadd.xlane.f32.xlu0 %v1329
    %v2100 = vpop.xlane.xlu0 %2099
    %2101 = vadd.xlane.f32.xlu0 %v1330
    %v2102 = vpop.xlane.xlu0 %2101
    %2103 = vadd.xlane.f32.xlu0 %v1331
    %v2104 = vpop.xlane.xlu0 %2103
    %2105 = vadd.xlane.f32.xlu0 %v1332
    %v2106 = vpop.xlane.xlu0 %2105
    %2107 = vadd.xlane.f32.xlu0 %v1333
    %v2108 = vpop.xlane.xlu0 %2107
    %2109 = vadd.xlane.f32.xlu0 %v1334
    %v2110 = vpop.xlane.xlu0 %2109
    %2111 = vadd.xlane.f32.xlu0 %v1335
    %v2112 = vpop.xlane.xlu0 %2111
    %2113 = vadd.xlane.f32.xlu0 %v1336
    %v2114 = vpop.xlane.xlu0 %2113
    %2115 = vadd.xlane.f32.xlu0 %v1337
    %v2116 = vpop.xlane.xlu0 %2115
    %2117 = vadd.xlane.f32.xlu0 %v1338
    %v2118 = vpop.xlane.xlu0 %2117
    %2119 = vadd.xlane.f32.xlu0 %v1339
    %v2120 = vpop.xlane.xlu0 %2119
    %2121 = vadd.xlane.f32.xlu0 %v1340
    %v2122 = vpop.xlane.xlu0 %2121
    %2123 = vadd.xlane.f32.xlu0 %v1341
    %v2124 = vpop.xlane.xlu0 %2123
    %2125 = vadd.xlane.f32.xlu0 %v1342
    %v2126 = vpop.xlane.xlu0 %2125
    %2127 = vadd.xlane.f32.xlu0 %v1343
    %v2128 = vpop.xlane.xlu0 %2127
    %2129 = vadd.xlane.f32.xlu0 %v1344
    %v2130 = vpop.xlane.xlu0 %2129
    %2131 = vadd.xlane.f32.xlu0 %v1345
    %v2132 = vpop.xlane.xlu0 %2131
    %2133 = vadd.xlane.f32.xlu0 %v1346
    %v2134 = vpop.xlane.xlu0 %2133
    %2135 = vadd.xlane.f32.xlu0 %v1347
    %v2136 = vpop.xlane.xlu0 %2135
    %2137 = vadd.xlane.f32.xlu0 %v1348
    %v2138 = vpop.xlane.xlu0 %2137
    %2139 = vadd.xlane.f32.xlu0 %v1349
    %v2140 = vpop.xlane.xlu0 %2139
    %2141 = vadd.xlane.f32.xlu0 %v1350
    %v2142 = vpop.xlane.xlu0 %2141
    %2143 = vadd.xlane.f32.xlu0 %v1351
    %v2144 = vpop.xlane.xlu0 %2143
    %2145 = vadd.xlane.f32.xlu0 %v1352
    %v2146 = vpop.xlane.xlu0 %2145
    %2147 = vadd.xlane.f32.xlu0 %v1353
    %v2148 = vpop.xlane.xlu0 %2147
    %2149 = vadd.xlane.f32.xlu0 %v1354
    %v2150 = vpop.xlane.xlu0 %2149
    %2151 = vadd.xlane.f32.xlu0 %v1355
    %v2152 = vpop.xlane.xlu0 %2151
    %2153 = vadd.xlane.f32.xlu0 %v1356
    %v2154 = vpop.xlane.xlu0 %2153
    %2155 = vadd.xlane.f32.xlu0 %v1357
    %v2156 = vpop.xlane.xlu0 %2155
    %2157 = vadd.xlane.f32.xlu0 %v1358
    %v2158 = vpop.xlane.xlu0 %2157
    %2159 = vadd.xlane.f32.xlu0 %v1359
    %v2160 = vpop.xlane.xlu0 %2159
    %2161 = vadd.xlane.f32.xlu0 %v1360
    %v2162 = vpop.xlane.xlu0 %2161
    %2163 = vadd.xlane.f32.xlu0 %v1361
    %v2164 = vpop.xlane.xlu0 %2163
    %2165 = vadd.xlane.f32.xlu0 %v1362
    %v2166 = vpop.xlane.xlu0 %2165
    %2167 = vadd.xlane.f32.xlu0 %v1363
    %v2168 = vpop.xlane.xlu0 %2167
    %2169 = vadd.xlane.f32.xlu0 %v1364
    %v2170 = vpop.xlane.xlu0 %2169
    %2171 = vadd.xlane.f32.xlu0 %v1365
    %v2172 = vpop.xlane.xlu0 %2171
    %2173 = vadd.xlane.f32.xlu0 %v1366
    %v2174 = vpop.xlane.xlu0 %2173
    %2175 = vadd.xlane.f32.xlu0 %v1367
    %v2176 = vpop.xlane.xlu0 %2175
    %2177 = vadd.xlane.f32.xlu0 %v1368
    %v2178 = vpop.xlane.xlu0 %2177
    %2179 = vadd.xlane.f32.xlu0 %v1369
    %v2180 = vpop.xlane.xlu0 %2179
    %2181 = vadd.xlane.f32.xlu0 %v1370
    %v2182 = vpop.xlane.xlu0 %2181
    %2183 = vadd.xlane.f32.xlu0 %v1371
    %v2184 = vpop.xlane.xlu0 %2183
    %2185 = vadd.xlane.f32.xlu0 %v1372
    %v2186 = vpop.xlane.xlu0 %2185
    %2187 = vadd.xlane.f32.xlu0 %v1373
    %v2188 = vpop.xlane.xlu0 %2187
    %2189 = vadd.xlane.f32.xlu0 %v1374
    %v2190 = vpop.xlane.xlu0 %2189
    %2191 = vadd.xlane.f32.xlu0 %v1375
    %v2192 = vpop.xlane.xlu0 %2191
    %2193 = vadd.xlane.f32.xlu0 %v1376
    %v2194 = vpop.xlane.xlu0 %2193
    %2195 = vadd.xlane.f32.xlu0 %v1377
    %v2196 = vpop.xlane.xlu0 %2195
    %2197 = vadd.xlane.f32.xlu0 %v1378
    %v2198 = vpop.xlane.xlu0 %2197
    %2199 = vadd.xlane.f32.xlu0 %v1379
    %v2200 = vpop.xlane.xlu0 %2199
    %2201 = vadd.xlane.f32.xlu0 %v1380
    %v2202 = vpop.xlane.xlu0 %2201
    %2203 = vadd.xlane.f32.xlu0 %v1381
    %v2204 = vpop.xlane.xlu0 %2203
    %2205 = vadd.xlane.f32.xlu0 %v1382
    %v2206 = vpop.xlane.xlu0 %2205
    %2207 = vadd.xlane.f32.xlu0 %v1383
    %v2208 = vpop.xlane.xlu0 %2207
    %2209 = vadd.xlane.f32.xlu0 %v1384
    %v2210 = vpop.xlane.xlu0 %2209
    %2211 = vadd.xlane.f32.xlu0 %v1385
    %v2212 = vpop.xlane.xlu0 %2211
    %2213 = vadd.xlane.f32.xlu0 %v1386
    %v2214 = vpop.xlane.xlu0 %2213
    %2215 = vadd.xlane.f32.xlu0 %v1387
    %v2216 = vpop.xlane.xlu0 %2215
    %2217 = vadd.xlane.f32.xlu0 %v1388
    %v2218 = vpop.xlane.xlu0 %2217
    %2219 = vadd.xlane.f32.xlu0 %v1389
    %v2220 = vpop.xlane.xlu0 %2219
    %2221 = vadd.xlane.f32.xlu0 %v1390
    %v2222 = vpop.xlane.xlu0 %2221
    %2223 = vadd.xlane.f32.xlu0 %v1391
    %v2224 = vpop.xlane.xlu0 %2223
    %2225 = vadd.xlane.f32.xlu0 %v1392
    %v2226 = vpop.xlane.xlu0 %2225
    %2227 = vadd.xlane.f32.xlu0 %v1393
    %v2228 = vpop.xlane.xlu0 %2227
    %2229 = vadd.xlane.f32.xlu0 %v1394
    %v2230 = vpop.xlane.xlu0 %2229
    %2231 = vadd.xlane.f32.xlu0 %v1395
    %v2232 = vpop.xlane.xlu0 %2231
    %2233 = vadd.xlane.f32.xlu0 %v1396
    %v2234 = vpop.xlane.xlu0 %2233
    %2235 = vadd.xlane.f32.xlu0 %v1397
    %v2236 = vpop.xlane.xlu0 %2235
    %2237 = vadd.xlane.f32.xlu0 %v1398
    %v2238 = vpop.xlane.xlu0 %2237
    %2239 = vadd.xlane.f32.xlu0 %v1399
    %v2240 = vpop.xlane.xlu0 %2239
    %2241 = vadd.xlane.f32.xlu0 %v1400
    %v2242 = vpop.xlane.xlu0 %2241
    %2243 = vadd.xlane.f32.xlu0 %v1401
    %v2244 = vpop.xlane.xlu0 %2243
    %2245 = vadd.xlane.f32.xlu0 %v1402
    %v2246 = vpop.xlane.xlu0 %2245
    %2247 = vadd.xlane.f32.xlu0 %v1403
    %v2248 = vpop.xlane.xlu0 %2247
    %2249 = vadd.xlane.f32.xlu0 %v1404
    %v2250 = vpop.xlane.xlu0 %2249
    %2251 = vadd.xlane.f32.xlu0 %v1405
    %v2252 = vpop.xlane.xlu0 %2251
    %2253 = vadd.xlane.f32.xlu0 %v1406
    %v2254 = vpop.xlane.xlu0 %2253
    %2255 = vadd.xlane.f32.xlu0 %v1407
    %v2256 = vpop.xlane.xlu0 %2255
    %2257 = vadd.xlane.f32.xlu0 %v1408
    %v2258 = vpop.xlane.xlu0 %2257
    %2259 = vadd.xlane.f32.xlu0 %v1409
    %v2260 = vpop.xlane.xlu0 %2259
    %2261 = vadd.xlane.f32.xlu0 %v1410
    %v2262 = vpop.xlane.xlu0 %2261
    %2263 = vadd.xlane.f32.xlu0 %v1411
    %v2264 = vpop.xlane.xlu0 %2263
    %2265 = vadd.xlane.f32.xlu0 %v1412
    %v2266 = vpop.xlane.xlu0 %2265
    %2267 = vadd.xlane.f32.xlu0 %v1413
    %v2268 = vpop.xlane.xlu0 %2267
    %2269 = vadd.xlane.f32.xlu0 %v1414
    %v2270 = vpop.xlane.xlu0 %2269
    %2271 = vadd.xlane.f32.xlu0 %v1415
    %v2272 = vpop.xlane.xlu0 %2271
    %2273 = vadd.xlane.f32.xlu0 %v1416
    %v2274 = vpop.xlane.xlu0 %2273
    %2275 = vadd.xlane.f32.xlu0 %v1417
    %v2276 = vpop.xlane.xlu0 %2275
    %2277 = vadd.xlane.f32.xlu0 %v1418
    %v2278 = vpop.xlane.xlu0 %2277
    %2279 = vadd.xlane.f32.xlu0 %v1419
    %v2280 = vpop.xlane.xlu0 %2279
    %2281 = vadd.xlane.f32.xlu0 %v1420
    %v2282 = vpop.xlane.xlu0 %2281
    %2283 = vadd.xlane.f32.xlu0 %v1421
    %v2284 = vpop.xlane.xlu0 %2283
    %2285 = vadd.xlane.f32.xlu0 %v1422
    %v2286 = vpop.xlane.xlu0 %2285
    %2287 = vadd.xlane.f32.xlu0 %v1423
    %v2288 = vpop.xlane.xlu0 %2287
    %2289 = vadd.xlane.f32.xlu0 %v1424
    %v2290 = vpop.xlane.xlu0 %2289
    %2291 = vadd.xlane.f32.xlu0 %v1425
    %v2292 = vpop.xlane.xlu0 %2291
    %2293 = vadd.xlane.f32.xlu0 %v1426
    %v2294 = vpop.xlane.xlu0 %2293
    %2295 = vadd.xlane.f32.xlu0 %v1427
    %v2296 = vpop.xlane.xlu0 %2295
    %2297 = vadd.xlane.f32.xlu0 %v1428
    %v2298 = vpop.xlane.xlu0 %2297
    %2299 = vadd.xlane.f32.xlu0 %v1429
    %v2300 = vpop.xlane.xlu0 %2299
    %2301 = vadd.xlane.f32.xlu0 %v1430
    %v2302 = vpop.xlane.xlu0 %2301
    %2303 = vadd.xlane.f32.xlu0 %v1431
    %v2304 = vpop.xlane.xlu0 %2303
    %2305 = vadd.xlane.f32.xlu0 %v1432
    %v2306 = vpop.xlane.xlu0 %2305
    %2307 = vadd.xlane.f32.xlu0 %v1433
    %v2308 = vpop.xlane.xlu0 %2307
    %2309 = vadd.xlane.f32.xlu0 %v1434
    %v2310 = vpop.xlane.xlu0 %2309
    %2311 = vadd.xlane.f32.xlu0 %v1435
    %v2312 = vpop.xlane.xlu0 %2311
    %2313 = vadd.xlane.f32.xlu0 %v1436
    %v2314 = vpop.xlane.xlu0 %2313
    %2315 = vadd.xlane.f32.xlu0 %v1437
    %v2316 = vpop.xlane.xlu0 %2315
    %2317 = vadd.xlane.f32.xlu0 %v1438
    %v2318 = vpop.xlane.xlu0 %2317
    %2319 = vadd.xlane.f32.xlu0 %v1439
    %v2320 = vpop.xlane.xlu0 %2319
    %2321 = vadd.xlane.f32.xlu0 %v1440
    %v2322 = vpop.xlane.xlu0 %2321
    %2323 = vadd.xlane.f32.xlu0 %v1441
    %v2324 = vpop.xlane.xlu0 %2323
    %2325 = vadd.xlane.f32.xlu0 %v1442
    %v2326 = vpop.xlane.xlu0 %2325
    %2327 = vadd.xlane.f32.xlu0 %v1443
    %v2328 = vpop.xlane.xlu0 %2327
    %2329 = vadd.xlane.f32.xlu0 %v1444
    %v2330 = vpop.xlane.xlu0 %2329
    %2331 = vadd.xlane.f32.xlu0 %v1445
    %v2332 = vpop.xlane.xlu0 %2331
    %2333 = vadd.xlane.f32.xlu0 %v1446
    %v2334 = vpop.xlane.xlu0 %2333
    %2335 = vadd.xlane.f32.xlu0 %v1447
    %v2336 = vpop.xlane.xlu0 %2335
    %2337 = vadd.xlane.f32.xlu0 %v1448
    %v2338 = vpop.xlane.xlu0 %2337
    %2339 = vadd.xlane.f32.xlu0 %v1449
    %v2340 = vpop.xlane.xlu0 %2339
    %2341 = vadd.xlane.f32.xlu0 %v1450
    %v2342 = vpop.xlane.xlu0 %2341
    %2343 = vadd.xlane.f32.xlu0 %v1451
    %v2344 = vpop.xlane.xlu0 %2343
    %2345 = vadd.xlane.f32.xlu0 %v1452
    %v2346 = vpop.xlane.xlu0 %2345
    %2347 = vadd.xlane.f32.xlu0 %v1453
    %v2348 = vpop.xlane.xlu0 %2347
    %2349 = vadd.xlane.f32.xlu0 %v1454
    %v2350 = vpop.xlane.xlu0 %2349
    %2351 = vadd.xlane.f32.xlu0 %v1455
    %v2352 = vpop.xlane.xlu0 %2351
    %2353 = vadd.xlane.f32.xlu0 %v1456
    %v2354 = vpop.xlane.xlu0 %2353
    %2355 = vadd.xlane.f32.xlu0 %v1457
    %v2356 = vpop.xlane.xlu0 %2355
    %2357 = vadd.xlane.f32.xlu0 %v1458
    %v2358 = vpop.xlane.xlu0 %2357
    %2359 = vadd.xlane.f32.xlu0 %v1459
    %v2360 = vpop.xlane.xlu0 %2359
    %2361 = vadd.xlane.f32.xlu0 %v1460
    %v2362 = vpop.xlane.xlu0 %2361
    %2363 = vadd.xlane.f32.xlu0 %v1461
    %v2364 = vpop.xlane.xlu0 %2363
    %2365 = vadd.xlane.f32.xlu0 %v1462
    %v2366 = vpop.xlane.xlu0 %2365
    %2367 = vadd.xlane.f32.xlu0 %v1463
    %v2368 = vpop.xlane.xlu0 %2367
    %2369 = vadd.xlane.f32.xlu0 %v1464
    %v2370 = vpop.xlane.xlu0 %2369
    %2371 = vadd.xlane.f32.xlu0 %v1465
    %v2372 = vpop.xlane.xlu0 %2371
    %2373 = vadd.xlane.f32.xlu0 %v1466
    %v2374 = vpop.xlane.xlu0 %2373
    %2375 = vadd.xlane.f32.xlu0 %v1467
    %v2376 = vpop.xlane.xlu0 %2375
    %2377 = vadd.xlane.f32.xlu0 %v1468
    %v2378 = vpop.xlane.xlu0 %2377
    %2379 = vadd.xlane.f32.xlu0 %v1469
    %v2380 = vpop.xlane.xlu0 %2379
    %2381 = vadd.xlane.f32.xlu0 %v1470
    %v2382 = vpop.xlane.xlu0 %2381
    %2383 = vadd.xlane.f32.xlu0 %v1471
    %v2384 = vpop.xlane.xlu0 %2383
    %2385 = vadd.xlane.f32.xlu0 %v1472
    %v2386 = vpop.xlane.xlu0 %2385
    %2387 = vadd.xlane.f32.xlu0 %v1473
    %v2388 = vpop.xlane.xlu0 %2387
    %2389 = vadd.xlane.f32.xlu0 %v1474
    %v2390 = vpop.xlane.xlu0 %2389
    %2391 = vadd.xlane.f32.xlu0 %v1475
    %v2392 = vpop.xlane.xlu0 %2391
    %2393 = vadd.xlane.f32.xlu0 %v1476
    %v2394 = vpop.xlane.xlu0 %2393
    %2395 = vadd.xlane.f32.xlu0 %v1477
    %v2396 = vpop.xlane.xlu0 %2395
    %2397 = vadd.xlane.f32.xlu0 %v1478
    %v2398 = vpop.xlane.xlu0 %2397
    %2399 = vadd.xlane.f32.xlu0 %v1479
    %v2400 = vpop.xlane.xlu0 %2399
    %2401 = vadd.xlane.f32.xlu0 %v1480
    %v2402 = vpop.xlane.xlu0 %2401
    %2403 = vadd.xlane.f32.xlu0 %v1481
    %v2404 = vpop.xlane.xlu0 %2403
    %2405 = vadd.xlane.f32.xlu0 %v1482
    %v2406 = vpop.xlane.xlu0 %2405
    %2407 = vadd.xlane.f32.xlu0 %v1483
    %v2408 = vpop.xlane.xlu0 %2407
    %2409 = vadd.xlane.f32.xlu0 %v1484
    %v2410 = vpop.xlane.xlu0 %2409
    %2411 = vadd.xlane.f32.xlu0 %v1485
    %v2412 = vpop.xlane.xlu0 %2411
    %2413 = vadd.xlane.f32.xlu0 %v1486
    %v2414 = vpop.xlane.xlu0 %2413
    %2415 = vadd.xlane.f32.xlu0 %v1487
    %v2416 = vpop.xlane.xlu0 %2415
    %2417 = vadd.xlane.f32.xlu0 %v1488
    %v2418 = vpop.xlane.xlu0 %2417
    %2419 = vadd.xlane.f32.xlu0 %v1489
    %v2420 = vpop.xlane.xlu0 %2419
    %2421 = vadd.xlane.f32.xlu0 %v1490
    %v2422 = vpop.xlane.xlu0 %2421
    %2423 = vadd.xlane.f32.xlu0 %v1491
    %v2424 = vpop.xlane.xlu0 %2423
    %2425 = vadd.xlane.f32.xlu0 %v1492
    %v2426 = vpop.xlane.xlu0 %2425
    %2427 = vadd.xlane.f32.xlu0 %v1493
    %v2428 = vpop.xlane.xlu0 %2427
    %2429 = vadd.xlane.f32.xlu0 %v1494
    %v2430 = vpop.xlane.xlu0 %2429
    %2431 = vadd.xlane.f32.xlu0 %v1495
    %v2432 = vpop.xlane.xlu0 %2431
    %2433 = vadd.xlane.f32.xlu0 %v1496
    %v2434 = vpop.xlane.xlu0 %2433
    %2435 = vadd.xlane.f32.xlu0 %v1497
    %v2436 = vpop.xlane.xlu0 %2435
    %2437 = vadd.xlane.f32.xlu0 %v1498
    %v2438 = vpop.xlane.xlu0 %2437
    %2439 = vadd.xlane.f32.xlu0 %v1499
    %v2440 = vpop.xlane.xlu0 %2439
    %2441 = vadd.xlane.f32.xlu0 %v1500
    %v2442 = vpop.xlane.xlu0 %2441
    %2443 = vadd.xlane.f32.xlu0 %v1501
    %v2444 = vpop.xlane.xlu0 %2443
    %2445 = vadd.xlane.f32.xlu0 %v1502
    %v2446 = vpop.xlane.xlu0 %2445
    %2447 = vadd.xlane.f32.xlu0 %v1503
    %v2448 = vpop.xlane.xlu0 %2447
    %2449 = vadd.xlane.f32.xlu0 %v1504
    %v2450 = vpop.xlane.xlu0 %2449
    %2451 = vadd.xlane.f32.xlu0 %v1505
    %v2452 = vpop.xlane.xlu0 %2451
    %2453 = vadd.xlane.f32.xlu0 %v1506
    %v2454 = vpop.xlane.xlu0 %2453
    %2455 = vadd.xlane.f32.xlu0 %v1507
    %v2456 = vpop.xlane.xlu0 %2455
    %2457 = vadd.xlane.f32.xlu0 %v1508
    %v2458 = vpop.xlane.xlu0 %2457
    %2459 = vadd.xlane.f32.xlu0 %v1509
    %v2460 = vpop.xlane.xlu0 %2459
    %2461 = vadd.xlane.f32.xlu0 %v1510
    %v2462 = vpop.xlane.xlu0 %2461
    %2463 = vadd.xlane.f32.xlu0 %v1511
    %v2464 = vpop.xlane.xlu0 %2463
    %2465 = vadd.xlane.f32.xlu0 %v1512
    %v2466 = vpop.xlane.xlu0 %2465
    %2467 = vadd.xlane.f32.xlu0 %v1513
    %v2468 = vpop.xlane.xlu0 %2467
    %2469 = vadd.xlane.f32.xlu0 %v1514
    %v2470 = vpop.xlane.xlu0 %2469
    %2471 = vadd.xlane.f32.xlu0 %v1515
    %v2472 = vpop.xlane.xlu0 %2471
    %2473 = vadd.xlane.f32.xlu0 %v1516
    %v2474 = vpop.xlane.xlu0 %2473
    %2475 = vadd.xlane.f32.xlu0 %v1517
    %v2476 = vpop.xlane.xlu0 %2475
    %2477 = vadd.xlane.f32.xlu0 %v1518
    %v2478 = vpop.xlane.xlu0 %2477
    %v2479 = vmul.f32 %v1520, 0.0078125
    %v2480 = vmul.f32 %v1522, 0.0078125
    %v2481 = vmul.f32 %v1524, 0.0078125
    %v2482 = vmul.f32 %v1526, 0.0078125
    %v2483 = vmul.f32 %v1528, 0.0078125
    %v2484 = vmul.f32 %v1530, 0.0078125
    %v2485 = vmul.f32 %v1532, 0.0078125
    %v2486 = vmul.f32 %v1534, 0.0078125
    %v2487 = vmul.f32 %v1536, 0.0078125
    %v2488 = vmul.f32 %v1538, 0.0078125
    %v2489 = vmul.f32 %v1540, 0.0078125
    %v2490 = vmul.f32 %v1542, 0.0078125
    %v2491 = vmul.f32 %v1544, 0.0078125
    %v2492 = vmul.f32 %v1546, 0.0078125
    %v2493 = vmul.f32 %v1548, 0.0078125
    %v2494 = vmul.f32 %v1550, 0.0078125
    %v2495 = vmul.f32 %v1552, 0.0078125
    %v2496 = vmul.f32 %v1554, 0.0078125
    %v2497 = vmul.f32 %v1556, 0.0078125
    %v2498 = vmul.f32 %v1558, 0.0078125
    %v2499 = vmul.f32 %v1560, 0.0078125
    %v2500 = vmul.f32 %v1562, 0.0078125
    %v2501 = vmul.f32 %v1564, 0.0078125
    %v2502 = vmul.f32 %v1566, 0.0078125
    %v2503 = vmul.f32 %v1568, 0.0078125
    %v2504 = vmul.f32 %v1570, 0.0078125
    %v2505 = vmul.f32 %v1572, 0.0078125
    %v2506 = vmul.f32 %v1574, 0.0078125
    %v2507 = vmul.f32 %v1576, 0.0078125
    %v2508 = vmul.f32 %v1578, 0.0078125
    %v2509 = vmul.f32 %v1580, 0.0078125
    %v2510 = vmul.f32 %v1582, 0.0078125
    %v2511 = vmul.f32 %v1584, 0.0078125
    %v2512 = vmul.f32 %v1586, 0.0078125
    %v2513 = vmul.f32 %v1588, 0.0078125
    %v2514 = vmul.f32 %v1590, 0.0078125
    %v2515 = vmul.f32 %v1592, 0.0078125
    %v2516 = vmul.f32 %v1594, 0.0078125
    %v2517 = vmul.f32 %v1596, 0.0078125
    %v2518 = vmul.f32 %v1598, 0.0078125
    %v2519 = vmul.f32 %v1600, 0.0078125
    %v2520 = vmul.f32 %v1602, 0.0078125
    %v2521 = vmul.f32 %v1604, 0.0078125
    %v2522 = vmul.f32 %v1606, 0.0078125
    %v2523 = vmul.f32 %v1608, 0.0078125
    %v2524 = vmul.f32 %v1610, 0.0078125
    %v2525 = vmul.f32 %v1612, 0.0078125
    %v2526 = vmul.f32 %v1614, 0.0078125
    %v2527 = vmul.f32 %v1616, 0.0078125
    %v2528 = vmul.f32 %v1618, 0.0078125
    %v2529 = vmul.f32 %v1620, 0.0078125
    %v2530 = vmul.f32 %v1622, 0.0078125
    %v2531 = vmul.f32 %v1624, 0.0078125
    %v2532 = vmul.f32 %v1626, 0.0078125
    %v2533 = vmul.f32 %v1628, 0.0078125
    %v2534 = vmul.f32 %v1630, 0.0078125
    %v2535 = vmul.f32 %v1632, 0.0078125
    %v2536 = vmul.f32 %v1634, 0.0078125
    %v2537 = vmul.f32 %v1636, 0.0078125
    %v2538 = vmul.f32 %v1638, 0.0078125
    %v2539 = vmul.f32 %v1640, 0.0078125
    %v2540 = vmul.f32 %v1642, 0.0078125
    %v2541 = vmul.f32 %v1644, 0.0078125
    %v2542 = vmul.f32 %v1646, 0.0078125
    %v2543 = vmul.f32 %v1648, 0.0078125
    %v2544 = vmul.f32 %v1650, 0.0078125
    %v2545 = vmul.f32 %v1652, 0.0078125
    %v2546 = vmul.f32 %v1654, 0.0078125
    %v2547 = vmul.f32 %v1656, 0.0078125
    %v2548 = vmul.f32 %v1658, 0.0078125
    %v2549 = vmul.f32 %v1660, 0.0078125
    %v2550 = vmul.f32 %v1662, 0.0078125
    %v2551 = vmul.f32 %v1664, 0.0078125
    %v2552 = vmul.f32 %v1666, 0.0078125
    %v2553 = vmul.f32 %v1668, 0.0078125
    %v2554 = vmul.f32 %v1670, 0.0078125
    %v2555 = vmul.f32 %v1672, 0.0078125
    %v2556 = vmul.f32 %v1674, 0.0078125
    %v2557 = vmul.f32 %v1676, 0.0078125
    %v2558 = vmul.f32 %v1678, 0.0078125
    %v2559 = vmul.f32 %v1680, 0.0078125
    %v2560 = vmul.f32 %v1682, 0.0078125
    %v2561 = vmul.f32 %v1684, 0.0078125
    %v2562 = vmul.f32 %v1686, 0.0078125
    %v2563 = vmul.f32 %v1688, 0.0078125
    %v2564 = vmul.f32 %v1690, 0.0078125
    %v2565 = vmul.f32 %v1692, 0.0078125
    %v2566 = vmul.f32 %v1694, 0.0078125
    %v2567 = vmul.f32 %v1696, 0.0078125
    %v2568 = vmul.f32 %v1698, 0.0078125
    %v2569 = vmul.f32 %v1700, 0.0078125
    %v2570 = vmul.f32 %v1702, 0.0078125
    %v2571 = vmul.f32 %v1704, 0.0078125
    %v2572 = vmul.f32 %v1706, 0.0078125
    %v2573 = vmul.f32 %v1708, 0.0078125
    %v2574 = vmul.f32 %v1710, 0.0078125
    %v2575 = vmul.f32 %v1712, 0.0078125
    %v2576 = vmul.f32 %v1714, 0.0078125
    %v2577 = vmul.f32 %v1716, 0.0078125
    %v2578 = vmul.f32 %v1718, 0.0078125
    %v2579 = vmul.f32 %v1720, 0.0078125
    %v2580 = vmul.f32 %v1722, 0.0078125
    %v2581 = vmul.f32 %v1724, 0.0078125
    %v2582 = vmul.f32 %v1726, 0.0078125
    %v2583 = vmul.f32 %v1728, 0.0078125
    %v2584 = vmul.f32 %v1730, 0.0078125
    %v2585 = vmul.f32 %v1732, 0.0078125
    %v2586 = vmul.f32 %v1734, 0.0078125
    %v2587 = vmul.f32 %v1736, 0.0078125
    %v2588 = vmul.f32 %v1738, 0.0078125
    %v2589 = vmul.f32 %v1740, 0.0078125
    %v2590 = vmul.f32 %v1742, 0.0078125
    %v2591 = vmul.f32 %v1744, 0.0078125
    %v2592 = vmul.f32 %v1746, 0.0078125
    %v2593 = vmul.f32 %v1748, 0.0078125
    %v2594 = vmul.f32 %v1750, 0.0078125
    %v2595 = vmul.f32 %v1752, 0.0078125
    %v2596 = vmul.f32 %v1754, 0.0078125
    %v2597 = vmul.f32 %v1756, 0.0078125
    %v2598 = vmul.f32 %v1758, 0.0078125
    %v2599 = vmul.f32 %v1760, 0.0078125
    %v2600 = vmul.f32 %v1762, 0.0078125
    %v2601 = vmul.f32 %v1764, 0.0078125
    %v2602 = vmul.f32 %v1766, 0.0078125
    %v2603 = vmul.f32 %v1768, 0.0078125
    %v2604 = vmul.f32 %v1770, 0.0078125
    %v2605 = vmul.f32 %v1772, 0.0078125
    %v2606 = vmul.f32 %v1774, 0.0078125
    %v2607 = vmul.f32 %v1776, 0.0078125
    %v2608 = vmul.f32 %v1778, 0.0078125
    %v2609 = vmul.f32 %v1780, 0.0078125
    %v2610 = vmul.f32 %v1782, 0.0078125
    %v2611 = vmul.f32 %v1784, 0.0078125
    %v2612 = vmul.f32 %v1786, 0.0078125
    %v2613 = vmul.f32 %v1788, 0.0078125
    %v2614 = vmul.f32 %v1790, 0.0078125
    %v2615 = vmul.f32 %v1792, 0.0078125
    %v2616 = vmul.f32 %v1794, 0.0078125
    %v2617 = vmul.f32 %v1796, 0.0078125
    %v2618 = vmul.f32 %v1798, 0.0078125
    %v2619 = vmul.f32 %v1800, 0.0078125
    %v2620 = vmul.f32 %v1802, 0.0078125
    %v2621 = vmul.f32 %v1804, 0.0078125
    %v2622 = vmul.f32 %v1806, 0.0078125
    %v2623 = vmul.f32 %v1808, 0.0078125
    %v2624 = vmul.f32 %v1810, 0.0078125
    %v2625 = vmul.f32 %v1812, 0.0078125
    %v2626 = vmul.f32 %v1814, 0.0078125
    %v2627 = vmul.f32 %v1816, 0.0078125
    %v2628 = vmul.f32 %v1818, 0.0078125
    %v2629 = vmul.f32 %v1820, 0.0078125
    %v2630 = vmul.f32 %v1822, 0.0078125
    %v2631 = vmul.f32 %v1824, 0.0078125
    %v2632 = vmul.f32 %v1826, 0.0078125
    %v2633 = vmul.f32 %v1828, 0.0078125
    %v2634 = vmul.f32 %v1830, 0.0078125
    %v2635 = vmul.f32 %v1832, 0.0078125
    %v2636 = vmul.f32 %v1834, 0.0078125
    %v2637 = vmul.f32 %v1836, 0.0078125
    %v2638 = vmul.f32 %v1838, 0.0078125
    %v2639 = vmul.f32 %v1840, 0.0078125
    %v2640 = vmul.f32 %v1842, 0.0078125
    %v2641 = vmul.f32 %v1844, 0.0078125
    %v2642 = vmul.f32 %v1846, 0.0078125
    %v2643 = vmul.f32 %v1848, 0.0078125
    %v2644 = vmul.f32 %v1850, 0.0078125
    %v2645 = vmul.f32 %v1852, 0.0078125
    %v2646 = vmul.f32 %v1854, 0.0078125
    %v2647 = vmul.f32 %v1856, 0.0078125
    %v2648 = vmul.f32 %v1858, 0.0078125
    %v2649 = vmul.f32 %v1860, 0.0078125
    %v2650 = vmul.f32 %v1862, 0.0078125
    %v2651 = vmul.f32 %v1864, 0.0078125
    %v2652 = vmul.f32 %v1866, 0.0078125
    %v2653 = vmul.f32 %v1868, 0.0078125
    %v2654 = vmul.f32 %v1870, 0.0078125
    %v2655 = vmul.f32 %v1872, 0.0078125
    %v2656 = vmul.f32 %v1874, 0.0078125
    %v2657 = vmul.f32 %v1876, 0.0078125
    %v2658 = vmul.f32 %v1878, 0.0078125
    %v2659 = vmul.f32 %v1880, 0.0078125
    %v2660 = vmul.f32 %v1882, 0.0078125
    %v2661 = vmul.f32 %v1884, 0.0078125
    %v2662 = vmul.f32 %v1886, 0.0078125
    %v2663 = vmul.f32 %v1888, 0.0078125
    %v2664 = vmul.f32 %v1890, 0.0078125
    %v2665 = vmul.f32 %v1892, 0.0078125
    %v2666 = vmul.f32 %v1894, 0.0078125
    %v2667 = vmul.f32 %v1896, 0.0078125
    %v2668 = vmul.f32 %v1898, 0.0078125
    %v2669 = vmul.f32 %v1900, 0.0078125
    %v2670 = vmul.f32 %v1902, 0.0078125
    %v2671 = vmul.f32 %v1904, 0.0078125
    %v2672 = vmul.f32 %v1906, 0.0078125
    %v2673 = vmul.f32 %v1908, 0.0078125
    %v2674 = vmul.f32 %v1910, 0.0078125
    %v2675 = vmul.f32 %v1912, 0.0078125
    %v2676 = vmul.f32 %v1914, 0.0078125
    %v2677 = vmul.f32 %v1916, 0.0078125
    %v2678 = vmul.f32 %v1918, 0.0078125
    %v2679 = vmul.f32 %v1920, 0.0078125
    %v2680 = vmul.f32 %v1922, 0.0078125
    %v2681 = vmul.f32 %v1924, 0.0078125
    %v2682 = vmul.f32 %v1926, 0.0078125
    %v2683 = vmul.f32 %v1928, 0.0078125
    %v2684 = vmul.f32 %v1930, 0.0078125
    %v2685 = vmul.f32 %v1932, 0.0078125
    %v2686 = vmul.f32 %v1934, 0.0078125
    %v2687 = vmul.f32 %v1936, 0.0078125
    %v2688 = vmul.f32 %v1938, 0.0078125
    %v2689 = vmul.f32 %v1940, 0.0078125
    %v2690 = vmul.f32 %v1942, 0.0078125
    %v2691 = vmul.f32 %v1944, 0.0078125
    %v2692 = vmul.f32 %v1946, 0.0078125
    %v2693 = vmul.f32 %v1948, 0.0078125
    %v2694 = vmul.f32 %v1950, 0.0078125
    %v2695 = vmul.f32 %v1952, 0.0078125
    %v2696 = vmul.f32 %v1954, 0.0078125
    %v2697 = vmul.f32 %v1956, 0.0078125
    %v2698 = vmul.f32 %v1958, 0.0078125
    %v2699 = vmul.f32 %v1960, 0.0078125
    %v2700 = vmul.f32 %v1962, 0.0078125
    %v2701 = vmul.f32 %v1964, 0.0078125
    %v2702 = vmul.f32 %v1966, 0.0078125
    %v2703 = vmul.f32 %v1968, 0.0078125
    %v2704 = vmul.f32 %v1970, 0.0078125
    %v2705 = vmul.f32 %v1972, 0.0078125
    %v2706 = vmul.f32 %v1974, 0.0078125
    %v2707 = vmul.f32 %v1976, 0.0078125
    %v2708 = vmul.f32 %v1978, 0.0078125
    %v2709 = vmul.f32 %v1980, 0.0078125
    %v2710 = vmul.f32 %v1982, 0.0078125
    %v2711 = vmul.f32 %v1984, 0.0078125
    %v2712 = vmul.f32 %v1986, 0.0078125
    %v2713 = vmul.f32 %v1988, 0.0078125
    %v2714 = vmul.f32 %v1990, 0.0078125
    %v2715 = vmul.f32 %v1992, 0.0078125
    %v2716 = vmul.f32 %v1994, 0.0078125
    %v2717 = vmul.f32 %v1996, 0.0078125
    %v2718 = vmul.f32 %v1998, 0.0078125
    %v2719 = vmul.f32 %v2000, 0.0078125
    %v2720 = vmul.f32 %v2002, 0.0078125
    %v2721 = vmul.f32 %v2004, 0.0078125
    %v2722 = vmul.f32 %v2006, 0.0078125
    %v2723 = vmul.f32 %v2008, 0.0078125
    %v2724 = vmul.f32 %v2010, 0.0078125
    %v2725 = vmul.f32 %v2012, 0.0078125
    %v2726 = vmul.f32 %v2014, 0.0078125
    %v2727 = vmul.f32 %v2016, 0.0078125
    %v2728 = vmul.f32 %v2018, 0.0078125
    %v2729 = vmul.f32 %v2020, 0.0078125
    %v2730 = vmul.f32 %v2022, 0.0078125
    %v2731 = vmul.f32 %v2024, 0.0078125
    %v2732 = vmul.f32 %v2026, 0.0078125
    %v2733 = vmul.f32 %v2028, 0.0078125
    %v2734 = vmul.f32 %v2030, 0.0078125
    %v2735 = vmul.f32 %v2032, 0.0078125
    %v2736 = vmul.f32 %v2034, 0.0078125
    %v2737 = vmul.f32 %v2036, 0.0078125
    %v2738 = vmul.f32 %v2038, 0.0078125
    %v2739 = vmul.f32 %v2040, 0.0078125
    %v2740 = vmul.f32 %v2042, 0.0078125
    %v2741 = vmul.f32 %v2044, 0.0078125
    %v2742 = vmul.f32 %v2046, 0.0078125
    %v2743 = vmul.f32 %v2048, 0.0078125
    %v2744 = vmul.f32 %v2050, 0.0078125
    %v2745 = vmul.f32 %v2052, 0.0078125
    %v2746 = vmul.f32 %v2054, 0.0078125
    %v2747 = vmul.f32 %v2056, 0.0078125
    %v2748 = vmul.f32 %v2058, 0.0078125
    %v2749 = vmul.f32 %v2060, 0.0078125
    %v2750 = vmul.f32 %v2062, 0.0078125
    %v2751 = vmul.f32 %v2064, 0.0078125
    %v2752 = vmul.f32 %v2066, 0.0078125
    %v2753 = vmul.f32 %v2068, 0.0078125
    %v2754 = vmul.f32 %v2070, 0.0078125
    %v2755 = vmul.f32 %v2072, 0.0078125
    %v2756 = vmul.f32 %v2074, 0.0078125
    %v2757 = vmul.f32 %v2076, 0.0078125
    %v2758 = vmul.f32 %v2078, 0.0078125
    %v2759 = vmul.f32 %v2080, 0.0078125
    %v2760 = vmul.f32 %v2082, 0.0078125
    %v2761 = vmul.f32 %v2084, 0.0078125
    %v2762 = vmul.f32 %v2086, 0.0078125
    %v2763 = vmul.f32 %v2088, 0.0078125
    %v2764 = vmul.f32 %v2090, 0.0078125
    %v2765 = vmul.f32 %v2092, 0.0078125
    %v2766 = vmul.f32 %v2094, 0.0078125
    %v2767 = vmul.f32 %v2096, 0.0078125
    %v2768 = vmul.f32 %v2098, 0.0078125
    %v2769 = vmul.f32 %v2100, 0.0078125
    %v2770 = vmul.f32 %v2102, 0.0078125
    %v2771 = vmul.f32 %v2104, 0.0078125
    %v2772 = vmul.f32 %v2106, 0.0078125
    %v2773 = vmul.f32 %v2108, 0.0078125
    %v2774 = vmul.f32 %v2110, 0.0078125
    %v2775 = vmul.f32 %v2112, 0.0078125
    %v2776 = vmul.f32 %v2114, 0.0078125
    %v2777 = vmul.f32 %v2116, 0.0078125
    %v2778 = vmul.f32 %v2118, 0.0078125
    %v2779 = vmul.f32 %v2120, 0.0078125
    %v2780 = vmul.f32 %v2122, 0.0078125
    %v2781 = vmul.f32 %v2124, 0.0078125
    %v2782 = vmul.f32 %v2126, 0.0078125
    %v2783 = vmul.f32 %v2128, 0.0078125
    %v2784 = vmul.f32 %v2130, 0.0078125
    %v2785 = vmul.f32 %v2132, 0.0078125
    %v2786 = vmul.f32 %v2134, 0.0078125
    %v2787 = vmul.f32 %v2136, 0.0078125
    %v2788 = vmul.f32 %v2138, 0.0078125
    %v2789 = vmul.f32 %v2140, 0.0078125
    %v2790 = vmul.f32 %v2142, 0.0078125
    %v2791 = vmul.f32 %v2144, 0.0078125
    %v2792 = vmul.f32 %v2146, 0.0078125
    %v2793 = vmul.f32 %v2148, 0.0078125
    %v2794 = vmul.f32 %v2150, 0.0078125
    %v2795 = vmul.f32 %v2152, 0.0078125
    %v2796 = vmul.f32 %v2154, 0.0078125
    %v2797 = vmul.f32 %v2156, 0.0078125
    %v2798 = vmul.f32 %v2158, 0.0078125
    %v2799 = vmul.f32 %v2160, 0.0078125
    %v2800 = vmul.f32 %v2162, 0.0078125
    %v2801 = vmul.f32 %v2164, 0.0078125
    %v2802 = vmul.f32 %v2166, 0.0078125
    %v2803 = vmul.f32 %v2168, 0.0078125
    %v2804 = vmul.f32 %v2170, 0.0078125
    %v2805 = vmul.f32 %v2172, 0.0078125
    %v2806 = vmul.f32 %v2174, 0.0078125
    %v2807 = vmul.f32 %v2176, 0.0078125
    %v2808 = vmul.f32 %v2178, 0.0078125
    %v2809 = vmul.f32 %v2180, 0.0078125
    %v2810 = vmul.f32 %v2182, 0.0078125
    %v2811 = vmul.f32 %v2184, 0.0078125
    %v2812 = vmul.f32 %v2186, 0.0078125
    %v2813 = vmul.f32 %v2188, 0.0078125
    %v2814 = vmul.f32 %v2190, 0.0078125
    %v2815 = vmul.f32 %v2192, 0.0078125
    %v2816 = vmul.f32 %v2194, 0.0078125
    %v2817 = vmul.f32 %v2196, 0.0078125
    %v2818 = vmul.f32 %v2198, 0.0078125
    %v2819 = vmul.f32 %v2200, 0.0078125
    %v2820 = vmul.f32 %v2202, 0.0078125
    %v2821 = vmul.f32 %v2204, 0.0078125
    %v2822 = vmul.f32 %v2206, 0.0078125
    %v2823 = vmul.f32 %v2208, 0.0078125
    %v2824 = vmul.f32 %v2210, 0.0078125
    %v2825 = vmul.f32 %v2212, 0.0078125
    %v2826 = vmul.f32 %v2214, 0.0078125
    %v2827 = vmul.f32 %v2216, 0.0078125
    %v2828 = vmul.f32 %v2218, 0.0078125
    %v2829 = vmul.f32 %v2220, 0.0078125
    %v2830 = vmul.f32 %v2222, 0.0078125
    %v2831 = vmul.f32 %v2224, 0.0078125
    %v2832 = vmul.f32 %v2226, 0.0078125
    %v2833 = vmul.f32 %v2228, 0.0078125
    %v2834 = vmul.f32 %v2230, 0.0078125
    %v2835 = vmul.f32 %v2232, 0.0078125
    %v2836 = vmul.f32 %v2234, 0.0078125
    %v2837 = vmul.f32 %v2236, 0.0078125
    %v2838 = vmul.f32 %v2238, 0.0078125
    %v2839 = vmul.f32 %v2240, 0.0078125
    %v2840 = vmul.f32 %v2242, 0.0078125
    %v2841 = vmul.f32 %v2244, 0.0078125
    %v2842 = vmul.f32 %v2246, 0.0078125
    %v2843 = vmul.f32 %v2248, 0.0078125
    %v2844 = vmul.f32 %v2250, 0.0078125
    %v2845 = vmul.f32 %v2252, 0.0078125
    %v2846 = vmul.f32 %v2254, 0.0078125
    %v2847 = vmul.f32 %v2256, 0.0078125
    %v2848 = vmul.f32 %v2258, 0.0078125
    %v2849 = vmul.f32 %v2260, 0.0078125
    %v2850 = vmul.f32 %v2262, 0.0078125
    %v2851 = vmul.f32 %v2264, 0.0078125
    %v2852 = vmul.f32 %v2266, 0.0078125
    %v2853 = vmul.f32 %v2268, 0.0078125
    %v2854 = vmul.f32 %v2270, 0.0078125
    %v2855 = vmul.f32 %v2272, 0.0078125
    %v2856 = vmul.f32 %v2274, 0.0078125
    %v2857 = vmul.f32 %v2276, 0.0078125
    %v2858 = vmul.f32 %v2278, 0.0078125
    %v2859 = vmul.f32 %v2280, 0.0078125
    %v2860 = vmul.f32 %v2282, 0.0078125
    %v2861 = vmul.f32 %v2284, 0.0078125
    %v2862 = vmul.f32 %v2286, 0.0078125
    %v2863 = vmul.f32 %v2288, 0.0078125
    %v2864 = vmul.f32 %v2290, 0.0078125
    %v2865 = vmul.f32 %v2292, 0.0078125
    %v2866 = vmul.f32 %v2294, 0.0078125
    %v2867 = vmul.f32 %v2296, 0.0078125
    %v2868 = vmul.f32 %v2298, 0.0078125
    %v2869 = vmul.f32 %v2300, 0.0078125
    %v2870 = vmul.f32 %v2302, 0.0078125
    %v2871 = vmul.f32 %v2304, 0.0078125
    %v2872 = vmul.f32 %v2306, 0.0078125
    %v2873 = vmul.f32 %v2308, 0.0078125
    %v2874 = vmul.f32 %v2310, 0.0078125
    %v2875 = vmul.f32 %v2312, 0.0078125
    %v2876 = vmul.f32 %v2314, 0.0078125
    %v2877 = vmul.f32 %v2316, 0.0078125
    %v2878 = vmul.f32 %v2318, 0.0078125
    %v2879 = vmul.f32 %v2320, 0.0078125
    %v2880 = vmul.f32 %v2322, 0.0078125
    %v2881 = vmul.f32 %v2324, 0.0078125
    %v2882 = vmul.f32 %v2326, 0.0078125
    %v2883 = vmul.f32 %v2328, 0.0078125
    %v2884 = vmul.f32 %v2330, 0.0078125
    %v2885 = vmul.f32 %v2332, 0.0078125
    %v2886 = vmul.f32 %v2334, 0.0078125
    %v2887 = vmul.f32 %v2336, 0.0078125
    %v2888 = vmul.f32 %v2338, 0.0078125
    %v2889 = vmul.f32 %v2340, 0.0078125
    %v2890 = vmul.f32 %v2342, 0.0078125
    %v2891 = vmul.f32 %v2344, 0.0078125
    %v2892 = vmul.f32 %v2346, 0.0078125
    %v2893 = vmul.f32 %v2348, 0.0078125
    %v2894 = vmul.f32 %v2350, 0.0078125
    %v2895 = vmul.f32 %v2352, 0.0078125
    %v2896 = vmul.f32 %v2354, 0.0078125
    %v2897 = vmul.f32 %v2356, 0.0078125
    %v2898 = vmul.f32 %v2358, 0.0078125
    %v2899 = vmul.f32 %v2360, 0.0078125
    %v2900 = vmul.f32 %v2362, 0.0078125
    %v2901 = vmul.f32 %v2364, 0.0078125
    %v2902 = vmul.f32 %v2366, 0.0078125
    %v2903 = vmul.f32 %v2368, 0.0078125
    %v2904 = vmul.f32 %v2370, 0.0078125
    %v2905 = vmul.f32 %v2372, 0.0078125
    %v2906 = vmul.f32 %v2374, 0.0078125
    %v2907 = vmul.f32 %v2376, 0.0078125
    %v2908 = vmul.f32 %v2378, 0.0078125
    %v2909 = vmul.f32 %v2380, 0.0078125
    %v2910 = vmul.f32 %v2382, 0.0078125
    %v2911 = vmul.f32 %v2384, 0.0078125
    %v2912 = vmul.f32 %v2386, 0.0078125
    %v2913 = vmul.f32 %v2388, 0.0078125
    %v2914 = vmul.f32 %v2390, 0.0078125
    %v2915 = vmul.f32 %v2392, 0.0078125
    %v2916 = vmul.f32 %v2394, 0.0078125
    %v2917 = vmul.f32 %v2396, 0.0078125
    %v2918 = vmul.f32 %v2398, 0.0078125
    %v2919 = vmul.f32 %v2400, 0.0078125
    %v2920 = vmul.f32 %v2402, 0.0078125
    %v2921 = vmul.f32 %v2404, 0.0078125
    %v2922 = vmul.f32 %v2406, 0.0078125
    %v2923 = vmul.f32 %v2408, 0.0078125
    %v2924 = vmul.f32 %v2410, 0.0078125
    %v2925 = vmul.f32 %v2412, 0.0078125
    %v2926 = vmul.f32 %v2414, 0.0078125
    %v2927 = vmul.f32 %v2416, 0.0078125
    %v2928 = vmul.f32 %v2418, 0.0078125
    %v2929 = vmul.f32 %v2420, 0.0078125
    %v2930 = vmul.f32 %v2422, 0.0078125
    %v2931 = vmul.f32 %v2424, 0.0078125
    %v2932 = vmul.f32 %v2426, 0.0078125
    %v2933 = vmul.f32 %v2428, 0.0078125
    %v2934 = vmul.f32 %v2430, 0.0078125
    %v2935 = vmul.f32 %v2432, 0.0078125
    %v2936 = vmul.f32 %v2434, 0.0078125
    %v2937 = vmul.f32 %v2436, 0.0078125
    %v2938 = vmul.f32 %v2438, 0.0078125
    %v2939 = vmul.f32 %v2440, 0.0078125
    %v2940 = vmul.f32 %v2442, 0.0078125
    %v2941 = vmul.f32 %v2444, 0.0078125
    %v2942 = vmul.f32 %v2446, 0.0078125
    %v2943 = vmul.f32 %v2448, 0.0078125
    %v2944 = vmul.f32 %v2450, 0.0078125
    %v2945 = vmul.f32 %v2452, 0.0078125
    %v2946 = vmul.f32 %v2454, 0.0078125
    %v2947 = vmul.f32 %v2456, 0.0078125
    %v2948 = vmul.f32 %v2458, 0.0078125
    %v2949 = vmul.f32 %v2460, 0.0078125
    %v2950 = vmul.f32 %v2462, 0.0078125
    %v2951 = vmul.f32 %v2464, 0.0078125
    %v2952 = vmul.f32 %v2466, 0.0078125
    %v2953 = vmul.f32 %v2468, 0.0078125
    %v2954 = vmul.f32 %v2470, 0.0078125
    %v2955 = vmul.f32 %v2472, 0.0078125
    %v2956 = vmul.f32 %v2474, 0.0078125
    %v2957 = vmul.f32 %v2476, 0.0078125
    %v2958 = vmul.f32 %v2478, 0.0078125
    %v2959 = vstv %s77
    %v2960 = vpow.f32 %v2479, %v2959
    %v2961 = vpow.f32 %v2480, %v2959
    %v2962 = vpow.f32 %v2481, %v2959
    %v2963 = vpow.f32 %v2482, %v2959
    %v2964 = vpow.f32 %v2483, %v2959
    %v2965 = vpow.f32 %v2484, %v2959
    %v2966 = vpow.f32 %v2485, %v2959
    %v2967 = vpow.f32 %v2486, %v2959
    %v2968 = vpow.f32 %v2487, %v2959
    %v2969 = vpow.f32 %v2488, %v2959
    %v2970 = vpow.f32 %v2489, %v2959
    %v2971 = vpow.f32 %v2490, %v2959
    %v2972 = vpow.f32 %v2491, %v2959
    %v2973 = vpow.f32 %v2492, %v2959
    %v2974 = vpow.f32 %v2493, %v2959
    %v2975 = vpow.f32 %v2494, %v2959
    %v2976 = vpow.f32 %v2495, %v2959
    %v2977 = vpow.f32 %v2496, %v2959
    %v2978 = vpow.f32 %v2497, %v2959
    %v2979 = vpow.f32 %v2498, %v2959
    %v2980 = vpow.f32 %v2499, %v2959
    %v2981 = vpow.f32 %v2500, %v2959
    %v2982 = vpow.f32 %v2501, %v2959
    %v2983 = vpow.f32 %v2502, %v2959
    %v2984 = vpow.f32 %v2503, %v2959
    %v2985 = vpow.f32 %v2504, %v2959
    %v2986 = vpow.f32 %v2505, %v2959
    %v2987 = vpow.f32 %v2506, %v2959
    %v2988 = vpow.f32 %v2507, %v2959
    %v2989 = vpow.f32 %v2508, %v2959
    %v2990 = vpow.f32 %v2509, %v2959
    %v2991 = vpow.f32 %v2510, %v2959
    %v2992 = vpow.f32 %v2511, %v2959
    %v2993 = vpow.f32 %v2512, %v2959
    %v2994 = vpow.f32 %v2513, %v2959
    %v2995 = vpow.f32 %v2514, %v2959
    %v2996 = vpow.f32 %v2515, %v2959
    %v2997 = vpow.f32 %v2516, %v2959
    %v2998 = vpow.f32 %v2517, %v2959
    %v2999 = vpow.f32 %v2518, %v2959
    %v3000 = vpow.f32 %v2519, %v2959
    %v3001 = vpow.f32 %v2520, %v2959
    %v3002 = vpow.f32 %v2521, %v2959
    %v3003 = vpow.f32 %v2522, %v2959
    %v3004 = vpow.f32 %v2523, %v2959
    %v3005 = vpow.f32 %v2524, %v2959
    %v3006 = vpow.f32 %v2525, %v2959
    %v3007 = vpow.f32 %v2526, %v2959
    %v3008 = vpow.f32 %v2527, %v2959
    %v3009 = vpow.f32 %v2528, %v2959
    %v3010 = vpow.f32 %v2529, %v2959
    %v3011 = vpow.f32 %v2530, %v2959
    %v3012 = vpow.f32 %v2531, %v2959
    %v3013 = vpow.f32 %v2532, %v2959
    %v3014 = vpow.f32 %v2533, %v2959
    %v3015 = vpow.f32 %v2534, %v2959
    %v3016 = vpow.f32 %v2535, %v2959
    %v3017 = vpow.f32 %v2536, %v2959
    %v3018 = vpow.f32 %v2537, %v2959
    %v3019 = vpow.f32 %v2538, %v2959
    %v3020 = vpow.f32 %v2539, %v2959
    %v3021 = vpow.f32 %v2540, %v2959
    %v3022 = vpow.f32 %v2541, %v2959
    %v3023 = vpow.f32 %v2542, %v2959
    %v3024 = vpow.f32 %v2543, %v2959
    %v3025 = vpow.f32 %v2544, %v2959
    %v3026 = vpow.f32 %v2545, %v2959
    %v3027 = vpow.f32 %v2546, %v2959
    %v3028 = vpow.f32 %v2547, %v2959
    %v3029 = vpow.f32 %v2548, %v2959
    %v3030 = vpow.f32 %v2549, %v2959
    %v3031 = vpow.f32 %v2550, %v2959
    %v3032 = vpow.f32 %v2551, %v2959
    %v3033 = vpow.f32 %v2552, %v2959
    %v3034 = vpow.f32 %v2553, %v2959
    %v3035 = vpow.f32 %v2554, %v2959
    %v3036 = vpow.f32 %v2555, %v2959
    %v3037 = vpow.f32 %v2556, %v2959
    %v3038 = vpow.f32 %v2557, %v2959
    %v3039 = vpow.f32 %v2558, %v2959
    %v3040 = vpow.f32 %v2559, %v2959
    %v3041 = vpow.f32 %v2560, %v2959
    %v3042 = vpow.f32 %v2561, %v2959
    %v3043 = vpow.f32 %v2562, %v2959
    %v3044 = vpow.f32 %v2563, %v2959
    %v3045 = vpow.f32 %v2564, %v2959
    %v3046 = vpow.f32 %v2565, %v2959
    %v3047 = vpow.f32 %v2566, %v2959
    %v3048 = vpow.f32 %v2567, %v2959
    %v3049 = vpow.f32 %v2568, %v2959
    %v3050 = vpow.f32 %v2569, %v2959
    %v3051 = vpow.f32 %v2570, %v2959
    %v3052 = vpow.f32 %v2571, %v2959
    %v3053 = vpow.f32 %v2572, %v2959
    %v3054 = vpow.f32 %v2573, %v2959
    %v3055 = vpow.f32 %v2574, %v2959
    %v3056 = vpow.f32 %v2575, %v2959
    %v3057 = vpow.f32 %v2576, %v2959
    %v3058 = vpow.f32 %v2577, %v2959
    %v3059 = vpow.f32 %v2578, %v2959
    %v3060 = vpow.f32 %v2579, %v2959
    %v3061 = vpow.f32 %v2580, %v2959
    %v3062 = vpow.f32 %v2581, %v2959
    %v3063 = vpow.f32 %v2582, %v2959
    %v3064 = vpow.f32 %v2583, %v2959
    %v3065 = vpow.f32 %v2584, %v2959
    %v3066 = vpow.f32 %v2585, %v2959
    %v3067 = vpow.f32 %v2586, %v2959
    %v3068 = vpow.f32 %v2587, %v2959
    %v3069 = vpow.f32 %v2588, %v2959
    %v3070 = vpow.f32 %v2589, %v2959
    %v3071 = vpow.f32 %v2590, %v2959
    %v3072 = vpow.f32 %v2591, %v2959
    %v3073 = vpow.f32 %v2592, %v2959
    %v3074 = vpow.f32 %v2593, %v2959
    %v3075 = vpow.f32 %v2594, %v2959
    %v3076 = vpow.f32 %v2595, %v2959
    %v3077 = vpow.f32 %v2596, %v2959
    %v3078 = vpow.f32 %v2597, %v2959
    %v3079 = vpow.f32 %v2598, %v2959
    %v3080 = vpow.f32 %v2599, %v2959
    %v3081 = vpow.f32 %v2600, %v2959
    %v3082 = vpow.f32 %v2601, %v2959
    %v3083 = vpow.f32 %v2602, %v2959
    %v3084 = vpow.f32 %v2603, %v2959
    %v3085 = vpow.f32 %v2604, %v2959
    %v3086 = vpow.f32 %v2605, %v2959
    %v3087 = vpow.f32 %v2606, %v2959
    %v3088 = vpow.f32 %v2607, %v2959
    %v3089 = vpow.f32 %v2608, %v2959
    %v3090 = vpow.f32 %v2609, %v2959
    %v3091 = vpow.f32 %v2610, %v2959
    %v3092 = vpow.f32 %v2611, %v2959
    %v3093 = vpow.f32 %v2612, %v2959
    %v3094 = vpow.f32 %v2613, %v2959
    %v3095 = vpow.f32 %v2614, %v2959
    %v3096 = vpow.f32 %v2615, %v2959
    %v3097 = vpow.f32 %v2616, %v2959
    %v3098 = vpow.f32 %v2617, %v2959
    %v3099 = vpow.f32 %v2618, %v2959
    %v3100 = vpow.f32 %v2619, %v2959
    %v3101 = vpow.f32 %v2620, %v2959
    %v3102 = vpow.f32 %v2621, %v2959
    %v3103 = vpow.f32 %v2622, %v2959
    %v3104 = vpow.f32 %v2623, %v2959
    %v3105 = vpow.f32 %v2624, %v2959
    %v3106 = vpow.f32 %v2625, %v2959
    %v3107 = vpow.f32 %v2626, %v2959
    %v3108 = vpow.f32 %v2627, %v2959
    %v3109 = vpow.f32 %v2628, %v2959
    %v3110 = vpow.f32 %v2629, %v2959
    %v3111 = vpow.f32 %v2630, %v2959
    %v3112 = vpow.f32 %v2631, %v2959
    %v3113 = vpow.f32 %v2632, %v2959
    %v3114 = vpow.f32 %v2633, %v2959
    %v3115 = vpow.f32 %v2634, %v2959
    %v3116 = vpow.f32 %v2635, %v2959
    %v3117 = vpow.f32 %v2636, %v2959
    %v3118 = vpow.f32 %v2637, %v2959
    %v3119 = vpow.f32 %v2638, %v2959
    %v3120 = vpow.f32 %v2639, %v2959
    %v3121 = vpow.f32 %v2640, %v2959
    %v3122 = vpow.f32 %v2641, %v2959
    %v3123 = vpow.f32 %v2642, %v2959
    %v3124 = vpow.f32 %v2643, %v2959
    %v3125 = vpow.f32 %v2644, %v2959
    %v3126 = vpow.f32 %v2645, %v2959
    %v3127 = vpow.f32 %v2646, %v2959
    %v3128 = vpow.f32 %v2647, %v2959
    %v3129 = vpow.f32 %v2648, %v2959
    %v3130 = vpow.f32 %v2649, %v2959
    %v3131 = vpow.f32 %v2650, %v2959
    %v3132 = vpow.f32 %v2651, %v2959
    %v3133 = vpow.f32 %v2652, %v2959
    %v3134 = vpow.f32 %v2653, %v2959
    %v3135 = vpow.f32 %v2654, %v2959
    %v3136 = vpow.f32 %v2655, %v2959
    %v3137 = vpow.f32 %v2656, %v2959
    %v3138 = vpow.f32 %v2657, %v2959
    %v3139 = vpow.f32 %v2658, %v2959
    %v3140 = vpow.f32 %v2659, %v2959
    %v3141 = vpow.f32 %v2660, %v2959
    %v3142 = vpow.f32 %v2661, %v2959
    %v3143 = vpow.f32 %v2662, %v2959
    %v3144 = vpow.f32 %v2663, %v2959
    %v3145 = vpow.f32 %v2664, %v2959
    %v3146 = vpow.f32 %v2665, %v2959
    %v3147 = vpow.f32 %v2666, %v2959
    %v3148 = vpow.f32 %v2667, %v2959
    %v3149 = vpow.f32 %v2668, %v2959
    %v3150 = vpow.f32 %v2669, %v2959
    %v3151 = vpow.f32 %v2670, %v2959
    %v3152 = vpow.f32 %v2671, %v2959
    %v3153 = vpow.f32 %v2672, %v2959
    %v3154 = vpow.f32 %v2673, %v2959
    %v3155 = vpow.f32 %v2674, %v2959
    %v3156 = vpow.f32 %v2675, %v2959
    %v3157 = vpow.f32 %v2676, %v2959
    %v3158 = vpow.f32 %v2677, %v2959
    %v3159 = vpow.f32 %v2678, %v2959
    %v3160 = vpow.f32 %v2679, %v2959
    %v3161 = vpow.f32 %v2680, %v2959
    %v3162 = vpow.f32 %v2681, %v2959
    %v3163 = vpow.f32 %v2682, %v2959
    %v3164 = vpow.f32 %v2683, %v2959
    %v3165 = vpow.f32 %v2684, %v2959
    %v3166 = vpow.f32 %v2685, %v2959
    %v3167 = vpow.f32 %v2686, %v2959
    %v3168 = vpow.f32 %v2687, %v2959
    %v3169 = vpow.f32 %v2688, %v2959
    %v3170 = vpow.f32 %v2689, %v2959
    %v3171 = vpow.f32 %v2690, %v2959
    %v3172 = vpow.f32 %v2691, %v2959
    %v3173 = vpow.f32 %v2692, %v2959
    %v3174 = vpow.f32 %v2693, %v2959
    %v3175 = vpow.f32 %v2694, %v2959
    %v3176 = vpow.f32 %v2695, %v2959
    %v3177 = vpow.f32 %v2696, %v2959
    %v3178 = vpow.f32 %v2697, %v2959
    %v3179 = vpow.f32 %v2698, %v2959
    %v3180 = vpow.f32 %v2699, %v2959
    %v3181 = vpow.f32 %v2700, %v2959
    %v3182 = vpow.f32 %v2701, %v2959
    %v3183 = vpow.f32 %v2702, %v2959
    %v3184 = vpow.f32 %v2703, %v2959
    %v3185 = vpow.f32 %v2704, %v2959
    %v3186 = vpow.f32 %v2705, %v2959
    %v3187 = vpow.f32 %v2706, %v2959
    %v3188 = vpow.f32 %v2707, %v2959
    %v3189 = vpow.f32 %v2708, %v2959
    %v3190 = vpow.f32 %v2709, %v2959
    %v3191 = vpow.f32 %v2710, %v2959
    %v3192 = vpow.f32 %v2711, %v2959
    %v3193 = vpow.f32 %v2712, %v2959
    %v3194 = vpow.f32 %v2713, %v2959
    %v3195 = vpow.f32 %v2714, %v2959
    %v3196 = vpow.f32 %v2715, %v2959
    %v3197 = vpow.f32 %v2716, %v2959
    %v3198 = vpow.f32 %v2717, %v2959
    %v3199 = vpow.f32 %v2718, %v2959
    %v3200 = vpow.f32 %v2719, %v2959
    %v3201 = vpow.f32 %v2720, %v2959
    %v3202 = vpow.f32 %v2721, %v2959
    %v3203 = vpow.f32 %v2722, %v2959
    %v3204 = vpow.f32 %v2723, %v2959
    %v3205 = vpow.f32 %v2724, %v2959
    %v3206 = vpow.f32 %v2725, %v2959
    %v3207 = vpow.f32 %v2726, %v2959
    %v3208 = vpow.f32 %v2727, %v2959
    %v3209 = vpow.f32 %v2728, %v2959
    %v3210 = vpow.f32 %v2729, %v2959
    %v3211 = vpow.f32 %v2730, %v2959
    %v3212 = vpow.f32 %v2731, %v2959
    %v3213 = vpow.f32 %v2732, %v2959
    %v3214 = vpow.f32 %v2733, %v2959
    %v3215 = vpow.f32 %v2734, %v2959
    %v3216 = vpow.f32 %v2735, %v2959
    %v3217 = vpow.f32 %v2736, %v2959
    %v3218 = vpow.f32 %v2737, %v2959
    %v3219 = vpow.f32 %v2738, %v2959
    %v3220 = vpow.f32 %v2739, %v2959
    %v3221 = vpow.f32 %v2740, %v2959
    %v3222 = vpow.f32 %v2741, %v2959
    %v3223 = vpow.f32 %v2742, %v2959
    %v3224 = vpow.f32 %v2743, %v2959
    %v3225 = vpow.f32 %v2744, %v2959
    %v3226 = vpow.f32 %v2745, %v2959
    %v3227 = vpow.f32 %v2746, %v2959
    %v3228 = vpow.f32 %v2747, %v2959
    %v3229 = vpow.f32 %v2748, %v2959
    %v3230 = vpow.f32 %v2749, %v2959
    %v3231 = vpow.f32 %v2750, %v2959
    %v3232 = vpow.f32 %v2751, %v2959
    %v3233 = vpow.f32 %v2752, %v2959
    %v3234 = vpow.f32 %v2753, %v2959
    %v3235 = vpow.f32 %v2754, %v2959
    %v3236 = vpow.f32 %v2755, %v2959
    %v3237 = vpow.f32 %v2756, %v2959
    %v3238 = vpow.f32 %v2757, %v2959
    %v3239 = vpow.f32 %v2758, %v2959
    %v3240 = vpow.f32 %v2759, %v2959
    %v3241 = vpow.f32 %v2760, %v2959
    %v3242 = vpow.f32 %v2761, %v2959
    %v3243 = vpow.f32 %v2762, %v2959
    %v3244 = vpow.f32 %v2763, %v2959
    %v3245 = vpow.f32 %v2764, %v2959
    %v3246 = vpow.f32 %v2765, %v2959
    %v3247 = vpow.f32 %v2766, %v2959
    %v3248 = vpow.f32 %v2767, %v2959
    %v3249 = vpow.f32 %v2768, %v2959
    %v3250 = vpow.f32 %v2769, %v2959
    %v3251 = vpow.f32 %v2770, %v2959
    %v3252 = vpow.f32 %v2771, %v2959
    %v3253 = vpow.f32 %v2772, %v2959
    %v3254 = vpow.f32 %v2773, %v2959
    %v3255 = vpow.f32 %v2774, %v2959
    %v3256 = vpow.f32 %v2775, %v2959
    %v3257 = vpow.f32 %v2776, %v2959
    %v3258 = vpow.f32 %v2777, %v2959
    %v3259 = vpow.f32 %v2778, %v2959
    %v3260 = vpow.f32 %v2779, %v2959
    %v3261 = vpow.f32 %v2780, %v2959
    %v3262 = vpow.f32 %v2781, %v2959
    %v3263 = vpow.f32 %v2782, %v2959
    %v3264 = vpow.f32 %v2783, %v2959
    %v3265 = vpow.f32 %v2784, %v2959
    %v3266 = vpow.f32 %v2785, %v2959
    %v3267 = vpow.f32 %v2786, %v2959
    %v3268 = vpow.f32 %v2787, %v2959
    %v3269 = vpow.f32 %v2788, %v2959
    %v3270 = vpow.f32 %v2789, %v2959
    %v3271 = vpow.f32 %v2790, %v2959
    %v3272 = vpow.f32 %v2791, %v2959
    %v3273 = vpow.f32 %v2792, %v2959
    %v3274 = vpow.f32 %v2793, %v2959
    %v3275 = vpow.f32 %v2794, %v2959
    %v3276 = vpow.f32 %v2795, %v2959
    %v3277 = vpow.f32 %v2796, %v2959
    %v3278 = vpow.f32 %v2797, %v2959
    %v3279 = vpow.f32 %v2798, %v2959
    %v3280 = vpow.f32 %v2799, %v2959
    %v3281 = vpow.f32 %v2800, %v2959
    %v3282 = vpow.f32 %v2801, %v2959
    %v3283 = vpow.f32 %v2802, %v2959
    %v3284 = vpow.f32 %v2803, %v2959
    %v3285 = vpow.f32 %v2804, %v2959
    %v3286 = vpow.f32 %v2805, %v2959
    %v3287 = vpow.f32 %v2806, %v2959
    %v3288 = vpow.f32 %v2807, %v2959
    %v3289 = vpow.f32 %v2808, %v2959
    %v3290 = vpow.f32 %v2809, %v2959
    %v3291 = vpow.f32 %v2810, %v2959
    %v3292 = vpow.f32 %v2811, %v2959
    %v3293 = vpow.f32 %v2812, %v2959
    %v3294 = vpow.f32 %v2813, %v2959
    %v3295 = vpow.f32 %v2814, %v2959
    %v3296 = vpow.f32 %v2815, %v2959
    %v3297 = vpow.f32 %v2816, %v2959
    %v3298 = vpow.f32 %v2817, %v2959
    %v3299 = vpow.f32 %v2818, %v2959
    %v3300 = vpow.f32 %v2819, %v2959
    %v3301 = vpow.f32 %v2820, %v2959
    %v3302 = vpow.f32 %v2821, %v2959
    %v3303 = vpow.f32 %v2822, %v2959
    %v3304 = vpow.f32 %v2823, %v2959
    %v3305 = vpow.f32 %v2824, %v2959
    %v3306 = vpow.f32 %v2825, %v2959
    %v3307 = vpow.f32 %v2826, %v2959
    %v3308 = vpow.f32 %v2827, %v2959
    %v3309 = vpow.f32 %v2828, %v2959
    %v3310 = vpow.f32 %v2829, %v2959
    %v3311 = vpow.f32 %v2830, %v2959
    %v3312 = vpow.f32 %v2831, %v2959
    %v3313 = vpow.f32 %v2832, %v2959
    %v3314 = vpow.f32 %v2833, %v2959
    %v3315 = vpow.f32 %v2834, %v2959
    %v3316 = vpow.f32 %v2835, %v2959
    %v3317 = vpow.f32 %v2836, %v2959
    %v3318 = vpow.f32 %v2837, %v2959
    %v3319 = vpow.f32 %v2838, %v2959
    %v3320 = vpow.f32 %v2839, %v2959
    %v3321 = vpow.f32 %v2840, %v2959
    %v3322 = vpow.f32 %v2841, %v2959
    %v3323 = vpow.f32 %v2842, %v2959
    %v3324 = vpow.f32 %v2843, %v2959
    %v3325 = vpow.f32 %v2844, %v2959
    %v3326 = vpow.f32 %v2845, %v2959
    %v3327 = vpow.f32 %v2846, %v2959
    %v3328 = vpow.f32 %v2847, %v2959
    %v3329 = vpow.f32 %v2848, %v2959
    %v3330 = vpow.f32 %v2849, %v2959
    %v3331 = vpow.f32 %v2850, %v2959
    %v3332 = vpow.f32 %v2851, %v2959
    %v3333 = vpow.f32 %v2852, %v2959
    %v3334 = vpow.f32 %v2853, %v2959
    %v3335 = vpow.f32 %v2854, %v2959
    %v3336 = vpow.f32 %v2855, %v2959
    %v3337 = vpow.f32 %v2856, %v2959
    %v3338 = vpow.f32 %v2857, %v2959
    %v3339 = vpow.f32 %v2858, %v2959
    %v3340 = vpow.f32 %v2859, %v2959
    %v3341 = vpow.f32 %v2860, %v2959
    %v3342 = vpow.f32 %v2861, %v2959
    %v3343 = vpow.f32 %v2862, %v2959
    %v3344 = vpow.f32 %v2863, %v2959
    %v3345 = vpow.f32 %v2864, %v2959
    %v3346 = vpow.f32 %v2865, %v2959
    %v3347 = vpow.f32 %v2866, %v2959
    %v3348 = vpow.f32 %v2867, %v2959
    %v3349 = vpow.f32 %v2868, %v2959
    %v3350 = vpow.f32 %v2869, %v2959
    %v3351 = vpow.f32 %v2870, %v2959
    %v3352 = vpow.f32 %v2871, %v2959
    %v3353 = vpow.f32 %v2872, %v2959
    %v3354 = vpow.f32 %v2873, %v2959
    %v3355 = vpow.f32 %v2874, %v2959
    %v3356 = vpow.f32 %v2875, %v2959
    %v3357 = vpow.f32 %v2876, %v2959
    %v3358 = vpow.f32 %v2877, %v2959
    %v3359 = vpow.f32 %v2878, %v2959
    %v3360 = vpow.f32 %v2879, %v2959
    %v3361 = vpow.f32 %v2880, %v2959
    %v3362 = vpow.f32 %v2881, %v2959
    %v3363 = vpow.f32 %v2882, %v2959
    %v3364 = vpow.f32 %v2883, %v2959
    %v3365 = vpow.f32 %v2884, %v2959
    %v3366 = vpow.f32 %v2885, %v2959
    %v3367 = vpow.f32 %v2886, %v2959
    %v3368 = vpow.f32 %v2887, %v2959
    %v3369 = vpow.f32 %v2888, %v2959
    %v3370 = vpow.f32 %v2889, %v2959
    %v3371 = vpow.f32 %v2890, %v2959
    %v3372 = vpow.f32 %v2891, %v2959
    %v3373 = vpow.f32 %v2892, %v2959
    %v3374 = vpow.f32 %v2893, %v2959
    %v3375 = vpow.f32 %v2894, %v2959
    %v3376 = vpow.f32 %v2895, %v2959
    %v3377 = vpow.f32 %v2896, %v2959
    %v3378 = vpow.f32 %v2897, %v2959
    %v3379 = vpow.f32 %v2898, %v2959
    %v3380 = vpow.f32 %v2899, %v2959
    %v3381 = vpow.f32 %v2900, %v2959
    %v3382 = vpow.f32 %v2901, %v2959
    %v3383 = vpow.f32 %v2902, %v2959
    %v3384 = vpow.f32 %v2903, %v2959
    %v3385 = vpow.f32 %v2904, %v2959
    %v3386 = vpow.f32 %v2905, %v2959
    %v3387 = vpow.f32 %v2906, %v2959
    %v3388 = vpow.f32 %v2907, %v2959
    %v3389 = vpow.f32 %v2908, %v2959
    %v3390 = vpow.f32 %v2909, %v2959
    %v3391 = vpow.f32 %v2910, %v2959
    %v3392 = vpow.f32 %v2911, %v2959
    %v3393 = vpow.f32 %v2912, %v2959
    %v3394 = vpow.f32 %v2913, %v2959
    %v3395 = vpow.f32 %v2914, %v2959
    %v3396 = vpow.f32 %v2915, %v2959
    %v3397 = vpow.f32 %v2916, %v2959
    %v3398 = vpow.f32 %v2917, %v2959
    %v3399 = vpow.f32 %v2918, %v2959
    %v3400 = vpow.f32 %v2919, %v2959
    %v3401 = vpow.f32 %v2920, %v2959
    %v3402 = vpow.f32 %v2921, %v2959
    %v3403 = vpow.f32 %v2922, %v2959
    %v3404 = vpow.f32 %v2923, %v2959
    %v3405 = vpow.f32 %v2924, %v2959
    %v3406 = vpow.f32 %v2925, %v2959
    %v3407 = vpow.f32 %v2926, %v2959
    %v3408 = vpow.f32 %v2927, %v2959
    %v3409 = vpow.f32 %v2928, %v2959
    %v3410 = vpow.f32 %v2929, %v2959
    %v3411 = vpow.f32 %v2930, %v2959
    %v3412 = vpow.f32 %v2931, %v2959
    %v3413 = vpow.f32 %v2932, %v2959
    %v3414 = vpow.f32 %v2933, %v2959
    %v3415 = vpow.f32 %v2934, %v2959
    %v3416 = vpow.f32 %v2935, %v2959
    %v3417 = vpow.f32 %v2936, %v2959
    %v3418 = vpow.f32 %v2937, %v2959
    %v3419 = vpow.f32 %v2938, %v2959
    %v3420 = vpow.f32 %v2939, %v2959
    %v3421 = vpow.f32 %v2940, %v2959
    %v3422 = vpow.f32 %v2941, %v2959
    %v3423 = vpow.f32 %v2942, %v2959
    %v3424 = vpow.f32 %v2943, %v2959
    %v3425 = vpow.f32 %v2944, %v2959
    %v3426 = vpow.f32 %v2945, %v2959
    %v3427 = vpow.f32 %v2946, %v2959
    %v3428 = vpow.f32 %v2947, %v2959
    %v3429 = vpow.f32 %v2948, %v2959
    %v3430 = vpow.f32 %v2949, %v2959
    %v3431 = vpow.f32 %v2950, %v2959
    %v3432 = vpow.f32 %v2951, %v2959
    %v3433 = vpow.f32 %v2952, %v2959
    %v3434 = vpow.f32 %v2953, %v2959
    %v3435 = vpow.f32 %v2954, %v2959
    %v3436 = vpow.f32 %v2955, %v2959
    %v3437 = vpow.f32 %v2956, %v2959
    %v3438 = vpow.f32 %v2957, %v2959
    %v3439 = vpow.f32 %v2958, %v2959
    %v3440 = vld [vmem:[#allocation7] sm:$0xff]
    %v3441 = vld [vmem:[#allocation7 + $0x8] sm:$0xff]
    %v3442 = vld [vmem:[#allocation7 + $0x10] sm:$0xff]
    %v3443 = vld [vmem:[#allocation7 + $0x18] sm:$0xff]
    %v3444 = vld [vmem:[#allocation7 + $0x20] sm:$0xff]
    %v3445 = vld [vmem:[#allocation7 + $0x28] sm:$0xff]
    %v3446 = vld [vmem:[#allocation7 + $0x30] sm:$0xff]
    %v3447 = vld [vmem:[#allocation7 + $0x38] sm:$0xff]
    %v3448 = vld [vmem:[#allocation7 + $0x40] sm:$0xff]
    %v3449 = vld [vmem:[#allocation7 + $0x48] sm:$0xff]
    %v3450 = vld [vmem:[#allocation7 + $0x50] sm:$0xff]
    %v3451 = vld [vmem:[#allocation7 + $0x58] sm:$0xff]
    %v3452 = vld [vmem:[#allocation7 + $0x60] sm:$0xff]
    %v3453 = vld [vmem:[#allocation7 + $0x68] sm:$0xff]
    %v3454 = vld [vmem:[#allocation7 + $0x70] sm:$0xff]
    %v3455 = vld [vmem:[#allocation7 + $0x78] sm:$0xff]
    %v3456 = vld [vmem:[#allocation7 + $0x80] sm:$0xff]
    %v3457 = vld [vmem:[#allocation7 + $0x88] sm:$0xff]
    %v3458 = vld [vmem:[#allocation7 + $0x90] sm:$0xff]
    %v3459 = vld [vmem:[#allocation7 + $0x98] sm:$0xff]
    %v3460 = vld [vmem:[#allocation7 + $0xa0] sm:$0xff]
    %v3461 = vld [vmem:[#allocation7 + $0xa8] sm:$0xff]
    %v3462 = vld [vmem:[#allocation7 + $0xb0] sm:$0xff]
    %v3463 = vld [vmem:[#allocation7 + $0xb8] sm:$0xff]
    %v3464 = vld [vmem:[#allocation7 + $0xc0] sm:$0xff]
    %v3465 = vld [vmem:[#allocation7 + $0xc8] sm:$0xff]
    %v3466 = vld [vmem:[#allocation7 + $0xd0] sm:$0xff]
    %v3467 = vld [vmem:[#allocation7 + $0xd8] sm:$0xff]
    %v3468 = vld [vmem:[#allocation7 + $0xe0] sm:$0xff]
    %v3469 = vld [vmem:[#allocation7 + $0xe8] sm:$0xff]
    %v3470 = vld [vmem:[#allocation7 + $0xf0] sm:$0xff]
    %v3471 = vld [vmem:[#allocation7 + $0xf8] sm:$0xff]
    %v3472 = vld [vmem:[#allocation7 + $0x100] sm:$0xff]
    %v3473 = vld [vmem:[#allocation7 + $0x108] sm:$0xff]
    %v3474 = vld [vmem:[#allocation7 + $0x110] sm:$0xff]
    %v3475 = vld [vmem:[#allocation7 + $0x118] sm:$0xff]
    %v3476 = vld [vmem:[#allocation7 + $0x120] sm:$0xff]
    %v3477 = vld [vmem:[#allocation7 + $0x128] sm:$0xff]
    %v3478 = vld [vmem:[#allocation7 + $0x130] sm:$0xff]
    %v3479 = vld [vmem:[#allocation7 + $0x138] sm:$0xff]
    %v3480 = vld [vmem:[#allocation7 + $0x140] sm:$0xff]
    %v3481 = vld [vmem:[#allocation7 + $0x148] sm:$0xff]
    %v3482 = vld [vmem:[#allocation7 + $0x150] sm:$0xff]
    %v3483 = vld [vmem:[#allocation7 + $0x158] sm:$0xff]
    %v3484 = vld [vmem:[#allocation7 + $0x160] sm:$0xff]
    %v3485 = vld [vmem:[#allocation7 + $0x168] sm:$0xff]
    %v3486 = vld [vmem:[#allocation7 + $0x170] sm:$0xff]
    %v3487 = vld [vmem:[#allocation7 + $0x178] sm:$0xff]
    %v3488 = vld [vmem:[#allocation7 + $0x180] sm:$0xff]
    %v3489 = vld [vmem:[#allocation7 + $0x188] sm:$0xff]
    %v3490 = vld [vmem:[#allocation7 + $0x190] sm:$0xff]
    %v3491 = vld [vmem:[#allocation7 + $0x198] sm:$0xff]
    %v3492 = vld [vmem:[#allocation7 + $0x1a0] sm:$0xff]
    %v3493 = vld [vmem:[#allocation7 + $0x1a8] sm:$0xff]
    %v3494 = vld [vmem:[#allocation7 + $0x1b0] sm:$0xff]
    %v3495 = vld [vmem:[#allocation7 + $0x1b8] sm:$0xff]
    %v3496 = vld [vmem:[#allocation7 + $0x1c0] sm:$0xff]
    %v3497 = vld [vmem:[#allocation7 + $0x1c8] sm:$0xff]
    %v3498 = vld [vmem:[#allocation7 + $0x1d0] sm:$0xff]
    %v3499 = vld [vmem:[#allocation7 + $0x1d8] sm:$0xff]
    %v3500 = vld [vmem:[#allocation7 + $0x1e0] sm:$0xff]
    %v3501 = vld [vmem:[#allocation7 + $0x1e8] sm:$0xff]
    %v3502 = vld [vmem:[#allocation7 + $0x1f0] sm:$0xff]
    %v3503 = vld [vmem:[#allocation7 + $0x1f8] sm:$0xff]
    %v3504 = vld [vmem:[#allocation7 + $0x200] sm:$0xff]
    %v3505 = vld [vmem:[#allocation7 + $0x208] sm:$0xff]
    %v3506 = vld [vmem:[#allocation7 + $0x210] sm:$0xff]
    %v3507 = vld [vmem:[#allocation7 + $0x218] sm:$0xff]
    %v3508 = vld [vmem:[#allocation7 + $0x220] sm:$0xff]
    %v3509 = vld [vmem:[#allocation7 + $0x228] sm:$0xff]
    %v3510 = vld [vmem:[#allocation7 + $0x230] sm:$0xff]
    %v3511 = vld [vmem:[#allocation7 + $0x238] sm:$0xff]
    %v3512 = vld [vmem:[#allocation7 + $0x240] sm:$0xff]
    %v3513 = vld [vmem:[#allocation7 + $0x248] sm:$0xff]
    %v3514 = vld [vmem:[#allocation7 + $0x250] sm:$0xff]
    %v3515 = vld [vmem:[#allocation7 + $0x258] sm:$0xff]
    %v3516 = vld [vmem:[#allocation7 + $0x260] sm:$0xff]
    %v3517 = vld [vmem:[#allocation7 + $0x268] sm:$0xff]
    %v3518 = vld [vmem:[#allocation7 + $0x270] sm:$0xff]
    %v3519 = vld [vmem:[#allocation7 + $0x278] sm:$0xff]
    %v3520 = vld [vmem:[#allocation7 + $0x280] sm:$0xff]
    %v3521 = vld [vmem:[#allocation7 + $0x288] sm:$0xff]
    %v3522 = vld [vmem:[#allocation7 + $0x290] sm:$0xff]
    %v3523 = vld [vmem:[#allocation7 + $0x298] sm:$0xff]
    %v3524 = vld [vmem:[#allocation7 + $0x2a0] sm:$0xff]
    %v3525 = vld [vmem:[#allocation7 + $0x2a8] sm:$0xff]
    %v3526 = vld [vmem:[#allocation7 + $0x2b0] sm:$0xff]
    %v3527 = vld [vmem:[#allocation7 + $0x2b8] sm:$0xff]
    %v3528 = vld [vmem:[#allocation7 + $0x2c0] sm:$0xff]
    %v3529 = vld [vmem:[#allocation7 + $0x2c8] sm:$0xff]
    %v3530 = vld [vmem:[#allocation7 + $0x2d0] sm:$0xff]
    %v3531 = vld [vmem:[#allocation7 + $0x2d8] sm:$0xff]
    %v3532 = vld [vmem:[#allocation7 + $0x2e0] sm:$0xff]
    %v3533 = vld [vmem:[#allocation7 + $0x2e8] sm:$0xff]
    %v3534 = vld [vmem:[#allocation7 + $0x2f0] sm:$0xff]
    %v3535 = vld [vmem:[#allocation7 + $0x2f8] sm:$0xff]
    %v3536 = vld [vmem:[#allocation7 + $0x300] sm:$0xff]
    %v3537 = vld [vmem:[#allocation7 + $0x308] sm:$0xff]
    %v3538 = vld [vmem:[#allocation7 + $0x310] sm:$0xff]
    %v3539 = vld [vmem:[#allocation7 + $0x318] sm:$0xff]
    %v3540 = vld [vmem:[#allocation7 + $0x320] sm:$0xff]
    %v3541 = vld [vmem:[#allocation7 + $0x328] sm:$0xff]
    %v3542 = vld [vmem:[#allocation7 + $0x330] sm:$0xff]
    %v3543 = vld [vmem:[#allocation7 + $0x338] sm:$0xff]
    %v3544 = vld [vmem:[#allocation7 + $0x340] sm:$0xff]
    %v3545 = vld [vmem:[#allocation7 + $0x348] sm:$0xff]
    %v3546 = vld [vmem:[#allocation7 + $0x350] sm:$0xff]
    %v3547 = vld [vmem:[#allocation7 + $0x358] sm:$0xff]
    %v3548 = vld [vmem:[#allocation7 + $0x360] sm:$0xff]
    %v3549 = vld [vmem:[#allocation7 + $0x368] sm:$0xff]
    %v3550 = vld [vmem:[#allocation7 + $0x370] sm:$0xff]
    %v3551 = vld [vmem:[#allocation7 + $0x378] sm:$0xff]
    %v3552 = vld [vmem:[#allocation7 + $0x380] sm:$0xff]
    %v3553 = vld [vmem:[#allocation7 + $0x388] sm:$0xff]
    %v3554 = vld [vmem:[#allocation7 + $0x390] sm:$0xff]
    %v3555 = vld [vmem:[#allocation7 + $0x398] sm:$0xff]
    %v3556 = vld [vmem:[#allocation7 + $0x3a0] sm:$0xff]
    %v3557 = vld [vmem:[#allocation7 + $0x3a8] sm:$0xff]
    %v3558 = vld [vmem:[#allocation7 + $0x3b0] sm:$0xff]
    %v3559 = vld [vmem:[#allocation7 + $0x3b8] sm:$0xff]
    %v3560 = vld [vmem:[#allocation7 + $0x3c0] sm:$0xff]
    %v3561 = vld [vmem:[#allocation7 + $0x3c8] sm:$0xff]
    %v3562 = vld [vmem:[#allocation7 + $0x3d0] sm:$0xff]
    %v3563 = vld [vmem:[#allocation7 + $0x3d8] sm:$0xff]
    %v3564 = vld [vmem:[#allocation7 + $0x3e0] sm:$0xff]
    %v3565 = vld [vmem:[#allocation7 + $0x3e8] sm:$0xff]
    %v3566 = vld [vmem:[#allocation7 + $0x3f0] sm:$0xff]
    %v3567 = vld [vmem:[#allocation7 + $0x3f8] sm:$0xff]
    %v3568 = vld [vmem:[#allocation7 + $0x400] sm:$0xff]
    %v3569 = vld [vmem:[#allocation7 + $0x408] sm:$0xff]
    %v3570 = vld [vmem:[#allocation7 + $0x410] sm:$0xff]
    %v3571 = vld [vmem:[#allocation7 + $0x418] sm:$0xff]
    %v3572 = vld [vmem:[#allocation7 + $0x420] sm:$0xff]
    %v3573 = vld [vmem:[#allocation7 + $0x428] sm:$0xff]
    %v3574 = vld [vmem:[#allocation7 + $0x430] sm:$0xff]
    %v3575 = vld [vmem:[#allocation7 + $0x438] sm:$0xff]
    %v3576 = vld [vmem:[#allocation7 + $0x440] sm:$0xff]
    %v3577 = vld [vmem:[#allocation7 + $0x448] sm:$0xff]
    %v3578 = vld [vmem:[#allocation7 + $0x450] sm:$0xff]
    %v3579 = vld [vmem:[#allocation7 + $0x458] sm:$0xff]
    %v3580 = vld [vmem:[#allocation7 + $0x460] sm:$0xff]
    %v3581 = vld [vmem:[#allocation7 + $0x468] sm:$0xff]
    %v3582 = vld [vmem:[#allocation7 + $0x470] sm:$0xff]
    %v3583 = vld [vmem:[#allocation7 + $0x478] sm:$0xff]
    %v3584 = vld [vmem:[#allocation7 + $0x480] sm:$0xff]
    %v3585 = vld [vmem:[#allocation7 + $0x488] sm:$0xff]
    %v3586 = vld [vmem:[#allocation7 + $0x490] sm:$0xff]
    %v3587 = vld [vmem:[#allocation7 + $0x498] sm:$0xff]
    %v3588 = vld [vmem:[#allocation7 + $0x4a0] sm:$0xff]
    %v3589 = vld [vmem:[#allocation7 + $0x4a8] sm:$0xff]
    %v3590 = vld [vmem:[#allocation7 + $0x4b0] sm:$0xff]
    %v3591 = vld [vmem:[#allocation7 + $0x4b8] sm:$0xff]
    %v3592 = vld [vmem:[#allocation7 + $0x4c0] sm:$0xff]
    %v3593 = vld [vmem:[#allocation7 + $0x4c8] sm:$0xff]
    %v3594 = vld [vmem:[#allocation7 + $0x4d0] sm:$0xff]
    %v3595 = vld [vmem:[#allocation7 + $0x4d8] sm:$0xff]
    %v3596 = vld [vmem:[#allocation7 + $0x4e0] sm:$0xff]
    %v3597 = vld [vmem:[#allocation7 + $0x4e8] sm:$0xff]
    %v3598 = vld [vmem:[#allocation7 + $0x4f0] sm:$0xff]
    %v3599 = vld [vmem:[#allocation7 + $0x4f8] sm:$0xff]
    %v3600 = vld [vmem:[#allocation7 + $0x500] sm:$0xff]
    %v3601 = vld [vmem:[#allocation7 + $0x508] sm:$0xff]
    %v3602 = vld [vmem:[#allocation7 + $0x510] sm:$0xff]
    %v3603 = vld [vmem:[#allocation7 + $0x518] sm:$0xff]
    %v3604 = vld [vmem:[#allocation7 + $0x520] sm:$0xff]
    %v3605 = vld [vmem:[#allocation7 + $0x528] sm:$0xff]
    %v3606 = vld [vmem:[#allocation7 + $0x530] sm:$0xff]
    %v3607 = vld [vmem:[#allocation7 + $0x538] sm:$0xff]
    %v3608 = vld [vmem:[#allocation7 + $0x540] sm:$0xff]
    %v3609 = vld [vmem:[#allocation7 + $0x548] sm:$0xff]
    %v3610 = vld [vmem:[#allocation7 + $0x550] sm:$0xff]
    %v3611 = vld [vmem:[#allocation7 + $0x558] sm:$0xff]
    %v3612 = vld [vmem:[#allocation7 + $0x560] sm:$0xff]
    %v3613 = vld [vmem:[#allocation7 + $0x568] sm:$0xff]
    %v3614 = vld [vmem:[#allocation7 + $0x570] sm:$0xff]
    %v3615 = vld [vmem:[#allocation7 + $0x578] sm:$0xff]
    %v3616 = vld [vmem:[#allocation7 + $0x580] sm:$0xff]
    %v3617 = vld [vmem:[#allocation7 + $0x588] sm:$0xff]
    %v3618 = vld [vmem:[#allocation7 + $0x590] sm:$0xff]
    %v3619 = vld [vmem:[#allocation7 + $0x598] sm:$0xff]
    %v3620 = vld [vmem:[#allocation7 + $0x5a0] sm:$0xff]
    %v3621 = vld [vmem:[#allocation7 + $0x5a8] sm:$0xff]
    %v3622 = vld [vmem:[#allocation7 + $0x5b0] sm:$0xff]
    %v3623 = vld [vmem:[#allocation7 + $0x5b8] sm:$0xff]
    %v3624 = vld [vmem:[#allocation7 + $0x5c0] sm:$0xff]
    %v3625 = vld [vmem:[#allocation7 + $0x5c8] sm:$0xff]
    %v3626 = vld [vmem:[#allocation7 + $0x5d0] sm:$0xff]
    %v3627 = vld [vmem:[#allocation7 + $0x5d8] sm:$0xff]
    %v3628 = vld [vmem:[#allocation7 + $0x5e0] sm:$0xff]
    %v3629 = vld [vmem:[#allocation7 + $0x5e8] sm:$0xff]
    %v3630 = vld [vmem:[#allocation7 + $0x5f0] sm:$0xff]
    %v3631 = vld [vmem:[#allocation7 + $0x5f8] sm:$0xff]
    %v3632 = vld [vmem:[#allocation7 + $0x600] sm:$0xff]
    %v3633 = vld [vmem:[#allocation7 + $0x608] sm:$0xff]
    %v3634 = vld [vmem:[#allocation7 + $0x610] sm:$0xff]
    %v3635 = vld [vmem:[#allocation7 + $0x618] sm:$0xff]
    %v3636 = vld [vmem:[#allocation7 + $0x620] sm:$0xff]
    %v3637 = vld [vmem:[#allocation7 + $0x628] sm:$0xff]
    %v3638 = vld [vmem:[#allocation7 + $0x630] sm:$0xff]
    %v3639 = vld [vmem:[#allocation7 + $0x638] sm:$0xff]
    %v3640 = vld [vmem:[#allocation7 + $0x640] sm:$0xff]
    %v3641 = vld [vmem:[#allocation7 + $0x648] sm:$0xff]
    %v3642 = vld [vmem:[#allocation7 + $0x650] sm:$0xff]
    %v3643 = vld [vmem:[#allocation7 + $0x658] sm:$0xff]
    %v3644 = vld [vmem:[#allocation7 + $0x660] sm:$0xff]
    %v3645 = vld [vmem:[#allocation7 + $0x668] sm:$0xff]
    %v3646 = vld [vmem:[#allocation7 + $0x670] sm:$0xff]
    %v3647 = vld [vmem:[#allocation7 + $0x678] sm:$0xff]
    %v3648 = vld [vmem:[#allocation7 + $0x680] sm:$0xff]
    %v3649 = vld [vmem:[#allocation7 + $0x688] sm:$0xff]
    %v3650 = vld [vmem:[#allocation7 + $0x690] sm:$0xff]
    %v3651 = vld [vmem:[#allocation7 + $0x698] sm:$0xff]
    %v3652 = vld [vmem:[#allocation7 + $0x6a0] sm:$0xff]
    %v3653 = vld [vmem:[#allocation7 + $0x6a8] sm:$0xff]
    %v3654 = vld [vmem:[#allocation7 + $0x6b0] sm:$0xff]
    %v3655 = vld [vmem:[#allocation7 + $0x6b8] sm:$0xff]
    %v3656 = vld [vmem:[#allocation7 + $0x6c0] sm:$0xff]
    %v3657 = vld [vmem:[#allocation7 + $0x6c8] sm:$0xff]
    %v3658 = vld [vmem:[#allocation7 + $0x6d0] sm:$0xff]
    %v3659 = vld [vmem:[#allocation7 + $0x6d8] sm:$0xff]
    %v3660 = vld [vmem:[#allocation7 + $0x6e0] sm:$0xff]
    %v3661 = vld [vmem:[#allocation7 + $0x6e8] sm:$0xff]
    %v3662 = vld [vmem:[#allocation7 + $0x6f0] sm:$0xff]
    %v3663 = vld [vmem:[#allocation7 + $0x6f8] sm:$0xff]
    %v3664 = vld [vmem:[#allocation7 + $0x700] sm:$0xff]
    %v3665 = vld [vmem:[#allocation7 + $0x708] sm:$0xff]
    %v3666 = vld [vmem:[#allocation7 + $0x710] sm:$0xff]
    %v3667 = vld [vmem:[#allocation7 + $0x718] sm:$0xff]
    %v3668 = vld [vmem:[#allocation7 + $0x720] sm:$0xff]
    %v3669 = vld [vmem:[#allocation7 + $0x728] sm:$0xff]
    %v3670 = vld [vmem:[#allocation7 + $0x730] sm:$0xff]
    %v3671 = vld [vmem:[#allocation7 + $0x738] sm:$0xff]
    %v3672 = vld [vmem:[#allocation7 + $0x740] sm:$0xff]
    %v3673 = vld [vmem:[#allocation7 + $0x748] sm:$0xff]
    %v3674 = vld [vmem:[#allocation7 + $0x750] sm:$0xff]
    %v3675 = vld [vmem:[#allocation7 + $0x758] sm:$0xff]
    %v3676 = vld [vmem:[#allocation7 + $0x760] sm:$0xff]
    %v3677 = vld [vmem:[#allocation7 + $0x768] sm:$0xff]
    %v3678 = vld [vmem:[#allocation7 + $0x770] sm:$0xff]
    %v3679 = vld [vmem:[#allocation7 + $0x778] sm:$0xff]
    %v3680 = vld [vmem:[#allocation9] sm:$0x1]
    %v3682 = vperm.slane %v3680, 0
    %v4164 = vlaneseq
    %v4165 = vand.u32 %v4164, 127
    %v4166 = vperm.slane %v2960, %v4165
    %v4167 = vadd.s32 %v4165, 4294967288
    %v4168 = vperm.slane %v2961, %v4167
    %vm4169 = vcmask 130112
    %v4170 = vsel %vm4169, %v4168, %v4166
    %v4171 = vadd.s32 %v4165, 4294967280
    %v4172 = vperm.slane %v2962, %v4171
    %vm4173 = vcmask 195712
    %v4174 = vsel %vm4173, %v4172, %v4170
    %v4175 = vadd.s32 %v4165, 4294967272
    %v4176 = vperm.slane %v2963, %v4175
    %vm4177 = vcmask 261312
    %v4178 = vsel %vm4177, %v4176, %v4174
    %v4179 = vadd.s32 %v4165, 4294967264
    %v4180 = vperm.slane %v2964, %v4179
    %vm4181 = vcmask 326912
    %v4182 = vsel %vm4181, %v4180, %v4178
    %v4183 = vadd.s32 %v4165, 4294967256
    %v4184 = vperm.slane %v2965, %v4183
    %vm4185 = vcmask 392512
    %v4186 = vsel %vm4185, %v4184, %v4182
    %v4187 = vadd.s32 %v4165, 4294967248
    %v4188 = vperm.slane %v2966, %v4187
    %vm4189 = vcmask 458112
    %v4190 = vsel %vm4189, %v4188, %v4186
    %v4191 = vadd.s32 %v4165, 4294967240
    %v4192 = vperm.slane %v2967, %v4191
    %vm4193 = vcmask 523712
    %v4194 = vsel %vm4193, %v4192, %v4190
    %v4195 = vadd.s32 %v4165, 4294967232
    %v4196 = vperm.slane %v2968, %v4195
    %vm4197 = vcmask 589312
    %v4198 = vsel %vm4197, %v4196, %v4194
    %v4199 = vadd.s32 %v4165, 4294967224
    %v4200 = vperm.slane %v2969, %v4199
    %vm4201 = vcmask 654912
    %v4202 = vsel %vm4201, %v4200, %v4198
    %v4203 = vadd.s32 %v4165, 4294967216
    %v4204 = vperm.slane %v2970, %v4203
    %vm4205 = vcmask 720512
    %v4206 = vsel %vm4205, %v4204, %v4202
    %v4207 = vadd.s32 %v4165, 4294967208
    %v4208 = vperm.slane %v2971, %v4207
    %vm4209 = vcmask 786112
    %v4210 = vsel %vm4209, %v4208, %v4206
    %v4211 = vadd.s32 %v4165, 4294967200
    %v4212 = vperm.slane %v2972, %v4211
    %vm4213 = vcmask 851712
    %v4214 = vsel %vm4213, %v4212, %v4210
    %v4215 = vadd.s32 %v4165, 4294967192
    %v4216 = vperm.slane %v2973, %v4215
    %vm4217 = vcmask 917312
    %v4218 = vsel %vm4217, %v4216, %v4214
    %v4219 = vadd.s32 %v4165, 4294967184
    %v4220 = vperm.slane %v2974, %v4219
    %vm4221 = vcmask 982912
    %v4222 = vsel %vm4221, %v4220, %v4218
    %v4223 = vadd.s32 %v4165, 4294967176
    %v4224 = vperm.slane %v2975, %v4223
    %vm4225 = vcmask 1048512
    %v4226 = vsel %vm4225, %v4224, %v4222
    %v4227 = vperm.slane %v2976, %v4165
    %v4228 = vperm.slane %v2977, %v4167
    %v4229 = vsel %vm4169, %v4228, %v4227
    %v4230 = vperm.slane %v2978, %v4171
    %v4231 = vsel %vm4173, %v4230, %v4229
    %v4232 = vperm.slane %v2979, %v4175
    %v4233 = vsel %vm4177, %v4232, %v4231
    %v4234 = vperm.slane %v2980, %v4179
    %v4235 = vsel %vm4181, %v4234, %v4233
    %v4236 = vperm.slane %v2981, %v4183
    %v4237 = vsel %vm4185, %v4236, %v4235
    %v4238 = vperm.slane %v2982, %v4187
    %v4239 = vsel %vm4189, %v4238, %v4237
    %v4240 = vperm.slane %v2983, %v4191
    %v4241 = vsel %vm4193, %v4240, %v4239
    %v4242 = vperm.slane %v2984, %v4195
    %v4243 = vsel %vm4197, %v4242, %v4241
    %v4244 = vperm.slane %v2985, %v4199
    %v4245 = vsel %vm4201, %v4244, %v4243
    %v4246 = vperm.slane %v2986, %v4203
    %v4247 = vsel %vm4205, %v4246, %v4245
    %v4248 = vperm.slane %v2987, %v4207
    %v4249 = vsel %vm4209, %v4248, %v4247
    %v4250 = vperm.slane %v2988, %v4211
    %v4251 = vsel %vm4213, %v4250, %v4249
    %v4252 = vperm.slane %v2989, %v4215
    %v4253 = vsel %vm4217, %v4252, %v4251
    %v4254 = vperm.slane %v2990, %v4219
    %v4255 = vsel %vm4221, %v4254, %v4253
    %v4256 = vperm.slane %v2991, %v4223
    %v4257 = vsel %vm4225, %v4256, %v4255
    %v4258 = vperm.slane %v2992, %v4165
    %v4259 = vperm.slane %v2993, %v4167
    %v4260 = vsel %vm4169, %v4259, %v4258
    %v4261 = vperm.slane %v2994, %v4171
    %v4262 = vsel %vm4173, %v4261, %v4260
    %v4263 = vperm.slane %v2995, %v4175
    %v4264 = vsel %vm4177, %v4263, %v4262
    %v4265 = vperm.slane %v2996, %v4179
    %v4266 = vsel %vm4181, %v4265, %v4264
    %v4267 = vperm.slane %v2997, %v4183
    %v4268 = vsel %vm4185, %v4267, %v4266
    %v4269 = vperm.slane %v2998, %v4187
    %v4270 = vsel %vm4189, %v4269, %v4268
    %v4271 = vperm.slane %v2999, %v4191
    %v4272 = vsel %vm4193, %v4271, %v4270
    %v4273 = vperm.slane %v3000, %v4195
    %v4274 = vsel %vm4197, %v4273, %v4272
    %v4275 = vperm.slane %v3001, %v4199
    %v4276 = vsel %vm4201, %v4275, %v4274
    %v4277 = vperm.slane %v3002, %v4203
    %v4278 = vsel %vm4205, %v4277, %v4276
    %v4279 = vperm.slane %v3003, %v4207
    %v4280 = vsel %vm4209, %v4279, %v4278
    %v4281 = vperm.slane %v3004, %v4211
    %v4282 = vsel %vm4213, %v4281, %v4280
    %v4283 = vperm.slane %v3005, %v4215
    %v4284 = vsel %vm4217, %v4283, %v4282
    %v4285 = vperm.slane %v3006, %v4219
    %v4286 = vsel %vm4221, %v4285, %v4284
    %v4287 = vperm.slane %v3007, %v4223
    %v4288 = vsel %vm4225, %v4287, %v4286
    %v4289 = vperm.slane %v3008, %v4165
    %v4290 = vperm.slane %v3009, %v4167
    %v4291 = vsel %vm4169, %v4290, %v4289
    %v4292 = vperm.slane %v3010, %v4171
    %v4293 = vsel %vm4173, %v4292, %v4291
    %v4294 = vperm.slane %v3011, %v4175
    %v4295 = vsel %vm4177, %v4294, %v4293
    %v4296 = vperm.slane %v3012, %v4179
    %v4297 = vsel %vm4181, %v4296, %v4295
    %v4298 = vperm.slane %v3013, %v4183
    %v4299 = vsel %vm4185, %v4298, %v4297
    %v4300 = vperm.slane %v3014, %v4187
    %v4301 = vsel %vm4189, %v4300, %v4299
    %v4302 = vperm.slane %v3015, %v4191
    %v4303 = vsel %vm4193, %v4302, %v4301
    %v4304 = vperm.slane %v3016, %v4195
    %v4305 = vsel %vm4197, %v4304, %v4303
    %v4306 = vperm.slane %v3017, %v4199
    %v4307 = vsel %vm4201, %v4306, %v4305
    %v4308 = vperm.slane %v3018, %v4203
    %v4309 = vsel %vm4205, %v4308, %v4307
    %v4310 = vperm.slane %v3019, %v4207
    %v4311 = vsel %vm4209, %v4310, %v4309
    %v4312 = vperm.slane %v3020, %v4211
    %v4313 = vsel %vm4213, %v4312, %v4311
    %v4314 = vperm.slane %v3021, %v4215
    %v4315 = vsel %vm4217, %v4314, %v4313
    %v4316 = vperm.slane %v3022, %v4219
    %v4317 = vsel %vm4221, %v4316, %v4315
    %v4318 = vperm.slane %v3023, %v4223
    %v4319 = vsel %vm4225, %v4318, %v4317
    %v4320 = vperm.slane %v3024, %v4165
    %v4321 = vperm.slane %v3025, %v4167
    %v4322 = vsel %vm4169, %v4321, %v4320
    %v4323 = vperm.slane %v3026, %v4171
    %v4324 = vsel %vm4173, %v4323, %v4322
    %v4325 = vperm.slane %v3027, %v4175
    %v4326 = vsel %vm4177, %v4325, %v4324
    %v4327 = vperm.slane %v3028, %v4179
    %v4328 = vsel %vm4181, %v4327, %v4326
    %v4329 = vperm.slane %v3029, %v4183
    %v4330 = vsel %vm4185, %v4329, %v4328
    %v4331 = vperm.slane %v3030, %v4187
    %v4332 = vsel %vm4189, %v4331, %v4330
    %v4333 = vperm.slane %v3031, %v4191
    %v4334 = vsel %vm4193, %v4333, %v4332
    %v4335 = vperm.slane %v3032, %v4195
    %v4336 = vsel %vm4197, %v4335, %v4334
    %v4337 = vperm.slane %v3033, %v4199
    %v4338 = vsel %vm4201, %v4337, %v4336
    %v4339 = vperm.slane %v3034, %v4203
    %v4340 = vsel %vm4205, %v4339, %v4338
    %v4341 = vperm.slane %v3035, %v4207
    %v4342 = vsel %vm4209, %v4341, %v4340
    %v4343 = vperm.slane %v3036, %v4211
    %v4344 = vsel %vm4213, %v4343, %v4342
    %v4345 = vperm.slane %v3037, %v4215
    %v4346 = vsel %vm4217, %v4345, %v4344
    %v4347 = vperm.slane %v3038, %v4219
    %v4348 = vsel %vm4221, %v4347, %v4346
    %v4349 = vperm.slane %v3039, %v4223
    %v4350 = vsel %vm4225, %v4349, %v4348
    %v4351 = vperm.slane %v3040, %v4165
    %v4352 = vperm.slane %v3041, %v4167
    %v4353 = vsel %vm4169, %v4352, %v4351
    %v4354 = vperm.slane %v3042, %v4171
    %v4355 = vsel %vm4173, %v4354, %v4353
    %v4356 = vperm.slane %v3043, %v4175
    %v4357 = vsel %vm4177, %v4356, %v4355
    %v4358 = vperm.slane %v3044, %v4179
    %v4359 = vsel %vm4181, %v4358, %v4357
    %v4360 = vperm.slane %v3045, %v4183
    %v4361 = vsel %vm4185, %v4360, %v4359
    %v4362 = vperm.slane %v3046, %v4187
    %v4363 = vsel %vm4189, %v4362, %v4361
    %v4364 = vperm.slane %v3047, %v4191
    %v4365 = vsel %vm4193, %v4364, %v4363
    %v4366 = vperm.slane %v3048, %v4195
    %v4367 = vsel %vm4197, %v4366, %v4365
    %v4368 = vperm.slane %v3049, %v4199
    %v4369 = vsel %vm4201, %v4368, %v4367
    %v4370 = vperm.slane %v3050, %v4203
    %v4371 = vsel %vm4205, %v4370, %v4369
    %v4372 = vperm.slane %v3051, %v4207
    %v4373 = vsel %vm4209, %v4372, %v4371
    %v4374 = vperm.slane %v3052, %v4211
    %v4375 = vsel %vm4213, %v4374, %v4373
    %v4376 = vperm.slane %v3053, %v4215
    %v4377 = vsel %vm4217, %v4376, %v4375
    %v4378 = vperm.slane %v3054, %v4219
    %v4379 = vsel %vm4221, %v4378, %v4377
    %v4380 = vperm.slane %v3055, %v4223
    %v4381 = vsel %vm4225, %v4380, %v4379
    %v4382 = vperm.slane %v3056, %v4165
    %v4383 = vperm.slane %v3057, %v4167
    %v4384 = vsel %vm4169, %v4383, %v4382
    %v4385 = vperm.slane %v3058, %v4171
    %v4386 = vsel %vm4173, %v4385, %v4384
    %v4387 = vperm.slane %v3059, %v4175
    %v4388 = vsel %vm4177, %v4387, %v4386
    %v4389 = vperm.slane %v3060, %v4179
    %v4390 = vsel %vm4181, %v4389, %v4388
    %v4391 = vperm.slane %v3061, %v4183
    %v4392 = vsel %vm4185, %v4391, %v4390
    %v4393 = vperm.slane %v3062, %v4187
    %v4394 = vsel %vm4189, %v4393, %v4392
    %v4395 = vperm.slane %v3063, %v4191
    %v4396 = vsel %vm4193, %v4395, %v4394
    %v4397 = vperm.slane %v3064, %v4195
    %v4398 = vsel %vm4197, %v4397, %v4396
    %v4399 = vperm.slane %v3065, %v4199
    %v4400 = vsel %vm4201, %v4399, %v4398
    %v4401 = vperm.slane %v3066, %v4203
    %v4402 = vsel %vm4205, %v4401, %v4400
    %v4403 = vperm.slane %v3067, %v4207
    %v4404 = vsel %vm4209, %v4403, %v4402
    %v4405 = vperm.slane %v3068, %v4211
    %v4406 = vsel %vm4213, %v4405, %v4404
    %v4407 = vperm.slane %v3069, %v4215
    %v4408 = vsel %vm4217, %v4407, %v4406
    %v4409 = vperm.slane %v3070, %v4219
    %v4410 = vsel %vm4221, %v4409, %v4408
    %v4411 = vperm.slane %v3071, %v4223
    %v4412 = vsel %vm4225, %v4411, %v4410
    %v4413 = vperm.slane %v3072, %v4165
    %v4414 = vperm.slane %v3073, %v4167
    %v4415 = vsel %vm4169, %v4414, %v4413
    %v4416 = vperm.slane %v3074, %v4171
    %v4417 = vsel %vm4173, %v4416, %v4415
    %v4418 = vperm.slane %v3075, %v4175
    %v4419 = vsel %vm4177, %v4418, %v4417
    %v4420 = vperm.slane %v3076, %v4179
    %v4421 = vsel %vm4181, %v4420, %v4419
    %v4422 = vperm.slane %v3077, %v4183
    %v4423 = vsel %vm4185, %v4422, %v4421
    %v4424 = vperm.slane %v3078, %v4187
    %v4425 = vsel %vm4189, %v4424, %v4423
    %v4426 = vperm.slane %v3079, %v4191
    %v4427 = vsel %vm4193, %v4426, %v4425
    %v4428 = vperm.slane %v3080, %v4195
    %v4429 = vsel %vm4197, %v4428, %v4427
    %v4430 = vperm.slane %v3081, %v4199
    %v4431 = vsel %vm4201, %v4430, %v4429
    %v4432 = vperm.slane %v3082, %v4203
    %v4433 = vsel %vm4205, %v4432, %v4431
    %v4434 = vperm.slane %v3083, %v4207
    %v4435 = vsel %vm4209, %v4434, %v4433
    %v4436 = vperm.slane %v3084, %v4211
    %v4437 = vsel %vm4213, %v4436, %v4435
    %v4438 = vperm.slane %v3085, %v4215
    %v4439 = vsel %vm4217, %v4438, %v4437
    %v4440 = vperm.slane %v3086, %v4219
    %v4441 = vsel %vm4221, %v4440, %v4439
    %v4442 = vperm.slane %v3087, %v4223
    %v4443 = vsel %vm4225, %v4442, %v4441
    %v4444 = vperm.slane %v3088, %v4165
    %v4445 = vperm.slane %v3089, %v4167
    %v4446 = vsel %vm4169, %v4445, %v4444
    %v4447 = vperm.slane %v3090, %v4171
    %v4448 = vsel %vm4173, %v4447, %v4446
    %v4449 = vperm.slane %v3091, %v4175
    %v4450 = vsel %vm4177, %v4449, %v4448
    %v4451 = vperm.slane %v3092, %v4179
    %v4452 = vsel %vm4181, %v4451, %v4450
    %v4453 = vperm.slane %v3093, %v4183
    %v4454 = vsel %vm4185, %v4453, %v4452
    %v4455 = vperm.slane %v3094, %v4187
    %v4456 = vsel %vm4189, %v4455, %v4454
    %v4457 = vperm.slane %v3095, %v4191
    %v4458 = vsel %vm4193, %v4457, %v4456
    %v4459 = vperm.slane %v3096, %v4195
    %v4460 = vsel %vm4197, %v4459, %v4458
    %v4461 = vperm.slane %v3097, %v4199
    %v4462 = vsel %vm4201, %v4461, %v4460
    %v4463 = vperm.slane %v3098, %v4203
    %v4464 = vsel %vm4205, %v4463, %v4462
    %v4465 = vperm.slane %v3099, %v4207
    %v4466 = vsel %vm4209, %v4465, %v4464
    %v4467 = vperm.slane %v3100, %v4211
    %v4468 = vsel %vm4213, %v4467, %v4466
    %v4469 = vperm.slane %v3101, %v4215
    %v4470 = vsel %vm4217, %v4469, %v4468
    %v4471 = vperm.slane %v3102, %v4219
    %v4472 = vsel %vm4221, %v4471, %v4470
    %v4473 = vperm.slane %v3103, %v4223
    %v4474 = vsel %vm4225, %v4473, %v4472
    %v4475 = vperm.slane %v3104, %v4165
    %v4476 = vperm.slane %v3105, %v4167
    %v4477 = vsel %vm4169, %v4476, %v4475
    %v4478 = vperm.slane %v3106, %v4171
    %v4479 = vsel %vm4173, %v4478, %v4477
    %v4480 = vperm.slane %v3107, %v4175
    %v4481 = vsel %vm4177, %v4480, %v4479
    %v4482 = vperm.slane %v3108, %v4179
    %v4483 = vsel %vm4181, %v4482, %v4481
    %v4484 = vperm.slane %v3109, %v4183
    %v4485 = vsel %vm4185, %v4484, %v4483
    %v4486 = vperm.slane %v3110, %v4187
    %v4487 = vsel %vm4189, %v4486, %v4485
    %v4488 = vperm.slane %v3111, %v4191
    %v4489 = vsel %vm4193, %v4488, %v4487
    %v4490 = vperm.slane %v3112, %v4195
    %v4491 = vsel %vm4197, %v4490, %v4489
    %v4492 = vperm.slane %v3113, %v4199
    %v4493 = vsel %vm4201, %v4492, %v4491
    %v4494 = vperm.slane %v3114, %v4203
    %v4495 = vsel %vm4205, %v4494, %v4493
    %v4496 = vperm.slane %v3115, %v4207
    %v4497 = vsel %vm4209, %v4496, %v4495
    %v4498 = vperm.slane %v3116, %v4211
    %v4499 = vsel %vm4213, %v4498, %v4497
    %v4500 = vperm.slane %v3117, %v4215
    %v4501 = vsel %vm4217, %v4500, %v4499
    %v4502 = vperm.slane %v3118, %v4219
    %v4503 = vsel %vm4221, %v4502, %v4501
    %v4504 = vperm.slane %v3119, %v4223
    %v4505 = vsel %vm4225, %v4504, %v4503
    %v4506 = vperm.slane %v3120, %v4165
    %v4507 = vperm.slane %v3121, %v4167
    %v4508 = vsel %vm4169, %v4507, %v4506
    %v4509 = vperm.slane %v3122, %v4171
    %v4510 = vsel %vm4173, %v4509, %v4508
    %v4511 = vperm.slane %v3123, %v4175
    %v4512 = vsel %vm4177, %v4511, %v4510
    %v4513 = vperm.slane %v3124, %v4179
    %v4514 = vsel %vm4181, %v4513, %v4512
    %v4515 = vperm.slane %v3125, %v4183
    %v4516 = vsel %vm4185, %v4515, %v4514
    %v4517 = vperm.slane %v3126, %v4187
    %v4518 = vsel %vm4189, %v4517, %v4516
    %v4519 = vperm.slane %v3127, %v4191
    %v4520 = vsel %vm4193, %v4519, %v4518
    %v4521 = vperm.slane %v3128, %v4195
    %v4522 = vsel %vm4197, %v4521, %v4520
    %v4523 = vperm.slane %v3129, %v4199
    %v4524 = vsel %vm4201, %v4523, %v4522
    %v4525 = vperm.slane %v3130, %v4203
    %v4526 = vsel %vm4205, %v4525, %v4524
    %v4527 = vperm.slane %v3131, %v4207
    %v4528 = vsel %vm4209, %v4527, %v4526
    %v4529 = vperm.slane %v3132, %v4211
    %v4530 = vsel %vm4213, %v4529, %v4528
    %v4531 = vperm.slane %v3133, %v4215
    %v4532 = vsel %vm4217, %v4531, %v4530
    %v4533 = vperm.slane %v3134, %v4219
    %v4534 = vsel %vm4221, %v4533, %v4532
    %v4535 = vperm.slane %v3135, %v4223
    %v4536 = vsel %vm4225, %v4535, %v4534
    %v4537 = vperm.slane %v3136, %v4165
    %v4538 = vperm.slane %v3137, %v4167
    %v4539 = vsel %vm4169, %v4538, %v4537
    %v4540 = vperm.slane %v3138, %v4171
    %v4541 = vsel %vm4173, %v4540, %v4539
    %v4542 = vperm.slane %v3139, %v4175
    %v4543 = vsel %vm4177, %v4542, %v4541
    %v4544 = vperm.slane %v3140, %v4179
    %v4545 = vsel %vm4181, %v4544, %v4543
    %v4546 = vperm.slane %v3141, %v4183
    %v4547 = vsel %vm4185, %v4546, %v4545
    %v4548 = vperm.slane %v3142, %v4187
    %v4549 = vsel %vm4189, %v4548, %v4547
    %v4550 = vperm.slane %v3143, %v4191
    %v4551 = vsel %vm4193, %v4550, %v4549
    %v4552 = vperm.slane %v3144, %v4195
    %v4553 = vsel %vm4197, %v4552, %v4551
    %v4554 = vperm.slane %v3145, %v4199
    %v4555 = vsel %vm4201, %v4554, %v4553
    %v4556 = vperm.slane %v3146, %v4203
    %v4557 = vsel %vm4205, %v4556, %v4555
    %v4558 = vperm.slane %v3147, %v4207
    %v4559 = vsel %vm4209, %v4558, %v4557
    %v4560 = vperm.slane %v3148, %v4211
    %v4561 = vsel %vm4213, %v4560, %v4559
    %v4562 = vperm.slane %v3149, %v4215
    %v4563 = vsel %vm4217, %v4562, %v4561
    %v4564 = vperm.slane %v3150, %v4219
    %v4565 = vsel %vm4221, %v4564, %v4563
    %v4566 = vperm.slane %v3151, %v4223
    %v4567 = vsel %vm4225, %v4566, %v4565
    %v4568 = vperm.slane %v3152, %v4165
    %v4569 = vperm.slane %v3153, %v4167
    %v4570 = vsel %vm4169, %v4569, %v4568
    %v4571 = vperm.slane %v3154, %v4171
    %v4572 = vsel %vm4173, %v4571, %v4570
    %v4573 = vperm.slane %v3155, %v4175
    %v4574 = vsel %vm4177, %v4573, %v4572
    %v4575 = vperm.slane %v3156, %v4179
    %v4576 = vsel %vm4181, %v4575, %v4574
    %v4577 = vperm.slane %v3157, %v4183
    %v4578 = vsel %vm4185, %v4577, %v4576
    %v4579 = vperm.slane %v3158, %v4187
    %v4580 = vsel %vm4189, %v4579, %v4578
    %v4581 = vperm.slane %v3159, %v4191
    %v4582 = vsel %vm4193, %v4581, %v4580
    %v4583 = vperm.slane %v3160, %v4195
    %v4584 = vsel %vm4197, %v4583, %v4582
    %v4585 = vperm.slane %v3161, %v4199
    %v4586 = vsel %vm4201, %v4585, %v4584
    %v4587 = vperm.slane %v3162, %v4203
    %v4588 = vsel %vm4205, %v4587, %v4586
    %v4589 = vperm.slane %v3163, %v4207
    %v4590 = vsel %vm4209, %v4589, %v4588
    %v4591 = vperm.slane %v3164, %v4211
    %v4592 = vsel %vm4213, %v4591, %v4590
    %v4593 = vperm.slane %v3165, %v4215
    %v4594 = vsel %vm4217, %v4593, %v4592
    %v4595 = vperm.slane %v3166, %v4219
    %v4596 = vsel %vm4221, %v4595, %v4594
    %v4597 = vperm.slane %v3167, %v4223
    %v4598 = vsel %vm4225, %v4597, %v4596
    %v4599 = vperm.slane %v3168, %v4165
    %v4600 = vperm.slane %v3169, %v4167
    %v4601 = vsel %vm4169, %v4600, %v4599
    %v4602 = vperm.slane %v3170, %v4171
    %v4603 = vsel %vm4173, %v4602, %v4601
    %v4604 = vperm.slane %v3171, %v4175
    %v4605 = vsel %vm4177, %v4604, %v4603
    %v4606 = vperm.slane %v3172, %v4179
    %v4607 = vsel %vm4181, %v4606, %v4605
    %v4608 = vperm.slane %v3173, %v4183
    %v4609 = vsel %vm4185, %v4608, %v4607
    %v4610 = vperm.slane %v3174, %v4187
    %v4611 = vsel %vm4189, %v4610, %v4609
    %v4612 = vperm.slane %v3175, %v4191
    %v4613 = vsel %vm4193, %v4612, %v4611
    %v4614 = vperm.slane %v3176, %v4195
    %v4615 = vsel %vm4197, %v4614, %v4613
    %v4616 = vperm.slane %v3177, %v4199
    %v4617 = vsel %vm4201, %v4616, %v4615
    %v4618 = vperm.slane %v3178, %v4203
    %v4619 = vsel %vm4205, %v4618, %v4617
    %v4620 = vperm.slane %v3179, %v4207
    %v4621 = vsel %vm4209, %v4620, %v4619
    %v4622 = vperm.slane %v3180, %v4211
    %v4623 = vsel %vm4213, %v4622, %v4621
    %v4624 = vperm.slane %v3181, %v4215
    %v4625 = vsel %vm4217, %v4624, %v4623
    %v4626 = vperm.slane %v3182, %v4219
    %v4627 = vsel %vm4221, %v4626, %v4625
    %v4628 = vperm.slane %v3183, %v4223
    %v4629 = vsel %vm4225, %v4628, %v4627
    %v4630 = vperm.slane %v3184, %v4165
    %v4631 = vperm.slane %v3185, %v4167
    %v4632 = vsel %vm4169, %v4631, %v4630
    %v4633 = vperm.slane %v3186, %v4171
    %v4634 = vsel %vm4173, %v4633, %v4632
    %v4635 = vperm.slane %v3187, %v4175
    %v4636 = vsel %vm4177, %v4635, %v4634
    %v4637 = vperm.slane %v3188, %v4179
    %v4638 = vsel %vm4181, %v4637, %v4636
    %v4639 = vperm.slane %v3189, %v4183
    %v4640 = vsel %vm4185, %v4639, %v4638
    %v4641 = vperm.slane %v3190, %v4187
    %v4642 = vsel %vm4189, %v4641, %v4640
    %v4643 = vperm.slane %v3191, %v4191
    %v4644 = vsel %vm4193, %v4643, %v4642
    %v4645 = vperm.slane %v3192, %v4195
    %v4646 = vsel %vm4197, %v4645, %v4644
    %v4647 = vperm.slane %v3193, %v4199
    %v4648 = vsel %vm4201, %v4647, %v4646
    %v4649 = vperm.slane %v3194, %v4203
    %v4650 = vsel %vm4205, %v4649, %v4648
    %v4651 = vperm.slane %v3195, %v4207
    %v4652 = vsel %vm4209, %v4651, %v4650
    %v4653 = vperm.slane %v3196, %v4211
    %v4654 = vsel %vm4213, %v4653, %v4652
    %v4655 = vperm.slane %v3197, %v4215
    %v4656 = vsel %vm4217, %v4655, %v4654
    %v4657 = vperm.slane %v3198, %v4219
    %v4658 = vsel %vm4221, %v4657, %v4656
    %v4659 = vperm.slane %v3199, %v4223
    %v4660 = vsel %vm4225, %v4659, %v4658
    %v4661 = vperm.slane %v3200, %v4165
    %v4662 = vperm.slane %v3201, %v4167
    %v4663 = vsel %vm4169, %v4662, %v4661
    %v4664 = vperm.slane %v3202, %v4171
    %v4665 = vsel %vm4173, %v4664, %v4663
    %v4666 = vperm.slane %v3203, %v4175
    %v4667 = vsel %vm4177, %v4666, %v4665
    %v4668 = vperm.slane %v3204, %v4179
    %v4669 = vsel %vm4181, %v4668, %v4667
    %v4670 = vperm.slane %v3205, %v4183
    %v4671 = vsel %vm4185, %v4670, %v4669
    %v4672 = vperm.slane %v3206, %v4187
    %v4673 = vsel %vm4189, %v4672, %v4671
    %v4674 = vperm.slane %v3207, %v4191
    %v4675 = vsel %vm4193, %v4674, %v4673
    %v4676 = vperm.slane %v3208, %v4195
    %v4677 = vsel %vm4197, %v4676, %v4675
    %v4678 = vperm.slane %v3209, %v4199
    %v4679 = vsel %vm4201, %v4678, %v4677
    %v4680 = vperm.slane %v3210, %v4203
    %v4681 = vsel %vm4205, %v4680, %v4679
    %v4682 = vperm.slane %v3211, %v4207
    %v4683 = vsel %vm4209, %v4682, %v4681
    %v4684 = vperm.slane %v3212, %v4211
    %v4685 = vsel %vm4213, %v4684, %v4683
    %v4686 = vperm.slane %v3213, %v4215
    %v4687 = vsel %vm4217, %v4686, %v4685
    %v4688 = vperm.slane %v3214, %v4219
    %v4689 = vsel %vm4221, %v4688, %v4687
    %v4690 = vperm.slane %v3215, %v4223
    %v4691 = vsel %vm4225, %v4690, %v4689
    %v4692 = vperm.slane %v3216, %v4165
    %v4693 = vperm.slane %v3217, %v4167
    %v4694 = vsel %vm4169, %v4693, %v4692
    %v4695 = vperm.slane %v3218, %v4171
    %v4696 = vsel %vm4173, %v4695, %v4694
    %v4697 = vperm.slane %v3219, %v4175
    %v4698 = vsel %vm4177, %v4697, %v4696
    %v4699 = vperm.slane %v3220, %v4179
    %v4700 = vsel %vm4181, %v4699, %v4698
    %v4701 = vperm.slane %v3221, %v4183
    %v4702 = vsel %vm4185, %v4701, %v4700
    %v4703 = vperm.slane %v3222, %v4187
    %v4704 = vsel %vm4189, %v4703, %v4702
    %v4705 = vperm.slane %v3223, %v4191
    %v4706 = vsel %vm4193, %v4705, %v4704
    %v4707 = vperm.slane %v3224, %v4195
    %v4708 = vsel %vm4197, %v4707, %v4706
    %v4709 = vperm.slane %v3225, %v4199
    %v4710 = vsel %vm4201, %v4709, %v4708
    %v4711 = vperm.slane %v3226, %v4203
    %v4712 = vsel %vm4205, %v4711, %v4710
    %v4713 = vperm.slane %v3227, %v4207
    %v4714 = vsel %vm4209, %v4713, %v4712
    %v4715 = vperm.slane %v3228, %v4211
    %v4716 = vsel %vm4213, %v4715, %v4714
    %v4717 = vperm.slane %v3229, %v4215
    %v4718 = vsel %vm4217, %v4717, %v4716
    %v4719 = vperm.slane %v3230, %v4219
    %v4720 = vsel %vm4221, %v4719, %v4718
    %v4721 = vperm.slane %v3231, %v4223
    %v4722 = vsel %vm4225, %v4721, %v4720
    %v4723 = vperm.slane %v3232, %v4165
    %v4724 = vperm.slane %v3233, %v4167
    %v4725 = vsel %vm4169, %v4724, %v4723
    %v4726 = vperm.slane %v3234, %v4171
    %v4727 = vsel %vm4173, %v4726, %v4725
    %v4728 = vperm.slane %v3235, %v4175
    %v4729 = vsel %vm4177, %v4728, %v4727
    %v4730 = vperm.slane %v3236, %v4179
    %v4731 = vsel %vm4181, %v4730, %v4729
    %v4732 = vperm.slane %v3237, %v4183
    %v4733 = vsel %vm4185, %v4732, %v4731
    %v4734 = vperm.slane %v3238, %v4187
    %v4735 = vsel %vm4189, %v4734, %v4733
    %v4736 = vperm.slane %v3239, %v4191
    %v4737 = vsel %vm4193, %v4736, %v4735
    %v4738 = vperm.slane %v3240, %v4195
    %v4739 = vsel %vm4197, %v4738, %v4737
    %v4740 = vperm.slane %v3241, %v4199
    %v4741 = vsel %vm4201, %v4740, %v4739
    %v4742 = vperm.slane %v3242, %v4203
    %v4743 = vsel %vm4205, %v4742, %v4741
    %v4744 = vperm.slane %v3243, %v4207
    %v4745 = vsel %vm4209, %v4744, %v4743
    %v4746 = vperm.slane %v3244, %v4211
    %v4747 = vsel %vm4213, %v4746, %v4745
    %v4748 = vperm.slane %v3245, %v4215
    %v4749 = vsel %vm4217, %v4748, %v4747
    %v4750 = vperm.slane %v3246, %v4219
    %v4751 = vsel %vm4221, %v4750, %v4749
    %v4752 = vperm.slane %v3247, %v4223
    %v4753 = vsel %vm4225, %v4752, %v4751
    %v4754 = vperm.slane %v3248, %v4165
    %v4755 = vperm.slane %v3249, %v4167
    %v4756 = vsel %vm4169, %v4755, %v4754
    %v4757 = vperm.slane %v3250, %v4171
    %v4758 = vsel %vm4173, %v4757, %v4756
    %v4759 = vperm.slane %v3251, %v4175
    %v4760 = vsel %vm4177, %v4759, %v4758
    %v4761 = vperm.slane %v3252, %v4179
    %v4762 = vsel %vm4181, %v4761, %v4760
    %v4763 = vperm.slane %v3253, %v4183
    %v4764 = vsel %vm4185, %v4763, %v4762
    %v4765 = vperm.slane %v3254, %v4187
    %v4766 = vsel %vm4189, %v4765, %v4764
    %v4767 = vperm.slane %v3255, %v4191
    %v4768 = vsel %vm4193, %v4767, %v4766
    %v4769 = vperm.slane %v3256, %v4195
    %v4770 = vsel %vm4197, %v4769, %v4768
    %v4771 = vperm.slane %v3257, %v4199
    %v4772 = vsel %vm4201, %v4771, %v4770
    %v4773 = vperm.slane %v3258, %v4203
    %v4774 = vsel %vm4205, %v4773, %v4772
    %v4775 = vperm.slane %v3259, %v4207
    %v4776 = vsel %vm4209, %v4775, %v4774
    %v4777 = vperm.slane %v3260, %v4211
    %v4778 = vsel %vm4213, %v4777, %v4776
    %v4779 = vperm.slane %v3261, %v4215
    %v4780 = vsel %vm4217, %v4779, %v4778
    %v4781 = vperm.slane %v3262, %v4219
    %v4782 = vsel %vm4221, %v4781, %v4780
    %v4783 = vperm.slane %v3263, %v4223
    %v4784 = vsel %vm4225, %v4783, %v4782
    %v4785 = vperm.slane %v3264, %v4165
    %v4786 = vperm.slane %v3265, %v4167
    %v4787 = vsel %vm4169, %v4786, %v4785
    %v4788 = vperm.slane %v3266, %v4171
    %v4789 = vsel %vm4173, %v4788, %v4787
    %v4790 = vperm.slane %v3267, %v4175
    %v4791 = vsel %vm4177, %v4790, %v4789
    %v4792 = vperm.slane %v3268, %v4179
    %v4793 = vsel %vm4181, %v4792, %v4791
    %v4794 = vperm.slane %v3269, %v4183
    %v4795 = vsel %vm4185, %v4794, %v4793
    %v4796 = vperm.slane %v3270, %v4187
    %v4797 = vsel %vm4189, %v4796, %v4795
    %v4798 = vperm.slane %v3271, %v4191
    %v4799 = vsel %vm4193, %v4798, %v4797
    %v4800 = vperm.slane %v3272, %v4195
    %v4801 = vsel %vm4197, %v4800, %v4799
    %v4802 = vperm.slane %v3273, %v4199
    %v4803 = vsel %vm4201, %v4802, %v4801
    %v4804 = vperm.slane %v3274, %v4203
    %v4805 = vsel %vm4205, %v4804, %v4803
    %v4806 = vperm.slane %v3275, %v4207
    %v4807 = vsel %vm4209, %v4806, %v4805
    %v4808 = vperm.slane %v3276, %v4211
    %v4809 = vsel %vm4213, %v4808, %v4807
    %v4810 = vperm.slane %v3277, %v4215
    %v4811 = vsel %vm4217, %v4810, %v4809
    %v4812 = vperm.slane %v3278, %v4219
    %v4813 = vsel %vm4221, %v4812, %v4811
    %v4814 = vperm.slane %v3279, %v4223
    %v4815 = vsel %vm4225, %v4814, %v4813
    %v4816 = vperm.slane %v3280, %v4165
    %v4817 = vperm.slane %v3281, %v4167
    %v4818 = vsel %vm4169, %v4817, %v4816
    %v4819 = vperm.slane %v3282, %v4171
    %v4820 = vsel %vm4173, %v4819, %v4818
    %v4821 = vperm.slane %v3283, %v4175
    %v4822 = vsel %vm4177, %v4821, %v4820
    %v4823 = vperm.slane %v3284, %v4179
    %v4824 = vsel %vm4181, %v4823, %v4822
    %v4825 = vperm.slane %v3285, %v4183
    %v4826 = vsel %vm4185, %v4825, %v4824
    %v4827 = vperm.slane %v3286, %v4187
    %v4828 = vsel %vm4189, %v4827, %v4826
    %v4829 = vperm.slane %v3287, %v4191
    %v4830 = vsel %vm4193, %v4829, %v4828
    %v4831 = vperm.slane %v3288, %v4195
    %v4832 = vsel %vm4197, %v4831, %v4830
    %v4833 = vperm.slane %v3289, %v4199
    %v4834 = vsel %vm4201, %v4833, %v4832
    %v4835 = vperm.slane %v3290, %v4203
    %v4836 = vsel %vm4205, %v4835, %v4834
    %v4837 = vperm.slane %v3291, %v4207
    %v4838 = vsel %vm4209, %v4837, %v4836
    %v4839 = vperm.slane %v3292, %v4211
    %v4840 = vsel %vm4213, %v4839, %v4838
    %v4841 = vperm.slane %v3293, %v4215
    %v4842 = vsel %vm4217, %v4841, %v4840
    %v4843 = vperm.slane %v3294, %v4219
    %v4844 = vsel %vm4221, %v4843, %v4842
    %v4845 = vperm.slane %v3295, %v4223
    %v4846 = vsel %vm4225, %v4845, %v4844
    %v4847 = vperm.slane %v3296, %v4165
    %v4848 = vperm.slane %v3297, %v4167
    %v4849 = vsel %vm4169, %v4848, %v4847
    %v4850 = vperm.slane %v3298, %v4171
    %v4851 = vsel %vm4173, %v4850, %v4849
    %v4852 = vperm.slane %v3299, %v4175
    %v4853 = vsel %vm4177, %v4852, %v4851
    %v4854 = vperm.slane %v3300, %v4179
    %v4855 = vsel %vm4181, %v4854, %v4853
    %v4856 = vperm.slane %v3301, %v4183
    %v4857 = vsel %vm4185, %v4856, %v4855
    %v4858 = vperm.slane %v3302, %v4187
    %v4859 = vsel %vm4189, %v4858, %v4857
    %v4860 = vperm.slane %v3303, %v4191
    %v4861 = vsel %vm4193, %v4860, %v4859
    %v4862 = vperm.slane %v3304, %v4195
    %v4863 = vsel %vm4197, %v4862, %v4861
    %v4864 = vperm.slane %v3305, %v4199
    %v4865 = vsel %vm4201, %v4864, %v4863
    %v4866 = vperm.slane %v3306, %v4203
    %v4867 = vsel %vm4205, %v4866, %v4865
    %v4868 = vperm.slane %v3307, %v4207
    %v4869 = vsel %vm4209, %v4868, %v4867
    %v4870 = vperm.slane %v3308, %v4211
    %v4871 = vsel %vm4213, %v4870, %v4869
    %v4872 = vperm.slane %v3309, %v4215
    %v4873 = vsel %vm4217, %v4872, %v4871
    %v4874 = vperm.slane %v3310, %v4219
    %v4875 = vsel %vm4221, %v4874, %v4873
    %v4876 = vperm.slane %v3311, %v4223
    %v4877 = vsel %vm4225, %v4876, %v4875
    %v4878 = vperm.slane %v3312, %v4165
    %v4879 = vperm.slane %v3313, %v4167
    %v4880 = vsel %vm4169, %v4879, %v4878
    %v4881 = vperm.slane %v3314, %v4171
    %v4882 = vsel %vm4173, %v4881, %v4880
    %v4883 = vperm.slane %v3315, %v4175
    %v4884 = vsel %vm4177, %v4883, %v4882
    %v4885 = vperm.slane %v3316, %v4179
    %v4886 = vsel %vm4181, %v4885, %v4884
    %v4887 = vperm.slane %v3317, %v4183
    %v4888 = vsel %vm4185, %v4887, %v4886
    %v4889 = vperm.slane %v3318, %v4187
    %v4890 = vsel %vm4189, %v4889, %v4888
    %v4891 = vperm.slane %v3319, %v4191
    %v4892 = vsel %vm4193, %v4891, %v4890
    %v4893 = vperm.slane %v3320, %v4195
    %v4894 = vsel %vm4197, %v4893, %v4892
    %v4895 = vperm.slane %v3321, %v4199
    %v4896 = vsel %vm4201, %v4895, %v4894
    %v4897 = vperm.slane %v3322, %v4203
    %v4898 = vsel %vm4205, %v4897, %v4896
    %v4899 = vperm.slane %v3323, %v4207
    %v4900 = vsel %vm4209, %v4899, %v4898
    %v4901 = vperm.slane %v3324, %v4211
    %v4902 = vsel %vm4213, %v4901, %v4900
    %v4903 = vperm.slane %v3325, %v4215
    %v4904 = vsel %vm4217, %v4903, %v4902
    %v4905 = vperm.slane %v3326, %v4219
    %v4906 = vsel %vm4221, %v4905, %v4904
    %v4907 = vperm.slane %v3327, %v4223
    %v4908 = vsel %vm4225, %v4907, %v4906
    %v4909 = vperm.slane %v3328, %v4165
    %v4910 = vperm.slane %v3329, %v4167
    %v4911 = vsel %vm4169, %v4910, %v4909
    %v4912 = vperm.slane %v3330, %v4171
    %v4913 = vsel %vm4173, %v4912, %v4911
    %v4914 = vperm.slane %v3331, %v4175
    %v4915 = vsel %vm4177, %v4914, %v4913
    %v4916 = vperm.slane %v3332, %v4179
    %v4917 = vsel %vm4181, %v4916, %v4915
    %v4918 = vperm.slane %v3333, %v4183
    %v4919 = vsel %vm4185, %v4918, %v4917
    %v4920 = vperm.slane %v3334, %v4187
    %v4921 = vsel %vm4189, %v4920, %v4919
    %v4922 = vperm.slane %v3335, %v4191
    %v4923 = vsel %vm4193, %v4922, %v4921
    %v4924 = vperm.slane %v3336, %v4195
    %v4925 = vsel %vm4197, %v4924, %v4923
    %v4926 = vperm.slane %v3337, %v4199
    %v4927 = vsel %vm4201, %v4926, %v4925
    %v4928 = vperm.slane %v3338, %v4203
    %v4929 = vsel %vm4205, %v4928, %v4927
    %v4930 = vperm.slane %v3339, %v4207
    %v4931 = vsel %vm4209, %v4930, %v4929
    %v4932 = vperm.slane %v3340, %v4211
    %v4933 = vsel %vm4213, %v4932, %v4931
    %v4934 = vperm.slane %v3341, %v4215
    %v4935 = vsel %vm4217, %v4934, %v4933
    %v4936 = vperm.slane %v3342, %v4219
    %v4937 = vsel %vm4221, %v4936, %v4935
    %v4938 = vperm.slane %v3343, %v4223
    %v4939 = vsel %vm4225, %v4938, %v4937
    %v4940 = vperm.slane %v3344, %v4165
    %v4941 = vperm.slane %v3345, %v4167
    %v4942 = vsel %vm4169, %v4941, %v4940
    %v4943 = vperm.slane %v3346, %v4171
    %v4944 = vsel %vm4173, %v4943, %v4942
    %v4945 = vperm.slane %v3347, %v4175
    %v4946 = vsel %vm4177, %v4945, %v4944
    %v4947 = vperm.slane %v3348, %v4179
    %v4948 = vsel %vm4181, %v4947, %v4946
    %v4949 = vperm.slane %v3349, %v4183
    %v4950 = vsel %vm4185, %v4949, %v4948
    %v4951 = vperm.slane %v3350, %v4187
    %v4952 = vsel %vm4189, %v4951, %v4950
    %v4953 = vperm.slane %v3351, %v4191
    %v4954 = vsel %vm4193, %v4953, %v4952
    %v4955 = vperm.slane %v3352, %v4195
    %v4956 = vsel %vm4197, %v4955, %v4954
    %v4957 = vperm.slane %v3353, %v4199
    %v4958 = vsel %vm4201, %v4957, %v4956
    %v4959 = vperm.slane %v3354, %v4203
    %v4960 = vsel %vm4205, %v4959, %v4958
    %v4961 = vperm.slane %v3355, %v4207
    %v4962 = vsel %vm4209, %v4961, %v4960
    %v4963 = vperm.slane %v3356, %v4211
    %v4964 = vsel %vm4213, %v4963, %v4962
    %v4965 = vperm.slane %v3357, %v4215
    %v4966 = vsel %vm4217, %v4965, %v4964
    %v4967 = vperm.slane %v3358, %v4219
    %v4968 = vsel %vm4221, %v4967, %v4966
    %v4969 = vperm.slane %v3359, %v4223
    %v4970 = vsel %vm4225, %v4969, %v4968
    %v4971 = vperm.slane %v3360, %v4165
    %v4972 = vperm.slane %v3361, %v4167
    %v4973 = vsel %vm4169, %v4972, %v4971
    %v4974 = vperm.slane %v3362, %v4171
    %v4975 = vsel %vm4173, %v4974, %v4973
    %v4976 = vperm.slane %v3363, %v4175
    %v4977 = vsel %vm4177, %v4976, %v4975
    %v4978 = vperm.slane %v3364, %v4179
    %v4979 = vsel %vm4181, %v4978, %v4977
    %v4980 = vperm.slane %v3365, %v4183
    %v4981 = vsel %vm4185, %v4980, %v4979
    %v4982 = vperm.slane %v3366, %v4187
    %v4983 = vsel %vm4189, %v4982, %v4981
    %v4984 = vperm.slane %v3367, %v4191
    %v4985 = vsel %vm4193, %v4984, %v4983
    %v4986 = vperm.slane %v3368, %v4195
    %v4987 = vsel %vm4197, %v4986, %v4985
    %v4988 = vperm.slane %v3369, %v4199
    %v4989 = vsel %vm4201, %v4988, %v4987
    %v4990 = vperm.slane %v3370, %v4203
    %v4991 = vsel %vm4205, %v4990, %v4989
    %v4992 = vperm.slane %v3371, %v4207
    %v4993 = vsel %vm4209, %v4992, %v4991
    %v4994 = vperm.slane %v3372, %v4211
    %v4995 = vsel %vm4213, %v4994, %v4993
    %v4996 = vperm.slane %v3373, %v4215
    %v4997 = vsel %vm4217, %v4996, %v4995
    %v4998 = vperm.slane %v3374, %v4219
    %v4999 = vsel %vm4221, %v4998, %v4997
    %v5000 = vperm.slane %v3375, %v4223
    %v5001 = vsel %vm4225, %v5000, %v4999
    %v5002 = vperm.slane %v3376, %v4165
    %v5003 = vperm.slane %v3377, %v4167
    %v5004 = vsel %vm4169, %v5003, %v5002
    %v5005 = vperm.slane %v3378, %v4171
    %v5006 = vsel %vm4173, %v5005, %v5004
    %v5007 = vperm.slane %v3379, %v4175
    %v5008 = vsel %vm4177, %v5007, %v5006
    %v5009 = vperm.slane %v3380, %v4179
    %v5010 = vsel %vm4181, %v5009, %v5008
    %v5011 = vperm.slane %v3381, %v4183
    %v5012 = vsel %vm4185, %v5011, %v5010
    %v5013 = vperm.slane %v3382, %v4187
    %v5014 = vsel %vm4189, %v5013, %v5012
    %v5015 = vperm.slane %v3383, %v4191
    %v5016 = vsel %vm4193, %v5015, %v5014
    %v5017 = vperm.slane %v3384, %v4195
    %v5018 = vsel %vm4197, %v5017, %v5016
    %v5019 = vperm.slane %v3385, %v4199
    %v5020 = vsel %vm4201, %v5019, %v5018
    %v5021 = vperm.slane %v3386, %v4203
    %v5022 = vsel %vm4205, %v5021, %v5020
    %v5023 = vperm.slane %v3387, %v4207
    %v5024 = vsel %vm4209, %v5023, %v5022
    %v5025 = vperm.slane %v3388, %v4211
    %v5026 = vsel %vm4213, %v5025, %v5024
    %v5027 = vperm.slane %v3389, %v4215
    %v5028 = vsel %vm4217, %v5027, %v5026
    %v5029 = vperm.slane %v3390, %v4219
    %v5030 = vsel %vm4221, %v5029, %v5028
    %v5031 = vperm.slane %v3391, %v4223
    %v5032 = vsel %vm4225, %v5031, %v5030
    %v5033 = vperm.slane %v3392, %v4165
    %v5034 = vperm.slane %v3393, %v4167
    %v5035 = vsel %vm4169, %v5034, %v5033
    %v5036 = vperm.slane %v3394, %v4171
    %v5037 = vsel %vm4173, %v5036, %v5035
    %v5038 = vperm.slane %v3395, %v4175
    %v5039 = vsel %vm4177, %v5038, %v5037
    %v5040 = vperm.slane %v3396, %v4179
    %v5041 = vsel %vm4181, %v5040, %v5039
    %v5042 = vperm.slane %v3397, %v4183
    %v5043 = vsel %vm4185, %v5042, %v5041
    %v5044 = vperm.slane %v3398, %v4187
    %v5045 = vsel %vm4189, %v5044, %v5043
    %v5046 = vperm.slane %v3399, %v4191
    %v5047 = vsel %vm4193, %v5046, %v5045
    %v5048 = vperm.slane %v3400, %v4195
    %v5049 = vsel %vm4197, %v5048, %v5047
    %v5050 = vperm.slane %v3401, %v4199
    %v5051 = vsel %vm4201, %v5050, %v5049
    %v5052 = vperm.slane %v3402, %v4203
    %v5053 = vsel %vm4205, %v5052, %v5051
    %v5054 = vperm.slane %v3403, %v4207
    %v5055 = vsel %vm4209, %v5054, %v5053
    %v5056 = vperm.slane %v3404, %v4211
    %v5057 = vsel %vm4213, %v5056, %v5055
    %v5058 = vperm.slane %v3405, %v4215
    %v5059 = vsel %vm4217, %v5058, %v5057
    %v5060 = vperm.slane %v3406, %v4219
    %v5061 = vsel %vm4221, %v5060, %v5059
    %v5062 = vperm.slane %v3407, %v4223
    %v5063 = vsel %vm4225, %v5062, %v5061
    %v5064 = vperm.slane %v3408, %v4165
    %v5065 = vperm.slane %v3409, %v4167
    %v5066 = vsel %vm4169, %v5065, %v5064
    %v5067 = vperm.slane %v3410, %v4171
    %v5068 = vsel %vm4173, %v5067, %v5066
    %v5069 = vperm.slane %v3411, %v4175
    %v5070 = vsel %vm4177, %v5069, %v5068
    %v5071 = vperm.slane %v3412, %v4179
    %v5072 = vsel %vm4181, %v5071, %v5070
    %v5073 = vperm.slane %v3413, %v4183
    %v5074 = vsel %vm4185, %v5073, %v5072
    %v5075 = vperm.slane %v3414, %v4187
    %v5076 = vsel %vm4189, %v5075, %v5074
    %v5077 = vperm.slane %v3415, %v4191
    %v5078 = vsel %vm4193, %v5077, %v5076
    %v5079 = vperm.slane %v3416, %v4195
    %v5080 = vsel %vm4197, %v5079, %v5078
    %v5081 = vperm.slane %v3417, %v4199
    %v5082 = vsel %vm4201, %v5081, %v5080
    %v5083 = vperm.slane %v3418, %v4203
    %v5084 = vsel %vm4205, %v5083, %v5082
    %v5085 = vperm.slane %v3419, %v4207
    %v5086 = vsel %vm4209, %v5085, %v5084
    %v5087 = vperm.slane %v3420, %v4211
    %v5088 = vsel %vm4213, %v5087, %v5086
    %v5089 = vperm.slane %v3421, %v4215
    %v5090 = vsel %vm4217, %v5089, %v5088
    %v5091 = vperm.slane %v3422, %v4219
    %v5092 = vsel %vm4221, %v5091, %v5090
    %v5093 = vperm.slane %v3423, %v4223
    %v5094 = vsel %vm4225, %v5093, %v5092
    %v5095 = vperm.slane %v3424, %v4165
    %v5096 = vperm.slane %v3425, %v4167
    %v5097 = vsel %vm4169, %v5096, %v5095
    %v5098 = vperm.slane %v3426, %v4171
    %v5099 = vsel %vm4173, %v5098, %v5097
    %v5100 = vperm.slane %v3427, %v4175
    %v5101 = vsel %vm4177, %v5100, %v5099
    %v5102 = vperm.slane %v3428, %v4179
    %v5103 = vsel %vm4181, %v5102, %v5101
    %v5104 = vperm.slane %v3429, %v4183
    %v5105 = vsel %vm4185, %v5104, %v5103
    %v5106 = vperm.slane %v3430, %v4187
    %v5107 = vsel %vm4189, %v5106, %v5105
    %v5108 = vperm.slane %v3431, %v4191
    %v5109 = vsel %vm4193, %v5108, %v5107
    %v5110 = vperm.slane %v3432, %v4195
    %v5111 = vsel %vm4197, %v5110, %v5109
    %v5112 = vperm.slane %v3433, %v4199
    %v5113 = vsel %vm4201, %v5112, %v5111
    %v5114 = vperm.slane %v3434, %v4203
    %v5115 = vsel %vm4205, %v5114, %v5113
    %v5116 = vperm.slane %v3435, %v4207
    %v5117 = vsel %vm4209, %v5116, %v5115
    %v5118 = vperm.slane %v3436, %v4211
    %v5119 = vsel %vm4213, %v5118, %v5117
    %v5120 = vperm.slane %v3437, %v4215
    %v5121 = vsel %vm4217, %v5120, %v5119
    %v5122 = vperm.slane %v3438, %v4219
    %v5123 = vsel %vm4221, %v5122, %v5121
    %v5124 = vperm.slane %v3439, %v4223
    %v5125 = vsel %vm4225, %v5124, %v5123
    %vm5126 = vcmask 1041409
    %v5127 = vsel %vm5126, %v4691, %v4226
    %v5128 = vsel %vm5126, %v4722, %v4257
    %v5129 = vsel %vm5126, %v4753, %v4288
    %v5130 = vsel %vm5126, %v4784, %v4319
    %v5131 = vsel %vm5126, %v4815, %v4350
    %v5132 = vsel %vm5126, %v4846, %v4381
    %v5133 = vsel %vm5126, %v4877, %v4412
    %v5134 = vsel %vm5126, %v4908, %v4443
    %v5135 = vsel %vm5126, %v4939, %v4474
    %v5136 = vsel %vm5126, %v4970, %v4505
    %v5137 = vsel %vm5126, %v5001, %v4536
    %v5138 = vsel %vm5126, %v5032, %v4567
    %v5139 = vsel %vm5126, %v5063, %v4598
    %v5140 = vsel %vm5126, %v5094, %v4629
    %v5141 = vsel %vm5126, %v5125, %v4660
    %5157 = vmatpush.xpose.msra.mxu0 %v3665
    %5158 = vmatpush.xpose.msra.mxu0 %v3650
    %5159 = vmatpush.xpose.msra.mxu0 %v3635
    %5160 = vmatpush.xpose.msra.mxu0 %v3620
    %5161 = vmatpush.xpose.msra.mxu0 %v3605
    %5162 = vmatpush.xpose.msra.mxu0 %v3590
    %5163 = vmatpush.xpose.msra.mxu0 %v3575
    %5164 = vmatpush.xpose.msra.mxu0 %v3560
    %5165 = vmatpush.xpose.msra.mxu0 %v3545
    %5166 = vmatpush.xpose.msra.mxu0 %v3530
    %5167 = vmatpush.xpose.msra.mxu0 %v3515
    %5168 = vmatpush.xpose.msra.mxu0 %v3500
    %5169 = vmatpush.xpose.msra.mxu0 %v3485
    %5170 = vmatpush.xpose.msra.mxu0 %v3470
    %5171 = vmatpush.xpose.msra.mxu0 %v3455
    %5172 = vmatpush.xpose.msra.mxu0 %v3440
    %5173 = vmatmul.f32.gmra.mxu0 %v5127
    %v5174 = vpop.f32.mrf.mxu0
    %v5175 = vadd.f32 %v3682, %v5174
    %5176 = vdwg.mxu0
    %5177 = vmatpush.xpose.msra.mxu0 %v3666
    %5178 = vmatpush.xpose.msra.mxu0 %v3651
    %5179 = vmatpush.xpose.msra.mxu0 %v3636
    %5180 = vmatpush.xpose.msra.mxu0 %v3621
    %5181 = vmatpush.xpose.msra.mxu0 %v3606
    %5182 = vmatpush.xpose.msra.mxu0 %v3591
    %5183 = vmatpush.xpose.msra.mxu0 %v3576
    %5184 = vmatpush.xpose.msra.mxu0 %v3561
    %5185 = vmatpush.xpose.msra.mxu0 %v3546
    %5186 = vmatpush.xpose.msra.mxu0 %v3531
    %5187 = vmatpush.xpose.msra.mxu0 %v3516
    %5188 = vmatpush.xpose.msra.mxu0 %v3501
    %5189 = vmatpush.xpose.msra.mxu0 %v3486
    %5190 = vmatpush.xpose.msra.mxu0 %v3471
    %5191 = vmatpush.xpose.msra.mxu0 %v3456
    %5192 = vmatpush.xpose.msra.mxu0 %v3441
    %5193 = vmatmul.f32.gmra.mxu0 %v5128
    %v5194 = vpop.f32.mrf.mxu0
    %v5195 = vadd.f32 %v5175, %v5194
    %5196 = vdwg.mxu0
    %5197 = vmatpush.xpose.msra.mxu0 %v3667
    %5198 = vmatpush.xpose.msra.mxu0 %v3652
    %5199 = vmatpush.xpose.msra.mxu0 %v3637
    %5200 = vmatpush.xpose.msra.mxu0 %v3622
    %5201 = vmatpush.xpose.msra.mxu0 %v3607
    %5202 = vmatpush.xpose.msra.mxu0 %v3592
    %5203 = vmatpush.xpose.msra.mxu0 %v3577
    %5204 = vmatpush.xpose.msra.mxu0 %v3562
    %5205 = vmatpush.xpose.msra.mxu0 %v3547
    %5206 = vmatpush.xpose.msra.mxu0 %v3532
    %5207 = vmatpush.xpose.msra.mxu0 %v3517
    %5208 = vmatpush.xpose.msra.mxu0 %v3502
    %5209 = vmatpush.xpose.msra.mxu0 %v3487
    %5210 = vmatpush.xpose.msra.mxu0 %v3472
    %5211 = vmatpush.xpose.msra.mxu0 %v3457
    %5212 = vmatpush.xpose.msra.mxu0 %v3442
    %5213 = vmatmul.f32.gmra.mxu0 %v5129
    %v5214 = vpop.f32.mrf.mxu0
    %v5215 = vadd.f32 %v5195, %v5214
    %5216 = vdwg.mxu0
    %5217 = vmatpush.xpose.msra.mxu0 %v3668
    %5218 = vmatpush.xpose.msra.mxu0 %v3653
    %5219 = vmatpush.xpose.msra.mxu0 %v3638
    %5220 = vmatpush.xpose.msra.mxu0 %v3623
    %5221 = vmatpush.xpose.msra.mxu0 %v3608
    %5222 = vmatpush.xpose.msra.mxu0 %v3593
    %5223 = vmatpush.xpose.msra.mxu0 %v3578
    %5224 = vmatpush.xpose.msra.mxu0 %v3563
    %5225 = vmatpush.xpose.msra.mxu0 %v3548
    %5226 = vmatpush.xpose.msra.mxu0 %v3533
    %5227 = vmatpush.xpose.msra.mxu0 %v3518
    %5228 = vmatpush.xpose.msra.mxu0 %v3503
    %5229 = vmatpush.xpose.msra.mxu0 %v3488
    %5230 = vmatpush.xpose.msra.mxu0 %v3473
    %5231 = vmatpush.xpose.msra.mxu0 %v3458
    %5232 = vmatpush.xpose.msra.mxu0 %v3443
    %5233 = vmatmul.f32.gmra.mxu0 %v5130
    %v5234 = vpop.f32.mrf.mxu0
    %v5235 = vadd.f32 %v5215, %v5234
    %5236 = vdwg.mxu0
    %5237 = vmatpush.xpose.msra.mxu0 %v3669
    %5238 = vmatpush.xpose.msra.mxu0 %v3654
    %5239 = vmatpush.xpose.msra.mxu0 %v3639
    %5240 = vmatpush.xpose.msra.mxu0 %v3624
    %5241 = vmatpush.xpose.msra.mxu0 %v3609
    %5242 = vmatpush.xpose.msra.mxu0 %v3594
    %5243 = vmatpush.xpose.msra.mxu0 %v3579
    %5244 = vmatpush.xpose.msra.mxu0 %v3564
    %5245 = vmatpush.xpose.msra.mxu0 %v3549
    %5246 = vmatpush.xpose.msra.mxu0 %v3534
    %5247 = vmatpush.xpose.msra.mxu0 %v3519
    %5248 = vmatpush.xpose.msra.mxu0 %v3504
    %5249 = vmatpush.xpose.msra.mxu0 %v3489
    %5250 = vmatpush.xpose.msra.mxu0 %v3474
    %5251 = vmatpush.xpose.msra.mxu0 %v3459
    %5252 = vmatpush.xpose.msra.mxu0 %v3444
    %5253 = vmatmul.f32.gmra.mxu0 %v5131
    %v5254 = vpop.f32.mrf.mxu0
    %v5255 = vadd.f32 %v5235, %v5254
    %5256 = vdwg.mxu0
    %5257 = vmatpush.xpose.msra.mxu0 %v3670
    %5258 = vmatpush.xpose.msra.mxu0 %v3655
    %5259 = vmatpush.xpose.msra.mxu0 %v3640
    %5260 = vmatpush.xpose.msra.mxu0 %v3625
    %5261 = vmatpush.xpose.msra.mxu0 %v3610
    %5262 = vmatpush.xpose.msra.mxu0 %v3595
    %5263 = vmatpush.xpose.msra.mxu0 %v3580
    %5264 = vmatpush.xpose.msra.mxu0 %v3565
    %5265 = vmatpush.xpose.msra.mxu0 %v3550
    %5266 = vmatpush.xpose.msra.mxu0 %v3535
    %5267 = vmatpush.xpose.msra.mxu0 %v3520
    %5268 = vmatpush.xpose.msra.mxu0 %v3505
    %5269 = vmatpush.xpose.msra.mxu0 %v3490
    %5270 = vmatpush.xpose.msra.mxu0 %v3475
    %5271 = vmatpush.xpose.msra.mxu0 %v3460
    %5272 = vmatpush.xpose.msra.mxu0 %v3445
    %5273 = vmatmul.f32.gmra.mxu0 %v5132
    %v5274 = vpop.f32.mrf.mxu0
    %v5275 = vadd.f32 %v5255, %v5274
    %5276 = vdwg.mxu0
    %5277 = vmatpush.xpose.msra.mxu0 %v3671
    %5278 = vmatpush.xpose.msra.mxu0 %v3656
    %5279 = vmatpush.xpose.msra.mxu0 %v3641
    %5280 = vmatpush.xpose.msra.mxu0 %v3626
    %5281 = vmatpush.xpose.msra.mxu0 %v3611
    %5282 = vmatpush.xpose.msra.mxu0 %v3596
    %5283 = vmatpush.xpose.msra.mxu0 %v3581
    %5284 = vmatpush.xpose.msra.mxu0 %v3566
    %5285 = vmatpush.xpose.msra.mxu0 %v3551
    %5286 = vmatpush.xpose.msra.mxu0 %v3536
    %5287 = vmatpush.xpose.msra.mxu0 %v3521
    %5288 = vmatpush.xpose.msra.mxu0 %v3506
    %5289 = vmatpush.xpose.msra.mxu0 %v3491
    %5290 = vmatpush.xpose.msra.mxu0 %v3476
    %5291 = vmatpush.xpose.msra.mxu0 %v3461
    %5292 = vmatpush.xpose.msra.mxu0 %v3446
    %5293 = vmatmul.f32.gmra.mxu0 %v5133
    %v5294 = vpop.f32.mrf.mxu0
    %v5295 = vadd.f32 %v5275, %v5294
    %5296 = vdwg.mxu0
    %5297 = vmatpush.xpose.msra.mxu0 %v3672
    %5298 = vmatpush.xpose.msra.mxu0 %v3657
    %5299 = vmatpush.xpose.msra.mxu0 %v3642
    %5300 = vmatpush.xpose.msra.mxu0 %v3627
    %5301 = vmatpush.xpose.msra.mxu0 %v3612
    %5302 = vmatpush.xpose.msra.mxu0 %v3597
    %5303 = vmatpush.xpose.msra.mxu0 %v3582
    %5304 = vmatpush.xpose.msra.mxu0 %v3567
    %5305 = vmatpush.xpose.msra.mxu0 %v3552
    %5306 = vmatpush.xpose.msra.mxu0 %v3537
    %5307 = vmatpush.xpose.msra.mxu0 %v3522
    %5308 = vmatpush.xpose.msra.mxu0 %v3507
    %5309 = vmatpush.xpose.msra.mxu0 %v3492
    %5310 = vmatpush.xpose.msra.mxu0 %v3477
    %5311 = vmatpush.xpose.msra.mxu0 %v3462
    %5312 = vmatpush.xpose.msra.mxu0 %v3447
    %5313 = vmatmul.f32.gmra.mxu0 %v5134
    %v5314 = vpop.f32.mrf.mxu0
    %v5315 = vadd.f32 %v5295, %v5314
    %5316 = vdwg.mxu0
    %5317 = vmatpush.xpose.msra.mxu0 %v3673
    %5318 = vmatpush.xpose.msra.mxu0 %v3658
    %5319 = vmatpush.xpose.msra.mxu0 %v3643
    %5320 = vmatpush.xpose.msra.mxu0 %v3628
    %5321 = vmatpush.xpose.msra.mxu0 %v3613
    %5322 = vmatpush.xpose.msra.mxu0 %v3598
    %5323 = vmatpush.xpose.msra.mxu0 %v3583
    %5324 = vmatpush.xpose.msra.mxu0 %v3568
    %5325 = vmatpush.xpose.msra.mxu0 %v3553
    %5326 = vmatpush.xpose.msra.mxu0 %v3538
    %5327 = vmatpush.xpose.msra.mxu0 %v3523
    %5328 = vmatpush.xpose.msra.mxu0 %v3508
    %5329 = vmatpush.xpose.msra.mxu0 %v3493
    %5330 = vmatpush.xpose.msra.mxu0 %v3478
    %5331 = vmatpush.xpose.msra.mxu0 %v3463
    %5332 = vmatpush.xpose.msra.mxu0 %v3448
    %5333 = vmatmul.f32.gmra.mxu0 %v5135
    %v5334 = vpop.f32.mrf.mxu0
    %v5335 = vadd.f32 %v5315, %v5334
    %5336 = vdwg.mxu0
    %5337 = vmatpush.xpose.msra.mxu0 %v3674
    %5338 = vmatpush.xpose.msra.mxu0 %v3659
    %5339 = vmatpush.xpose.msra.mxu0 %v3644
    %5340 = vmatpush.xpose.msra.mxu0 %v3629
    %5341 = vmatpush.xpose.msra.mxu0 %v3614
    %5342 = vmatpush.xpose.msra.mxu0 %v3599
    %5343 = vmatpush.xpose.msra.mxu0 %v3584
    %5344 = vmatpush.xpose.msra.mxu0 %v3569
    %5345 = vmatpush.xpose.msra.mxu0 %v3554
    %5346 = vmatpush.xpose.msra.mxu0 %v3539
    %5347 = vmatpush.xpose.msra.mxu0 %v3524
    %5348 = vmatpush.xpose.msra.mxu0 %v3509
    %5349 = vmatpush.xpose.msra.mxu0 %v3494
    %5350 = vmatpush.xpose.msra.mxu0 %v3479
    %5351 = vmatpush.xpose.msra.mxu0 %v3464
    %5352 = vmatpush.xpose.msra.mxu0 %v3449
    %5353 = vmatmul.f32.gmra.mxu0 %v5136
    %v5354 = vpop.f32.mrf.mxu0
    %v5355 = vadd.f32 %v5335, %v5354
    %5356 = vdwg.mxu0
    %5357 = vmatpush.xpose.msra.mxu0 %v3675
    %5358 = vmatpush.xpose.msra.mxu0 %v3660
    %5359 = vmatpush.xpose.msra.mxu0 %v3645
    %5360 = vmatpush.xpose.msra.mxu0 %v3630
    %5361 = vmatpush.xpose.msra.mxu0 %v3615
    %5362 = vmatpush.xpose.msra.mxu0 %v3600
    %5363 = vmatpush.xpose.msra.mxu0 %v3585
    %5364 = vmatpush.xpose.msra.mxu0 %v3570
    %5365 = vmatpush.xpose.msra.mxu0 %v3555
    %5366 = vmatpush.xpose.msra.mxu0 %v3540
    %5367 = vmatpush.xpose.msra.mxu0 %v3525
    %5368 = vmatpush.xpose.msra.mxu0 %v3510
    %5369 = vmatpush.xpose.msra.mxu0 %v3495
    %5370 = vmatpush.xpose.msra.mxu0 %v3480
    %5371 = vmatpush.xpose.msra.mxu0 %v3465
    %5372 = vmatpush.xpose.msra.mxu0 %v3450
    %5373 = vmatmul.f32.gmra.mxu0 %v5137
    %v5374 = vpop.f32.mrf.mxu0
    %v5375 = vadd.f32 %v5355, %v5374
    %5376 = vdwg.mxu0
    %5377 = vmatpush.xpose.msra.mxu0 %v3676
    %5378 = vmatpush.xpose.msra.mxu0 %v3661
    %5379 = vmatpush.xpose.msra.mxu0 %v3646
    %5380 = vmatpush.xpose.msra.mxu0 %v3631
    %5381 = vmatpush.xpose.msra.mxu0 %v3616
    %5382 = vmatpush.xpose.msra.mxu0 %v3601
    %5383 = vmatpush.xpose.msra.mxu0 %v3586
    %5384 = vmatpush.xpose.msra.mxu0 %v3571
    %5385 = vmatpush.xpose.msra.mxu0 %v3556
    %5386 = vmatpush.xpose.msra.mxu0 %v3541
    %5387 = vmatpush.xpose.msra.mxu0 %v3526
    %5388 = vmatpush.xpose.msra.mxu0 %v3511
    %5389 = vmatpush.xpose.msra.mxu0 %v3496
    %5390 = vmatpush.xpose.msra.mxu0 %v3481
    %5391 = vmatpush.xpose.msra.mxu0 %v3466
    %5392 = vmatpush.xpose.msra.mxu0 %v3451
    %5393 = vmatmul.f32.gmra.mxu0 %v5138
    %v5394 = vpop.f32.mrf.mxu0
    %v5395 = vadd.f32 %v5375, %v5394
    %5396 = vdwg.mxu0
    %5397 = vmatpush.xpose.msra.mxu0 %v3677
    %5398 = vmatpush.xpose.msra.mxu0 %v3662
    %5399 = vmatpush.xpose.msra.mxu0 %v3647
    %5400 = vmatpush.xpose.msra.mxu0 %v3632
    %5401 = vmatpush.xpose.msra.mxu0 %v3617
    %5402 = vmatpush.xpose.msra.mxu0 %v3602
    %5403 = vmatpush.xpose.msra.mxu0 %v3587
    %5404 = vmatpush.xpose.msra.mxu0 %v3572
    %5405 = vmatpush.xpose.msra.mxu0 %v3557
    %5406 = vmatpush.xpose.msra.mxu0 %v3542
    %5407 = vmatpush.xpose.msra.mxu0 %v3527
    %5408 = vmatpush.xpose.msra.mxu0 %v3512
    %5409 = vmatpush.xpose.msra.mxu0 %v3497
    %5410 = vmatpush.xpose.msra.mxu0 %v3482
    %5411 = vmatpush.xpose.msra.mxu0 %v3467
    %5412 = vmatpush.xpose.msra.mxu0 %v3452
    %5413 = vmatmul.f32.gmra.mxu0 %v5139
    %v5414 = vpop.f32.mrf.mxu0
    %v5415 = vadd.f32 %v5395, %v5414
    %5416 = vdwg.mxu0
    %5417 = vmatpush.xpose.msra.mxu0 %v3678
    %5418 = vmatpush.xpose.msra.mxu0 %v3663
    %5419 = vmatpush.xpose.msra.mxu0 %v3648
    %5420 = vmatpush.xpose.msra.mxu0 %v3633
    %5421 = vmatpush.xpose.msra.mxu0 %v3618
    %5422 = vmatpush.xpose.msra.mxu0 %v3603
    %5423 = vmatpush.xpose.msra.mxu0 %v3588
    %5424 = vmatpush.xpose.msra.mxu0 %v3573
    %5425 = vmatpush.xpose.msra.mxu0 %v3558
    %5426 = vmatpush.xpose.msra.mxu0 %v3543
    %5427 = vmatpush.xpose.msra.mxu0 %v3528
    %5428 = vmatpush.xpose.msra.mxu0 %v3513
    %5429 = vmatpush.xpose.msra.mxu0 %v3498
    %5430 = vmatpush.xpose.msra.mxu0 %v3483
    %5431 = vmatpush.xpose.msra.mxu0 %v3468
    %5432 = vmatpush.xpose.msra.mxu0 %v3453
    %5433 = vmatmul.f32.gmra.mxu0 %v5140
    %v5434 = vpop.f32.mrf.mxu0
    %v5435 = vadd.f32 %v5415, %v5434
    %5436 = vdwg.mxu0
    %5437 = vmatpush.xpose.msra.mxu0 %v3679
    %5438 = vmatpush.xpose.msra.mxu0 %v3664
    %5439 = vmatpush.xpose.msra.mxu0 %v3649
    %5440 = vmatpush.xpose.msra.mxu0 %v3634
    %5441 = vmatpush.xpose.msra.mxu0 %v3619
    %5442 = vmatpush.xpose.msra.mxu0 %v3604
    %5443 = vmatpush.xpose.msra.mxu0 %v3589
    %5444 = vmatpush.xpose.msra.mxu0 %v3574
    %5445 = vmatpush.xpose.msra.mxu0 %v3559
    %5446 = vmatpush.xpose.msra.mxu0 %v3544
    %5447 = vmatpush.xpose.msra.mxu0 %v3529
    %5448 = vmatpush.xpose.msra.mxu0 %v3514
    %5449 = vmatpush.xpose.msra.mxu0 %v3499
    %5450 = vmatpush.xpose.msra.mxu0 %v3484
    %5451 = vmatpush.xpose.msra.mxu0 %v3469
    %5452 = vmatpush.xpose.msra.mxu0 %v3454
    %5453 = vmatmul.f32.gmra.mxu0 %v5141
    %v5454 = vpop.f32.mrf.mxu0
    %v5455 = vadd.f32 %v5435, %v5454
    %5456 = vdwg.mxu0
    %5457 = vst [vmem:[#allocation10] sm:$0x3] %v5455
    // Predicated region
    $region34: #{tpu_custom_call.1} parent=1 // pred_check
      _
    $region35: #{tpu_custom_call.1} parent=1 // pred_check_branch
      %5459 = sbr.rel (0) target = $region37
    $region36: #{tpu_custom_call.1} parent=1 // pred_region
      %5461 = vsyncadd [#allocation4], 0
      %s5463 = sshll.u32 [#allocation10], 4
      %s5464 = int_to_ptr.vmem [resolvable:$true] %s5463
      %s5465 = sshll.u32 %s4, 4
      %s5466 = int_to_ptr.hbm [resolvable:$true] %s5465
      %5468 = dma.vmem_to_hbm [thread:$0]  %s5464, 32, %s5466, [#allocation4]
    $region37: #{tpu_custom_call.1} parent=1 // pred_fallthru
      _
    // Predicated region
    $region38: #{tpu_custom_call.1} parent=1 // pred_check
      _
    $region39: #{tpu_custom_call.1} parent=1 // pred_check_branch
      %5470 = sbr.rel (0) target = $region41
    $region40: #{tpu_custom_call.1} parent=1 // pred_region
      %5472 = dma.done [#allocation4], 32
    $region41: #{tpu_custom_call.1} parent=1 // pred_fallthru
      _
    %5473 = vsyncpa [#allocation3], 1
    %5474 = vsyncpa [#allocation8], 1
    %5475 = vsyncpa [#allocation4], 1
    %5476 = vsyncpa [#allocation5], 1

</llo_original>
